<compile_context>
chip_gen: v6e
topology: v6e:2x2x1
jax: 0.10.0
libtpu: 0.0.40
codegen_flags: <defaults>
</compile_context>

<pallas_src>
import math

import jax
import jax.numpy as jnp
from jax import lax
from jax.experimental import pallas as pl
from jax.experimental.pallas import tpu as pltpu


# ----------------------------- Pallas kernel -------------------------------


def _lstm_ae_kernel(
    x_ref,                                   # (T, TB, D)  encoder input, time-major
    wih_e0_ref, whh_e0_ref, b_e0_ref,        # encoder L0: (D,4H), (H,4H), (1,4H)
    wih_e1_ref, whh_e1_ref, b_e1_ref,        # encoder L1: (H,4H), (H,4H), (1,4H)
    whh_d0_ref, b_d0_ref,                    # decoder L0: (H,4H), (1,4H)  (zero input)
    wih_d1_ref, whh_d1_ref, b_d1_ref,        # decoder L1: (H,4H), (H,4H), (1,4H)
    ln_g_ref, ln_b_ref,                      # LayerNorm gamma/beta: (1, H)
    w_out_ref, b_out_ref,                    # Linear: (H, D), (1, D)
    out_ref,                                 # (T, TB, D)
):
    T, TB, D = x_ref.shape
    H = ln_g_ref.shape[1]
    f32 = jnp.float32

    def gates_to_hc(gates, c):
        # Wrapper pre-scaled the g-gate columns (2H:3H) of every gate weight/bias
        # by 2, so one full-width sigmoid covers all four gates
        # (tanh(z) == 2*sigmoid(2z) - 1); the 2*s-1 fixup is a cheap VALU op.
        sig = jax.nn.sigmoid(gates)
        i = sig[:, 0 * H:1 * H]
        f = sig[:, 1 * H:2 * H]
        g = 2.0 * sig[:, 2 * H:3 * H] - 1.0
        o = sig[:, 3 * H:4 * H]
        c_new = f * c + i * g
        h_new = o * jnp.tanh(c_new)
        return h_new, c_new

    zeros_bh = jnp.zeros((TB, H), f32)
    h0 = c0 = h1 = c1 = zeros_bh

    # ------------------------- encoder, layer 0 -----------------------------
    # Input projection for all T steps in one MXU call (M = T*TB), bias fused.
    # TB is a multiple of 8, so merging (T, TB) is a layout no-op.
    x_flat = x_ref[...].reshape(T * TB, D)
    xg0 = jnp.dot(x_flat, wih_e0_ref[...], preferred_element_type=f32) + b_e0_ref[...]
    whh_e0 = whh_e0_ref[...]

    h0_steps = []
    for t in range(T):                       # fully unrolled: T small & static
        gates = xg0[t * TB:(t + 1) * TB] + jnp.dot(h0, whh_e0,
                                                   preferred_element_type=f32)
        h0, c0 = gates_to_hc(gates, c0)
        h0_steps.append(h0)

    # ------------------------- encoder, layer 1 -----------------------------
    h0_all = jnp.concatenate(h0_steps, axis=0)                    # (T*TB, H)
    xg1 = jnp.dot(h0_all, wih_e1_ref[...], preferred_element_type=f32) + b_e1_ref[...]
    whh_e1 = whh_e1_ref[...]
    for t in range(T):
        gates = xg1[t * TB:(t + 1) * TB] + jnp.dot(h1, whh_e1,
                                                   preferred_element_type=f32)
        h1, c1 = gates_to_hc(gates, c1)

    # ------------------------- decoder, layer 0 -----------------------------
    # Decoder input is all-zeros at every step, so the W_ih(x=0) term vanishes;
    # only the hidden recurrence + bias remains.
    whh_d0 = whh_d0_ref[...]
    b_d0 = jnp.broadcast_to(b_d0_ref[...], (TB, 4 * H))           # hoisted
    d0_steps = []
    for t in range(T):
        gates = jnp.dot(h0, whh_d0, preferred_element_type=f32) + b_d0
        h0, c0 = gates_to_hc(gates, c0)
        d0_steps.append(h0)

    # ------------------------- decoder, layer 1 -----------------------------
    d0_all = jnp.concatenate(d0_steps, axis=0)                     # (T*TB, H)
    xg1d = jnp.dot(d0_all, wih_d1_ref[...], preferred_element_type=f32) + b_d1_ref[...]
    whh_d1 = whh_d1_ref[...]
    dec_steps = []
    for t in range(T):
        gates = xg1d[t * TB:(t + 1) * TB] + jnp.dot(h1, whh_d1,
                                                    preferred_element_type=f32)
        h1, c1 = gates_to_hc(gates, c1)
        dec_steps.append(h1)

    dec = jnp.concatenate(dec_steps, axis=0)                       # (T*TB, H)

    # --------------------- LayerNorm + output projection --------------------
    mean = jnp.mean(dec, axis=-1, keepdims=True)
    var = jnp.mean((dec - mean) ** 2, axis=-1, keepdims=True)
    normed = (dec - mean) * lax.rsqrt(var + 1e-5)
    normed = normed * ln_g_ref[...] + ln_b_ref[...]
    out = jnp.dot(normed, w_out_ref[...], preferred_element_type=f32) + b_out_ref[...]
    out_ref[...] = out.reshape(T, TB, D)


# ------------------------------- wrapper ------------------------------------


def lstm_autoencoder(x, params):
    """x: (B, T, D) batch_first float32 -> (B, T, D)."""
    B, T, D = x.shape
    f32 = jnp.float32
    H = params["e_whh0"].shape[0]

    # Batch block: multiple of the f32 sublane height (8), capped at 256 so the
    # block stays comfortably inside VMEM; grid iterates remaining blocks and is
    # marked "parallel" (v7x megacore shards blocks across its two TensorCores —
    # for production batches pick TB ≈ B_pad/2 there).
    SUB = 8
    b8 = ((B + SUB - 1) // SUB) * SUB
    TB = min(b8, 256)
    B_pad = ((b8 + TB - 1) // TB) * TB

    x_tm = jnp.transpose(x.astype(f32), (1, 0, 2))                 # (T, B, D)
    if B_pad != B:
        x_tm = jnp.pad(x_tm, ((0, 0), (0, B_pad - B), (0, 0)))

    # Pre-scale the g-gate columns (2H:3H) of every gate weight/bias by 2 so the
    # kernel can use a single sigmoid pass (tanh(z) == 2*sigmoid(2z) - 1).
    gscale = jnp.concatenate([jnp.ones((H,), f32), jnp.ones((H,), f32),
                              jnp.full((H,), 2.0, f32), jnp.ones((H,), f32)])

    def gs(a):
        return a * gscale

    args = [
        gs(params["e_wih0"]), gs(params["e_whh0"]), gs(params["e_b0"]),
        gs(params["e_wih1"]), gs(params["e_whh1"]), gs(params["e_b1"]),
        gs(params["d_whh0"]), gs(params["d_b0"]),
        gs(params["d_wih1"]), gs(params["d_whh1"]), gs(params["d_b1"]),
        params["ln_g"], params["ln_b"], params["w_out"], params["b_out"],
    ]

    def full_spec(a):
        nd = a.ndim
        return pl.BlockSpec(a.shape, lambda b, _nd=nd: (0,) * _nd)

    out_tm = pl.pallas_call(
        _lstm_ae_kernel,
        out_shape=jax.ShapeDtypeStruct((T, B_pad, D), f32),
        grid=(B_pad // TB,),
        in_specs=[pl.BlockSpec((T, TB, D), lambda b: (0, b, 0))]
                 + [full_spec(a) for a in args],
        out_specs=pl.BlockSpec((T, TB, D), lambda b: (0, b, 0)),
        compiler_params=pltpu.CompilerParams(
            dimension_semantics=("parallel",)),
    )(x_tm, *args)

    return jnp.transpose(out_tm, (1, 0, 2))[:B]                    # (B, T, D)


# ------------------------- pure-JAX reference -------------------------------


def _ref_cell(x_t, h, c, wih, whh, b, H):
    gates = x_t @ wih + h @ whh + b
    i = jax.nn.sigmoid(gates[:, 0 * H:1 * H])
    f = jax.nn.sigmoid(gates[:, 1 * H:2 * H])
    g = jnp.tanh(gates[:, 2 * H:3 * H])
    o = jax.nn.sigmoid(gates[:, 3 * H:4 * H])
    c = f * c + i * g
    h = o * jnp.tanh(c)
    return h, c


def ref_forward(x, p):
    B, T, D = x.shape
    H = p["e_whh0"].shape[0]
    z = jnp.zeros((B, H), jnp.float32)
    h0, c0, h1, c1 = z, z, z, z
    for t in range(T):
        h0, c0 = _ref_cell(x[:, t], h0, c0, p["e_wih0"], p["e_whh0"], p["e_b0"], H)
        h1, c1 = _ref_cell(h0, h1, c1, p["e_wih1"], p["e_whh1"], p["e_b1"], H)
    dh0, dc0, dh1, dc1 = h0, c0, h1, c1
    outs = []
    zero_in = jnp.zeros((B, H), jnp.float32)
    for t in range(T):
        dh0, dc0 = _ref_cell(zero_in, dh0, dc0,
                             jnp.zeros((H, 4 * H), jnp.float32),
                             p["d_whh0"], p["d_b0"], H)
        dh1, dc1 = _ref_cell(dh0, dh1, dc1, p["d_wih1"], p["d_whh1"], p["d_b1"], H)
        outs.append(dh1)
    dec = jnp.stack(outs, axis=1)                                  # (B, T, H)
    mean = jnp.mean(dec, axis=-1, keepdims=True)
    var = jnp.mean((dec - mean) ** 2, axis=-1, keepdims=True)
    normed = (dec - mean) / jnp.sqrt(var + 1e-5)
    normed = normed * p["ln_g"][0] + p["ln_b"][0]
    return normed @ p["w_out"] + p["b_out"][0]


# ------------------------------ param init ----------------------------------


def init_params(key, input_dim, hidden_dim):
    H, D = hidden_dim, input_dim
    k = 1.0 / math.sqrt(H)
    keys = jax.random.split(key, 32)
    ki = iter(keys)

    def u(shape):
        return jax.random.uniform(next(ki), shape, jnp.float32, -k, k)

    return {
        # encoder (weights stored pre-transposed: x @ W); biases are b_ih + b_hh fused
        "e_wih0": u((D, 4 * H)), "e_whh0": u((H, 4 * H)), "e_b0": u((1, 4 * H)),
        "e_wih1": u((H, 4 * H)), "e_whh1": u((H, 4 * H)), "e_b1": u((1, 4 * H)),
        # decoder (layer-0 W_ih omitted: it multiplies the all-zero decoder input)
        "d_whh0": u((H, 4 * H)), "d_b0": u((1, 4 * H)),
        "d_wih1": u((H, 4 * H)), "d_whh1": u((H, 4 * H)), "d_b1": u((1, 4 * H)),
        # layer norm
        "ln_g": jnp.ones((1, H), jnp.float32), "ln_b": jnp.zeros((1, H), jnp.float32),
        # output linear
        "w_out": u((H, D)), "b_out": u((1, D)),
    }


# --------------------------------- main --------------------------------------

if __name__ == "__main__":
    batch, seq_len, input_dim, hidden_dim = 2, 8, 16, 32

    key = jax.random.PRNGKey(0)
    k_x, k_p = jax.random.split(key)
    x = jax.random.normal(k_x, (batch, seq_len, input_dim), jnp.float32)
    params = init_params(k_p, input_dim, hidden_dim)

    out = jax.block_until_ready(lstm_autoencoder(x, params))
    assert out.shape == (batch, seq_len, input_dim), out.shape

    ref = jax.block_until_ready(ref_forward(x, params))
    max_err = float(jnp.max(jnp.abs(out - ref)))
    assert max_err < 5e-3, f"mismatch vs reference: {max_err}"

    print("KERNEL_OK")
</pallas_src>

<mosaic_0001>
module attributes {stable_mosaic.version = 11 : i64} {
  func.func @_lstm_ae_kernel(%arg0: i32, %arg1: memref<8x8x16xf32, #tpu.memory_space<vmem>>, %arg2: memref<16x128xf32, #tpu.memory_space<vmem>>, %arg3: memref<32x128xf32, #tpu.memory_space<vmem>>, %arg4: memref<1x128xf32, #tpu.memory_space<vmem>>, %arg5: memref<32x128xf32, #tpu.memory_space<vmem>>, %arg6: memref<32x128xf32, #tpu.memory_space<vmem>>, %arg7: memref<1x128xf32, #tpu.memory_space<vmem>>, %arg8: memref<32x128xf32, #tpu.memory_space<vmem>>, %arg9: memref<1x128xf32, #tpu.memory_space<vmem>>, %arg10: memref<32x128xf32, #tpu.memory_space<vmem>>, %arg11: memref<32x128xf32, #tpu.memory_space<vmem>>, %arg12: memref<1x128xf32, #tpu.memory_space<vmem>>, %arg13: memref<1x32xf32, #tpu.memory_space<vmem>>, %arg14: memref<1x32xf32, #tpu.memory_space<vmem>>, %arg15: memref<32x16xf32, #tpu.memory_space<vmem>>, %arg16: memref<1x16xf32, #tpu.memory_space<vmem>>, %arg17: memref<8x8x16xf32, #tpu.memory_space<vmem>>) attributes {dimension_semantics = [#tpu.dimension_semantics<parallel>], iteration_bounds = array<i64: 1>, scalar_prefetch = 0 : i64, scratch_operands = 0 : i64, tpu.core_type = #tpu.core_type<tc>, window_params = [{transform_indices = @transform_0, window_bounds = array<i64: 8, 8, 16>}, {pipeline_mode = #tpu.pipeline_mode<synchronous>, transform_indices = @transform_1, window_bounds = array<i64: 16, 128>}, {pipeline_mode = #tpu.pipeline_mode<synchronous>, transform_indices = @transform_2, window_bounds = array<i64: 32, 128>}, {pipeline_mode = #tpu.pipeline_mode<synchronous>, transform_indices = @transform_3, window_bounds = array<i64: 1, 128>}, {pipeline_mode = #tpu.pipeline_mode<synchronous>, transform_indices = @transform_4, window_bounds = array<i64: 32, 128>}, {pipeline_mode = #tpu.pipeline_mode<synchronous>, transform_indices = @transform_5, window_bounds = array<i64: 32, 128>}, {pipeline_mode = #tpu.pipeline_mode<synchronous>, transform_indices = @transform_6, window_bounds = array<i64: 1, 128>}, {pipeline_mode = #tpu.pipeline_mode<synchronous>, transform_indices = @transform_7, window_bounds = array<i64: 32, 128>}, {pipeline_mode = #tpu.pipeline_mode<synchronous>, transform_indices = @transform_8, window_bounds = array<i64: 1, 128>}, {pipeline_mode = #tpu.pipeline_mode<synchronous>, transform_indices = @transform_9, window_bounds = array<i64: 32, 128>}, {pipeline_mode = #tpu.pipeline_mode<synchronous>, transform_indices = @transform_10, window_bounds = array<i64: 32, 128>}, {pipeline_mode = #tpu.pipeline_mode<synchronous>, transform_indices = @transform_11, window_bounds = array<i64: 1, 128>}, {pipeline_mode = #tpu.pipeline_mode<synchronous>, transform_indices = @transform_12, window_bounds = array<i64: 1, 32>}, {pipeline_mode = #tpu.pipeline_mode<synchronous>, transform_indices = @transform_13, window_bounds = array<i64: 1, 32>}, {pipeline_mode = #tpu.pipeline_mode<synchronous>, transform_indices = @transform_14, window_bounds = array<i64: 32, 16>}, {pipeline_mode = #tpu.pipeline_mode<synchronous>, transform_indices = @transform_15, window_bounds = array<i64: 1, 16>}, {transform_indices = @transform_16, window_bounds = array<i64: 8, 8, 16>}]} {
    %cst = arith.constant 0.000000e+00 : f32
    %0 = vector.broadcast %cst : f32 to vector<8x32xf32>
    %c0 = arith.constant 0 : index
    %c0_0 = arith.constant 0 : index
    %c0_1 = arith.constant 0 : index
    %1 = vector.load %arg1[%c0, %c0_0, %c0_1] : memref<8x8x16xf32, #tpu.memory_space<vmem>>, vector<8x8x16xf32>
    %2 = vector.shape_cast %1 : vector<8x8x16xf32> to vector<64x16xf32>
    %c0_2 = arith.constant 0 : index
    %c0_3 = arith.constant 0 : index
    %3 = vector.load %arg2[%c0_2, %c0_3] : memref<16x128xf32, #tpu.memory_space<vmem>>, vector<16x128xf32>
    %cst_4 = arith.constant dense<0.000000e+00> : vector<64x128xf32>
    %4 = tpu.matmul %2, %3, %cst_4 {dimension_numbers = #tpu.dot_dimension_numbers<[1], [0], [0], [1], [0, 0, 1, 1], [], []>} : vector<64x16xf32>, vector<16x128xf32>, vector<64x128xf32> -> vector<64x128xf32>
    %c0_5 = arith.constant 0 : index
    %c0_6 = arith.constant 0 : index
    %5 = vector.load %arg4[%c0_5, %c0_6] : memref<1x128xf32, #tpu.memory_space<vmem>>, vector<1x128xf32>
    %6 = vector.broadcast %5 : vector<1x128xf32> to vector<64x128xf32>
    %7 = arith.addf %4, %6 : vector<64x128xf32>
    %c0_7 = arith.constant 0 : index
    %c0_8 = arith.constant 0 : index
    %8 = vector.load %arg3[%c0_7, %c0_8] : memref<32x128xf32, #tpu.memory_space<vmem>>, vector<32x128xf32>
    %9 = vector.extract_strided_slice %7 {offsets = [0, 0], sizes = [8, 128], strides = [1, 1]} : vector<64x128xf32> to vector<8x128xf32>
    %cst_9 = arith.constant dense<0.000000e+00> : vector<8x128xf32>
    %10 = tpu.matmul %0, %8, %cst_9 {dimension_numbers = #tpu.dot_dimension_numbers<[1], [0], [0], [1], [0, 0, 1, 1], [], []>} : vector<8x32xf32>, vector<32x128xf32>, vector<8x128xf32> -> vector<8x128xf32>
    %11 = arith.addf %9, %10 : vector<8x128xf32>
    %12 = arith.negf %11 : vector<8x128xf32>
    %13 = math.exp %12 : vector<8x128xf32>
    %cst_10 = arith.constant 1.000000e+00 : f32
    %14 = vector.broadcast %cst_10 : f32 to vector<8x128xf32>
    %15 = arith.addf %14, %13 : vector<8x128xf32>
    %16 = arith.divf %14, %15 : vector<8x128xf32>
    %17 = vector.extract_strided_slice %16 {offsets = [0, 0], sizes = [8, 32], strides = [1, 1]} : vector<8x128xf32> to vector<8x32xf32>
    %18 = vector.extract_strided_slice %16 {offsets = [0, 32], sizes = [8, 32], strides = [1, 1]} : vector<8x128xf32> to vector<8x32xf32>
    %19 = vector.extract_strided_slice %16 {offsets = [0, 64], sizes = [8, 32], strides = [1, 1]} : vector<8x128xf32> to vector<8x32xf32>
    %cst_11 = arith.constant 2.000000e+00 : f32
    %20 = vector.broadcast %cst_11 : f32 to vector<8x32xf32>
    %21 = arith.mulf %20, %19 : vector<8x32xf32>
    %cst_12 = arith.constant 1.000000e+00 : f32
    %22 = vector.broadcast %cst_12 : f32 to vector<8x32xf32>
    %23 = arith.subf %21, %22 : vector<8x32xf32>
    %24 = vector.extract_strided_slice %16 {offsets = [0, 96], sizes = [8, 32], strides = [1, 1]} : vector<8x128xf32> to vector<8x32xf32>
    %25 = arith.mulf %18, %0 : vector<8x32xf32>
    %26 = arith.mulf %17, %23 : vector<8x32xf32>
    %27 = arith.addf %25, %26 : vector<8x32xf32>
    %28 = math.tanh %27 : vector<8x32xf32>
    %29 = arith.mulf %24, %28 : vector<8x32xf32>
    %30 = vector.extract_strided_slice %7 {offsets = [8, 0], sizes = [8, 128], strides = [1, 1]} : vector<64x128xf32> to vector<8x128xf32>
    %cst_13 = arith.constant dense<0.000000e+00> : vector<8x128xf32>
    %31 = tpu.matmul %29, %8, %cst_13 {dimension_numbers = #tpu.dot_dimension_numbers<[1], [0], [0], [1], [0, 0, 1, 1], [], []>} : vector<8x32xf32>, vector<32x128xf32>, vector<8x128xf32> -> vector<8x128xf32>
    %32 = arith.addf %30, %31 : vector<8x128xf32>
    %33 = arith.negf %32 : vector<8x128xf32>
    %34 = math.exp %33 : vector<8x128xf32>
    %cst_14 = arith.constant 1.000000e+00 : f32
    %35 = vector.broadcast %cst_14 : f32 to vector<8x128xf32>
    %36 = arith.addf %35, %34 : vector<8x128xf32>
    %37 = arith.divf %35, %36 : vector<8x128xf32>
    %38 = vector.extract_strided_slice %37 {offsets = [0, 0], sizes = [8, 32], strides = [1, 1]} : vector<8x128xf32> to vector<8x32xf32>
    %39 = vector.extract_strided_slice %37 {offsets = [0, 32], sizes = [8, 32], strides = [1, 1]} : vector<8x128xf32> to vector<8x32xf32>
    %40 = vector.extract_strided_slice %37 {offsets = [0, 64], sizes = [8, 32], strides = [1, 1]} : vector<8x128xf32> to vector<8x32xf32>
    %cst_15 = arith.constant 2.000000e+00 : f32
    %41 = vector.broadcast %cst_15 : f32 to vector<8x32xf32>
    %42 = arith.mulf %41, %40 : vector<8x32xf32>
    %cst_16 = arith.constant 1.000000e+00 : f32
    %43 = vector.broadcast %cst_16 : f32 to vector<8x32xf32>
    %44 = arith.subf %42, %43 : vector<8x32xf32>
    %45 = vector.extract_strided_slice %37 {offsets = [0, 96], sizes = [8, 32], strides = [1, 1]} : vector<8x128xf32> to vector<8x32xf32>
    %46 = arith.mulf %39, %27 : vector<8x32xf32>
    %47 = arith.mulf %38, %44 : vector<8x32xf32>
    %48 = arith.addf %46, %47 : vector<8x32xf32>
    %49 = math.tanh %48 : vector<8x32xf32>
    %50 = arith.mulf %45, %49 : vector<8x32xf32>
    %51 = vector.extract_strided_slice %7 {offsets = [16, 0], sizes = [8, 128], strides = [1, 1]} : vector<64x128xf32> to vector<8x128xf32>
    %cst_17 = arith.constant dense<0.000000e+00> : vector<8x128xf32>
    %52 = tpu.matmul %50, %8, %cst_17 {dimension_numbers = #tpu.dot_dimension_numbers<[1], [0], [0], [1], [0, 0, 1, 1], [], []>} : vector<8x32xf32>, vector<32x128xf32>, vector<8x128xf32> -> vector<8x128xf32>
    %53 = arith.addf %51, %52 : vector<8x128xf32>
    %54 = arith.negf %53 : vector<8x128xf32>
    %55 = math.exp %54 : vector<8x128xf32>
    %cst_18 = arith.constant 1.000000e+00 : f32
    %56 = vector.broadcast %cst_18 : f32 to vector<8x128xf32>
    %57 = arith.addf %56, %55 : vector<8x128xf32>
    %58 = arith.divf %56, %57 : vector<8x128xf32>
    %59 = vector.extract_strided_slice %58 {offsets = [0, 0], sizes = [8, 32], strides = [1, 1]} : vector<8x128xf32> to vector<8x32xf32>
    %60 = vector.extract_strided_slice %58 {offsets = [0, 32], sizes = [8, 32], strides = [1, 1]} : vector<8x128xf32> to vector<8x32xf32>
    %61 = vector.extract_strided_slice %58 {offsets = [0, 64], sizes = [8, 32], strides = [1, 1]} : vector<8x128xf32> to vector<8x32xf32>
    %cst_19 = arith.constant 2.000000e+00 : f32
    %62 = vector.broadcast %cst_19 : f32 to vector<8x32xf32>
    %63 = arith.mulf %62, %61 : vector<8x32xf32>
    %cst_20 = arith.constant 1.000000e+00 : f32
    %64 = vector.broadcast %cst_20 : f32 to vector<8x32xf32>
    %65 = arith.subf %63, %64 : vector<8x32xf32>
    %66 = vector.extract_strided_slice %58 {offsets = [0, 96], sizes = [8, 32], strides = [1, 1]} : vector<8x128xf32> to vector<8x32xf32>
    %67 = arith.mulf %60, %48 : vector<8x32xf32>
    %68 = arith.mulf %59, %65 : vector<8x32xf32>
    %69 = arith.addf %67, %68 : vector<8x32xf32>
    %70 = math.tanh %69 : vector<8x32xf32>
    %71 = arith.mulf %66, %70 : vector<8x32xf32>
    %72 = vector.extract_strided_slice %7 {offsets = [24, 0], sizes = [8, 128], strides = [1, 1]} : vector<64x128xf32> to vector<8x128xf32>
    %cst_21 = arith.constant dense<0.000000e+00> : vector<8x128xf32>
    %73 = tpu.matmul %71, %8, %cst_21 {dimension_numbers = #tpu.dot_dimension_numbers<[1], [0], [0], [1], [0, 0, 1, 1], [], []>} : vector<8x32xf32>, vector<32x128xf32>, vector<8x128xf32> -> vector<8x128xf32>
    %74 = arith.addf %72, %73 : vector<8x128xf32>
    %75 = arith.negf %74 : vector<8x128xf32>
    %76 = math.exp %75 : vector<8x128xf32>
    %cst_22 = arith.constant 1.000000e+00 : f32
    %77 = vector.broadcast %cst_22 : f32 to vector<8x128xf32>
    %78 = arith.addf %77, %76 : vector<8x128xf32>
    %79 = arith.divf %77, %78 : vector<8x128xf32>
    %80 = vector.extract_strided_slice %79 {offsets = [0, 0], sizes = [8, 32], strides = [1, 1]} : vector<8x128xf32> to vector<8x32xf32>
    %81 = vector.extract_strided_slice %79 {offsets = [0, 32], sizes = [8, 32], strides = [1, 1]} : vector<8x128xf32> to vector<8x32xf32>
    %82 = vector.extract_strided_slice %79 {offsets = [0, 64], sizes = [8, 32], strides = [1, 1]} : vector<8x128xf32> to vector<8x32xf32>
    %cst_23 = arith.constant 2.000000e+00 : f32
    %83 = vector.broadcast %cst_23 : f32 to vector<8x32xf32>
    %84 = arith.mulf %83, %82 : vector<8x32xf32>
    %cst_24 = arith.constant 1.000000e+00 : f32
    %85 = vector.broadcast %cst_24 : f32 to vector<8x32xf32>
    %86 = arith.subf %84, %85 : vector<8x32xf32>
    %87 = vector.extract_strided_slice %79 {offsets = [0, 96], sizes = [8, 32], strides = [1, 1]} : vector<8x128xf32> to vector<8x32xf32>
    %88 = arith.mulf %81, %69 : vector<8x32xf32>
    %89 = arith.mulf %80, %86 : vector<8x32xf32>
    %90 = arith.addf %88, %89 : vector<8x32xf32>
    %91 = math.tanh %90 : vector<8x32xf32>
    %92 = arith.mulf %87, %91 : vector<8x32xf32>
    %93 = vector.extract_strided_slice %7 {offsets = [32, 0], sizes = [8, 128], strides = [1, 1]} : vector<64x128xf32> to vector<8x128xf32>
    %cst_25 = arith.constant dense<0.000000e+00> : vector<8x128xf32>
    %94 = tpu.matmul %92, %8, %cst_25 {dimension_numbers = #tpu.dot_dimension_numbers<[1], [0], [0], [1], [0, 0, 1, 1], [], []>} : vector<8x32xf32>, vector<32x128xf32>, vector<8x128xf32> -> vector<8x128xf32>
    %95 = arith.addf %93, %94 : vector<8x128xf32>
    %96 = arith.negf %95 : vector<8x128xf32>
    %97 = math.exp %96 : vector<8x128xf32>
    %cst_26 = arith.constant 1.000000e+00 : f32
    %98 = vector.broadcast %cst_26 : f32 to vector<8x128xf32>
    %99 = arith.addf %98, %97 : vector<8x128xf32>
    %100 = arith.divf %98, %99 : vector<8x128xf32>
    %101 = vector.extract_strided_slice %100 {offsets = [0, 0], sizes = [8, 32], strides = [1, 1]} : vector<8x128xf32> to vector<8x32xf32>
    %102 = vector.extract_strided_slice %100 {offsets = [0, 32], sizes = [8, 32], strides = [1, 1]} : vector<8x128xf32> to vector<8x32xf32>
    %103 = vector.extract_strided_slice %100 {offsets = [0, 64], sizes = [8, 32], strides = [1, 1]} : vector<8x128xf32> to vector<8x32xf32>
    %cst_27 = arith.constant 2.000000e+00 : f32
    %104 = vector.broadcast %cst_27 : f32 to vector<8x32xf32>
    %105 = arith.mulf %104, %103 : vector<8x32xf32>
    %cst_28 = arith.constant 1.000000e+00 : f32
    %106 = vector.broadcast %cst_28 : f32 to vector<8x32xf32>
    %107 = arith.subf %105, %106 : vector<8x32xf32>
    %108 = vector.extract_strided_slice %100 {offsets = [0, 96], sizes = [8, 32], strides = [1, 1]} : vector<8x128xf32> to vector<8x32xf32>
    %109 = arith.mulf %102, %90 : vector<8x32xf32>
    %110 = arith.mulf %101, %107 : vector<8x32xf32>
    %111 = arith.addf %109, %110 : vector<8x32xf32>
    %112 = math.tanh %111 : vector<8x32xf32>
    %113 = arith.mulf %108, %112 : vector<8x32xf32>
    %114 = vector.extract_strided_slice %7 {offsets = [40, 0], sizes = [8, 128], strides = [1, 1]} : vector<64x128xf32> to vector<8x128xf32>
    %cst_29 = arith.constant dense<0.000000e+00> : vector<8x128xf32>
    %115 = tpu.matmul %113, %8, %cst_29 {dimension_numbers = #tpu.dot_dimension_numbers<[1], [0], [0], [1], [0, 0, 1, 1], [], []>} : vector<8x32xf32>, vector<32x128xf32>, vector<8x128xf32> -> vector<8x128xf32>
    %116 = arith.addf %114, %115 : vector<8x128xf32>
    %117 = arith.negf %116 : vector<8x128xf32>
    %118 = math.exp %117 : vector<8x128xf32>
    %cst_30 = arith.constant 1.000000e+00 : f32
    %119 = vector.broadcast %cst_30 : f32 to vector<8x128xf32>
    %120 = arith.addf %119, %118 : vector<8x128xf32>
    %121 = arith.divf %119, %120 : vector<8x128xf32>
    %122 = vector.extract_strided_slice %121 {offsets = [0, 0], sizes = [8, 32], strides = [1, 1]} : vector<8x128xf32> to vector<8x32xf32>
    %123 = vector.extract_strided_slice %121 {offsets = [0, 32], sizes = [8, 32], strides = [1, 1]} : vector<8x128xf32> to vector<8x32xf32>
    %124 = vector.extract_strided_slice %121 {offsets = [0, 64], sizes = [8, 32], strides = [1, 1]} : vector<8x128xf32> to vector<8x32xf32>
    %cst_31 = arith.constant 2.000000e+00 : f32
    %125 = vector.broadcast %cst_31 : f32 to vector<8x32xf32>
    %126 = arith.mulf %125, %124 : vector<8x32xf32>
    %cst_32 = arith.constant 1.000000e+00 : f32
    %127 = vector.broadcast %cst_32 : f32 to vector<8x32xf32>
    %128 = arith.subf %126, %127 : vector<8x32xf32>
    %129 = vector.extract_strided_slice %121 {offsets = [0, 96], sizes = [8, 32], strides = [1, 1]} : vector<8x128xf32> to vector<8x32xf32>
    %130 = arith.mulf %123, %111 : vector<8x32xf32>
    %131 = arith.mulf %122, %128 : vector<8x32xf32>
    %132 = arith.addf %130, %131 : vector<8x32xf32>
    %133 = math.tanh %132 : vector<8x32xf32>
    %134 = arith.mulf %129, %133 : vector<8x32xf32>
    %135 = vector.extract_strided_slice %7 {offsets = [48, 0], sizes = [8, 128], strides = [1, 1]} : vector<64x128xf32> to vector<8x128xf32>
    %cst_33 = arith.constant dense<0.000000e+00> : vector<8x128xf32>
    %136 = tpu.matmul %134, %8, %cst_33 {dimension_numbers = #tpu.dot_dimension_numbers<[1], [0], [0], [1], [0, 0, 1, 1], [], []>} : vector<8x32xf32>, vector<32x128xf32>, vector<8x128xf32> -> vector<8x128xf32>
    %137 = arith.addf %135, %136 : vector<8x128xf32>
    %138 = arith.negf %137 : vector<8x128xf32>
    %139 = math.exp %138 : vector<8x128xf32>
    %cst_34 = arith.constant 1.000000e+00 : f32
    %140 = vector.broadcast %cst_34 : f32 to vector<8x128xf32>
    %141 = arith.addf %140, %139 : vector<8x128xf32>
    %142 = arith.divf %140, %141 : vector<8x128xf32>
    %143 = vector.extract_strided_slice %142 {offsets = [0, 0], sizes = [8, 32], strides = [1, 1]} : vector<8x128xf32> to vector<8x32xf32>
    %144 = vector.extract_strided_slice %142 {offsets = [0, 32], sizes = [8, 32], strides = [1, 1]} : vector<8x128xf32> to vector<8x32xf32>
    %145 = vector.extract_strided_slice %142 {offsets = [0, 64], sizes = [8, 32], strides = [1, 1]} : vector<8x128xf32> to vector<8x32xf32>
    %cst_35 = arith.constant 2.000000e+00 : f32
    %146 = vector.broadcast %cst_35 : f32 to vector<8x32xf32>
    %147 = arith.mulf %146, %145 : vector<8x32xf32>
    %cst_36 = arith.constant 1.000000e+00 : f32
    %148 = vector.broadcast %cst_36 : f32 to vector<8x32xf32>
    %149 = arith.subf %147, %148 : vector<8x32xf32>
    %150 = vector.extract_strided_slice %142 {offsets = [0, 96], sizes = [8, 32], strides = [1, 1]} : vector<8x128xf32> to vector<8x32xf32>
    %151 = arith.mulf %144, %132 : vector<8x32xf32>
    %152 = arith.mulf %143, %149 : vector<8x32xf32>
    %153 = arith.addf %151, %152 : vector<8x32xf32>
    %154 = math.tanh %153 : vector<8x32xf32>
    %155 = arith.mulf %150, %154 : vector<8x32xf32>
    %156 = vector.extract_strided_slice %7 {offsets = [56, 0], sizes = [8, 128], strides = [1, 1]} : vector<64x128xf32> to vector<8x128xf32>
    %cst_37 = arith.constant dense<0.000000e+00> : vector<8x128xf32>
    %157 = tpu.matmul %155, %8, %cst_37 {dimension_numbers = #tpu.dot_dimension_numbers<[1], [0], [0], [1], [0, 0, 1, 1], [], []>} : vector<8x32xf32>, vector<32x128xf32>, vector<8x128xf32> -> vector<8x128xf32>
    %158 = arith.addf %156, %157 : vector<8x128xf32>
    %159 = arith.negf %158 : vector<8x128xf32>
    %160 = math.exp %159 : vector<8x128xf32>
    %cst_38 = arith.constant 1.000000e+00 : f32
    %161 = vector.broadcast %cst_38 : f32 to vector<8x128xf32>
    %162 = arith.addf %161, %160 : vector<8x128xf32>
    %163 = arith.divf %161, %162 : vector<8x128xf32>
    %164 = vector.extract_strided_slice %163 {offsets = [0, 0], sizes = [8, 32], strides = [1, 1]} : vector<8x128xf32> to vector<8x32xf32>
    %165 = vector.extract_strided_slice %163 {offsets = [0, 32], sizes = [8, 32], strides = [1, 1]} : vector<8x128xf32> to vector<8x32xf32>
    %166 = vector.extract_strided_slice %163 {offsets = [0, 64], sizes = [8, 32], strides = [1, 1]} : vector<8x128xf32> to vector<8x32xf32>
    %cst_39 = arith.constant 2.000000e+00 : f32
    %167 = vector.broadcast %cst_39 : f32 to vector<8x32xf32>
    %168 = arith.mulf %167, %166 : vector<8x32xf32>
    %cst_40 = arith.constant 1.000000e+00 : f32
    %169 = vector.broadcast %cst_40 : f32 to vector<8x32xf32>
    %170 = arith.subf %168, %169 : vector<8x32xf32>
    %171 = vector.extract_strided_slice %163 {offsets = [0, 96], sizes = [8, 32], strides = [1, 1]} : vector<8x128xf32> to vector<8x32xf32>
    %172 = arith.mulf %165, %153 : vector<8x32xf32>
    %173 = arith.mulf %164, %170 : vector<8x32xf32>
    %174 = arith.addf %172, %173 : vector<8x32xf32>
    %175 = math.tanh %174 : vector<8x32xf32>
    %176 = arith.mulf %171, %175 : vector<8x32xf32>
    %177 = tpu.concatenate %29, %50, %71, %92, %113, %134, %155, %176 in 0 : vector<8x32xf32>, vector<8x32xf32>, vector<8x32xf32>, vector<8x32xf32>, vector<8x32xf32>, vector<8x32xf32>, vector<8x32xf32>, vector<8x32xf32> -> vector<64x32xf32>
    %c0_41 = arith.constant 0 : index
    %c0_42 = arith.constant 0 : index
    %178 = vector.load %arg5[%c0_41, %c0_42] : memref<32x128xf32, #tpu.memory_space<vmem>>, vector<32x128xf32>
    %cst_43 = arith.constant dense<0.000000e+00> : vector<64x128xf32>
    %179 = tpu.matmul %177, %178, %cst_43 {dimension_numbers = #tpu.dot_dimension_numbers<[1], [0], [0], [1], [0, 0, 1, 1], [], []>} : vector<64x32xf32>, vector<32x128xf32>, vector<64x128xf32> -> vector<64x128xf32>
    %c0_44 = arith.constant 0 : index
    %c0_45 = arith.constant 0 : index
    %180 = vector.load %arg7[%c0_44, %c0_45] : memref<1x128xf32, #tpu.memory_space<vmem>>, vector<1x128xf32>
    %181 = vector.broadcast %180 : vector<1x128xf32> to vector<64x128xf32>
    %182 = arith.addf %179, %181 : vector<64x128xf32>
    %c0_46 = arith.constant 0 : index
    %c0_47 = arith.constant 0 : index
    %183 = vector.load %arg6[%c0_46, %c0_47] : memref<32x128xf32, #tpu.memory_space<vmem>>, vector<32x128xf32>
    %184 = vector.extract_strided_slice %182 {offsets = [0, 0], sizes = [8, 128], strides = [1, 1]} : vector<64x128xf32> to vector<8x128xf32>
    %cst_48 = arith.constant dense<0.000000e+00> : vector<8x128xf32>
    %185 = tpu.matmul %0, %183, %cst_48 {dimension_numbers = #tpu.dot_dimension_numbers<[1], [0], [0], [1], [0, 0, 1, 1], [], []>} : vector<8x32xf32>, vector<32x128xf32>, vector<8x128xf32> -> vector<8x128xf32>
    %186 = arith.addf %184, %185 : vector<8x128xf32>
    %187 = arith.negf %186 : vector<8x128xf32>
    %188 = math.exp %187 : vector<8x128xf32>
    %cst_49 = arith.constant 1.000000e+00 : f32
    %189 = vector.broadcast %cst_49 : f32 to vector<8x128xf32>
    %190 = arith.addf %189, %188 : vector<8x128xf32>
    %191 = arith.divf %189, %190 : vector<8x128xf32>
    %192 = vector.extract_strided_slice %191 {offsets = [0, 0], sizes = [8, 32], strides = [1, 1]} : vector<8x128xf32> to vector<8x32xf32>
    %193 = vector.extract_strided_slice %191 {offsets = [0, 32], sizes = [8, 32], strides = [1, 1]} : vector<8x128xf32> to vector<8x32xf32>
    %194 = vector.extract_strided_slice %191 {offsets = [0, 64], sizes = [8, 32], strides = [1, 1]} : vector<8x128xf32> to vector<8x32xf32>
    %cst_50 = arith.constant 2.000000e+00 : f32
    %195 = vector.broadcast %cst_50 : f32 to vector<8x32xf32>
    %196 = arith.mulf %195, %194 : vector<8x32xf32>
    %cst_51 = arith.constant 1.000000e+00 : f32
    %197 = vector.broadcast %cst_51 : f32 to vector<8x32xf32>
    %198 = arith.subf %196, %197 : vector<8x32xf32>
    %199 = vector.extract_strided_slice %191 {offsets = [0, 96], sizes = [8, 32], strides = [1, 1]} : vector<8x128xf32> to vector<8x32xf32>
    %200 = arith.mulf %193, %0 : vector<8x32xf32>
    %201 = arith.mulf %192, %198 : vector<8x32xf32>
    %202 = arith.addf %200, %201 : vector<8x32xf32>
    %203 = math.tanh %202 : vector<8x32xf32>
    %204 = arith.mulf %199, %203 : vector<8x32xf32>
    %205 = vector.extract_strided_slice %182 {offsets = [8, 0], sizes = [8, 128], strides = [1, 1]} : vector<64x128xf32> to vector<8x128xf32>
    %cst_52 = arith.constant dense<0.000000e+00> : vector<8x128xf32>
    %206 = tpu.matmul %204, %183, %cst_52 {dimension_numbers = #tpu.dot_dimension_numbers<[1], [0], [0], [1], [0, 0, 1, 1], [], []>} : vector<8x32xf32>, vector<32x128xf32>, vector<8x128xf32> -> vector<8x128xf32>
    %207 = arith.addf %205, %206 : vector<8x128xf32>
    %208 = arith.negf %207 : vector<8x128xf32>
    %209 = math.exp %208 : vector<8x128xf32>
    %cst_53 = arith.constant 1.000000e+00 : f32
    %210 = vector.broadcast %cst_53 : f32 to vector<8x128xf32>
    %211 = arith.addf %210, %209 : vector<8x128xf32>
    %212 = arith.divf %210, %211 : vector<8x128xf32>
    %213 = vector.extract_strided_slice %212 {offsets = [0, 0], sizes = [8, 32], strides = [1, 1]} : vector<8x128xf32> to vector<8x32xf32>
    %214 = vector.extract_strided_slice %212 {offsets = [0, 32], sizes = [8, 32], strides = [1, 1]} : vector<8x128xf32> to vector<8x32xf32>
    %215 = vector.extract_strided_slice %212 {offsets = [0, 64], sizes = [8, 32], strides = [1, 1]} : vector<8x128xf32> to vector<8x32xf32>
    %cst_54 = arith.constant 2.000000e+00 : f32
    %216 = vector.broadcast %cst_54 : f32 to vector<8x32xf32>
    %217 = arith.mulf %216, %215 : vector<8x32xf32>
    %cst_55 = arith.constant 1.000000e+00 : f32
    %218 = vector.broadcast %cst_55 : f32 to vector<8x32xf32>
    %219 = arith.subf %217, %218 : vector<8x32xf32>
    %220 = vector.extract_strided_slice %212 {offsets = [0, 96], sizes = [8, 32], strides = [1, 1]} : vector<8x128xf32> to vector<8x32xf32>
    %221 = arith.mulf %214, %202 : vector<8x32xf32>
    %222 = arith.mulf %213, %219 : vector<8x32xf32>
    %223 = arith.addf %221, %222 : vector<8x32xf32>
    %224 = math.tanh %223 : vector<8x32xf32>
    %225 = arith.mulf %220, %224 : vector<8x32xf32>
    %226 = vector.extract_strided_slice %182 {offsets = [16, 0], sizes = [8, 128], strides = [1, 1]} : vector<64x128xf32> to vector<8x128xf32>
    %cst_56 = arith.constant dense<0.000000e+00> : vector<8x128xf32>
    %227 = tpu.matmul %225, %183, %cst_56 {dimension_numbers = #tpu.dot_dimension_numbers<[1], [0], [0], [1], [0, 0, 1, 1], [], []>} : vector<8x32xf32>, vector<32x128xf32>, vector<8x128xf32> -> vector<8x128xf32>
    %228 = arith.addf %226, %227 : vector<8x128xf32>
    %229 = arith.negf %228 : vector<8x128xf32>
    %230 = math.exp %229 : vector<8x128xf32>
    %cst_57 = arith.constant 1.000000e+00 : f32
    %231 = vector.broadcast %cst_57 : f32 to vector<8x128xf32>
    %232 = arith.addf %231, %230 : vector<8x128xf32>
    %233 = arith.divf %231, %232 : vector<8x128xf32>
    %234 = vector.extract_strided_slice %233 {offsets = [0, 0], sizes = [8, 32], strides = [1, 1]} : vector<8x128xf32> to vector<8x32xf32>
    %235 = vector.extract_strided_slice %233 {offsets = [0, 32], sizes = [8, 32], strides = [1, 1]} : vector<8x128xf32> to vector<8x32xf32>
    %236 = vector.extract_strided_slice %233 {offsets = [0, 64], sizes = [8, 32], strides = [1, 1]} : vector<8x128xf32> to vector<8x32xf32>
    %cst_58 = arith.constant 2.000000e+00 : f32
    %237 = vector.broadcast %cst_58 : f32 to vector<8x32xf32>
    %238 = arith.mulf %237, %236 : vector<8x32xf32>
    %cst_59 = arith.constant 1.000000e+00 : f32
    %239 = vector.broadcast %cst_59 : f32 to vector<8x32xf32>
    %240 = arith.subf %238, %239 : vector<8x32xf32>
    %241 = vector.extract_strided_slice %233 {offsets = [0, 96], sizes = [8, 32], strides = [1, 1]} : vector<8x128xf32> to vector<8x32xf32>
    %242 = arith.mulf %235, %223 : vector<8x32xf32>
    %243 = arith.mulf %234, %240 : vector<8x32xf32>
    %244 = arith.addf %242, %243 : vector<8x32xf32>
    %245 = math.tanh %244 : vector<8x32xf32>
    %246 = arith.mulf %241, %245 : vector<8x32xf32>
    %247 = vector.extract_strided_slice %182 {offsets = [24, 0], sizes = [8, 128], strides = [1, 1]} : vector<64x128xf32> to vector<8x128xf32>
    %cst_60 = arith.constant dense<0.000000e+00> : vector<8x128xf32>
    %248 = tpu.matmul %246, %183, %cst_60 {dimension_numbers = #tpu.dot_dimension_numbers<[1], [0], [0], [1], [0, 0, 1, 1], [], []>} : vector<8x32xf32>, vector<32x128xf32>, vector<8x128xf32> -> vector<8x128xf32>
    %249 = arith.addf %247, %248 : vector<8x128xf32>
    %250 = arith.negf %249 : vector<8x128xf32>
    %251 = math.exp %250 : vector<8x128xf32>
    %cst_61 = arith.constant 1.000000e+00 : f32
    %252 = vector.broadcast %cst_61 : f32 to vector<8x128xf32>
    %253 = arith.addf %252, %251 : vector<8x128xf32>
    %254 = arith.divf %252, %253 : vector<8x128xf32>
    %255 = vector.extract_strided_slice %254 {offsets = [0, 0], sizes = [8, 32], strides = [1, 1]} : vector<8x128xf32> to vector<8x32xf32>
    %256 = vector.extract_strided_slice %254 {offsets = [0, 32], sizes = [8, 32], strides = [1, 1]} : vector<8x128xf32> to vector<8x32xf32>
    %257 = vector.extract_strided_slice %254 {offsets = [0, 64], sizes = [8, 32], strides = [1, 1]} : vector<8x128xf32> to vector<8x32xf32>
    %cst_62 = arith.constant 2.000000e+00 : f32
    %258 = vector.broadcast %cst_62 : f32 to vector<8x32xf32>
    %259 = arith.mulf %258, %257 : vector<8x32xf32>
    %cst_63 = arith.constant 1.000000e+00 : f32
    %260 = vector.broadcast %cst_63 : f32 to vector<8x32xf32>
    %261 = arith.subf %259, %260 : vector<8x32xf32>
    %262 = vector.extract_strided_slice %254 {offsets = [0, 96], sizes = [8, 32], strides = [1, 1]} : vector<8x128xf32> to vector<8x32xf32>
    %263 = arith.mulf %256, %244 : vector<8x32xf32>
    %264 = arith.mulf %255, %261 : vector<8x32xf32>
    %265 = arith.addf %263, %264 : vector<8x32xf32>
    %266 = math.tanh %265 : vector<8x32xf32>
    %267 = arith.mulf %262, %266 : vector<8x32xf32>
    %268 = vector.extract_strided_slice %182 {offsets = [32, 0], sizes = [8, 128], strides = [1, 1]} : vector<64x128xf32> to vector<8x128xf32>
    %cst_64 = arith.constant dense<0.000000e+00> : vector<8x128xf32>
    %269 = tpu.matmul %267, %183, %cst_64 {dimension_numbers = #tpu.dot_dimension_numbers<[1], [0], [0], [1], [0, 0, 1, 1], [], []>} : vector<8x32xf32>, vector<32x128xf32>, vector<8x128xf32> -> vector<8x128xf32>
    %270 = arith.addf %268, %269 : vector<8x128xf32>
    %271 = arith.negf %270 : vector<8x128xf32>
    %272 = math.exp %271 : vector<8x128xf32>
    %cst_65 = arith.constant 1.000000e+00 : f32
    %273 = vector.broadcast %cst_65 : f32 to vector<8x128xf32>
    %274 = arith.addf %273, %272 : vector<8x128xf32>
    %275 = arith.divf %273, %274 : vector<8x128xf32>
    %276 = vector.extract_strided_slice %275 {offsets = [0, 0], sizes = [8, 32], strides = [1, 1]} : vector<8x128xf32> to vector<8x32xf32>
    %277 = vector.extract_strided_slice %275 {offsets = [0, 32], sizes = [8, 32], strides = [1, 1]} : vector<8x128xf32> to vector<8x32xf32>
    %278 = vector.extract_strided_slice %275 {offsets = [0, 64], sizes = [8, 32], strides = [1, 1]} : vector<8x128xf32> to vector<8x32xf32>
    %cst_66 = arith.constant 2.000000e+00 : f32
    %279 = vector.broadcast %cst_66 : f32 to vector<8x32xf32>
    %280 = arith.mulf %279, %278 : vector<8x32xf32>
    %cst_67 = arith.constant 1.000000e+00 : f32
    %281 = vector.broadcast %cst_67 : f32 to vector<8x32xf32>
    %282 = arith.subf %280, %281 : vector<8x32xf32>
    %283 = vector.extract_strided_slice %275 {offsets = [0, 96], sizes = [8, 32], strides = [1, 1]} : vector<8x128xf32> to vector<8x32xf32>
    %284 = arith.mulf %277, %265 : vector<8x32xf32>
    %285 = arith.mulf %276, %282 : vector<8x32xf32>
    %286 = arith.addf %284, %285 : vector<8x32xf32>
    %287 = math.tanh %286 : vector<8x32xf32>
    %288 = arith.mulf %283, %287 : vector<8x32xf32>
    %289 = vector.extract_strided_slice %182 {offsets = [40, 0], sizes = [8, 128], strides = [1, 1]} : vector<64x128xf32> to vector<8x128xf32>
    %cst_68 = arith.constant dense<0.000000e+00> : vector<8x128xf32>
    %290 = tpu.matmul %288, %183, %cst_68 {dimension_numbers = #tpu.dot_dimension_numbers<[1], [0], [0], [1], [0, 0, 1, 1], [], []>} : vector<8x32xf32>, vector<32x128xf32>, vector<8x128xf32> -> vector<8x128xf32>
    %291 = arith.addf %289, %290 : vector<8x128xf32>
    %292 = arith.negf %291 : vector<8x128xf32>
    %293 = math.exp %292 : vector<8x128xf32>
    %cst_69 = arith.constant 1.000000e+00 : f32
    %294 = vector.broadcast %cst_69 : f32 to vector<8x128xf32>
    %295 = arith.addf %294, %293 : vector<8x128xf32>
    %296 = arith.divf %294, %295 : vector<8x128xf32>
    %297 = vector.extract_strided_slice %296 {offsets = [0, 0], sizes = [8, 32], strides = [1, 1]} : vector<8x128xf32> to vector<8x32xf32>
    %298 = vector.extract_strided_slice %296 {offsets = [0, 32], sizes = [8, 32], strides = [1, 1]} : vector<8x128xf32> to vector<8x32xf32>
    %299 = vector.extract_strided_slice %296 {offsets = [0, 64], sizes = [8, 32], strides = [1, 1]} : vector<8x128xf32> to vector<8x32xf32>
    %cst_70 = arith.constant 2.000000e+00 : f32
    %300 = vector.broadcast %cst_70 : f32 to vector<8x32xf32>
    %301 = arith.mulf %300, %299 : vector<8x32xf32>
    %cst_71 = arith.constant 1.000000e+00 : f32
    %302 = vector.broadcast %cst_71 : f32 to vector<8x32xf32>
    %303 = arith.subf %301, %302 : vector<8x32xf32>
    %304 = vector.extract_strided_slice %296 {offsets = [0, 96], sizes = [8, 32], strides = [1, 1]} : vector<8x128xf32> to vector<8x32xf32>
    %305 = arith.mulf %298, %286 : vector<8x32xf32>
    %306 = arith.mulf %297, %303 : vector<8x32xf32>
    %307 = arith.addf %305, %306 : vector<8x32xf32>
    %308 = math.tanh %307 : vector<8x32xf32>
    %309 = arith.mulf %304, %308 : vector<8x32xf32>
    %310 = vector.extract_strided_slice %182 {offsets = [48, 0], sizes = [8, 128], strides = [1, 1]} : vector<64x128xf32> to vector<8x128xf32>
    %cst_72 = arith.constant dense<0.000000e+00> : vector<8x128xf32>
    %311 = tpu.matmul %309, %183, %cst_72 {dimension_numbers = #tpu.dot_dimension_numbers<[1], [0], [0], [1], [0, 0, 1, 1], [], []>} : vector<8x32xf32>, vector<32x128xf32>, vector<8x128xf32> -> vector<8x128xf32>
    %312 = arith.addf %310, %311 : vector<8x128xf32>
    %313 = arith.negf %312 : vector<8x128xf32>
    %314 = math.exp %313 : vector<8x128xf32>
    %cst_73 = arith.constant 1.000000e+00 : f32
    %315 = vector.broadcast %cst_73 : f32 to vector<8x128xf32>
    %316 = arith.addf %315, %314 : vector<8x128xf32>
    %317 = arith.divf %315, %316 : vector<8x128xf32>
    %318 = vector.extract_strided_slice %317 {offsets = [0, 0], sizes = [8, 32], strides = [1, 1]} : vector<8x128xf32> to vector<8x32xf32>
    %319 = vector.extract_strided_slice %317 {offsets = [0, 32], sizes = [8, 32], strides = [1, 1]} : vector<8x128xf32> to vector<8x32xf32>
    %320 = vector.extract_strided_slice %317 {offsets = [0, 64], sizes = [8, 32], strides = [1, 1]} : vector<8x128xf32> to vector<8x32xf32>
    %cst_74 = arith.constant 2.000000e+00 : f32
    %321 = vector.broadcast %cst_74 : f32 to vector<8x32xf32>
    %322 = arith.mulf %321, %320 : vector<8x32xf32>
    %cst_75 = arith.constant 1.000000e+00 : f32
    %323 = vector.broadcast %cst_75 : f32 to vector<8x32xf32>
    %324 = arith.subf %322, %323 : vector<8x32xf32>
    %325 = vector.extract_strided_slice %317 {offsets = [0, 96], sizes = [8, 32], strides = [1, 1]} : vector<8x128xf32> to vector<8x32xf32>
    %326 = arith.mulf %319, %307 : vector<8x32xf32>
    %327 = arith.mulf %318, %324 : vector<8x32xf32>
    %328 = arith.addf %326, %327 : vector<8x32xf32>
    %329 = math.tanh %328 : vector<8x32xf32>
    %330 = arith.mulf %325, %329 : vector<8x32xf32>
    %331 = vector.extract_strided_slice %182 {offsets = [56, 0], sizes = [8, 128], strides = [1, 1]} : vector<64x128xf32> to vector<8x128xf32>
    %cst_76 = arith.constant dense<0.000000e+00> : vector<8x128xf32>
    %332 = tpu.matmul %330, %183, %cst_76 {dimension_numbers = #tpu.dot_dimension_numbers<[1], [0], [0], [1], [0, 0, 1, 1], [], []>} : vector<8x32xf32>, vector<32x128xf32>, vector<8x128xf32> -> vector<8x128xf32>
    %333 = arith.addf %331, %332 : vector<8x128xf32>
    %334 = arith.negf %333 : vector<8x128xf32>
    %335 = math.exp %334 : vector<8x128xf32>
    %cst_77 = arith.constant 1.000000e+00 : f32
    %336 = vector.broadcast %cst_77 : f32 to vector<8x128xf32>
    %337 = arith.addf %336, %335 : vector<8x128xf32>
    %338 = arith.divf %336, %337 : vector<8x128xf32>
    %339 = vector.extract_strided_slice %338 {offsets = [0, 0], sizes = [8, 32], strides = [1, 1]} : vector<8x128xf32> to vector<8x32xf32>
    %340 = vector.extract_strided_slice %338 {offsets = [0, 32], sizes = [8, 32], strides = [1, 1]} : vector<8x128xf32> to vector<8x32xf32>
    %341 = vector.extract_strided_slice %338 {offsets = [0, 64], sizes = [8, 32], strides = [1, 1]} : vector<8x128xf32> to vector<8x32xf32>
    %cst_78 = arith.constant 2.000000e+00 : f32
    %342 = vector.broadcast %cst_78 : f32 to vector<8x32xf32>
    %343 = arith.mulf %342, %341 : vector<8x32xf32>
    %cst_79 = arith.constant 1.000000e+00 : f32
    %344 = vector.broadcast %cst_79 : f32 to vector<8x32xf32>
    %345 = arith.subf %343, %344 : vector<8x32xf32>
    %346 = vector.extract_strided_slice %338 {offsets = [0, 96], sizes = [8, 32], strides = [1, 1]} : vector<8x128xf32> to vector<8x32xf32>
    %347 = arith.mulf %340, %328 : vector<8x32xf32>
    %348 = arith.mulf %339, %345 : vector<8x32xf32>
    %349 = arith.addf %347, %348 : vector<8x32xf32>
    %350 = math.tanh %349 : vector<8x32xf32>
    %351 = arith.mulf %346, %350 : vector<8x32xf32>
    %c0_80 = arith.constant 0 : index
    %c0_81 = arith.constant 0 : index
    %352 = vector.load %arg8[%c0_80, %c0_81] : memref<32x128xf32, #tpu.memory_space<vmem>>, vector<32x128xf32>
    %c0_82 = arith.constant 0 : index
    %c0_83 = arith.constant 0 : index
    %353 = vector.load %arg9[%c0_82, %c0_83] : memref<1x128xf32, #tpu.memory_space<vmem>>, vector<1x128xf32>
    %354 = vector.shape_cast %353 : vector<1x128xf32> to vector<1x128xf32>
    %355 = vector.broadcast %354 : vector<1x128xf32> to vector<8x128xf32>
    %cst_84 = arith.constant dense<0.000000e+00> : vector<8x128xf32>
    %356 = tpu.matmul %176, %352, %cst_84 {dimension_numbers = #tpu.dot_dimension_numbers<[1], [0], [0], [1], [0, 0, 1, 1], [], []>} : vector<8x32xf32>, vector<32x128xf32>, vector<8x128xf32> -> vector<8x128xf32>
    %357 = arith.addf %356, %355 : vector<8x128xf32>
    %358 = arith.negf %357 : vector<8x128xf32>
    %359 = math.exp %358 : vector<8x128xf32>
    %cst_85 = arith.constant 1.000000e+00 : f32
    %360 = vector.broadcast %cst_85 : f32 to vector<8x128xf32>
    %361 = arith.addf %360, %359 : vector<8x128xf32>
    %362 = arith.divf %360, %361 : vector<8x128xf32>
    %363 = vector.extract_strided_slice %362 {offsets = [0, 0], sizes = [8, 32], strides = [1, 1]} : vector<8x128xf32> to vector<8x32xf32>
    %364 = vector.extract_strided_slice %362 {offsets = [0, 32], sizes = [8, 32], strides = [1, 1]} : vector<8x128xf32> to vector<8x32xf32>
    %365 = vector.extract_strided_slice %362 {offsets = [0, 64], sizes = [8, 32], strides = [1, 1]} : vector<8x128xf32> to vector<8x32xf32>
    %cst_86 = arith.constant 2.000000e+00 : f32
    %366 = vector.broadcast %cst_86 : f32 to vector<8x32xf32>
    %367 = arith.mulf %366, %365 : vector<8x32xf32>
    %cst_87 = arith.constant 1.000000e+00 : f32
    %368 = vector.broadcast %cst_87 : f32 to vector<8x32xf32>
    %369 = arith.subf %367, %368 : vector<8x32xf32>
    %370 = vector.extract_strided_slice %362 {offsets = [0, 96], sizes = [8, 32], strides = [1, 1]} : vector<8x128xf32> to vector<8x32xf32>
    %371 = arith.mulf %364, %174 : vector<8x32xf32>
    %372 = arith.mulf %363, %369 : vector<8x32xf32>
    %373 = arith.addf %371, %372 : vector<8x32xf32>
    %374 = math.tanh %373 : vector<8x32xf32>
    %375 = arith.mulf %370, %374 : vector<8x32xf32>
    %cst_88 = arith.constant dense<0.000000e+00> : vector<8x128xf32>
    %376 = tpu.matmul %375, %352, %cst_88 {dimension_numbers = #tpu.dot_dimension_numbers<[1], [0], [0], [1], [0, 0, 1, 1], [], []>} : vector<8x32xf32>, vector<32x128xf32>, vector<8x128xf32> -> vector<8x128xf32>
    %377 = arith.addf %376, %355 : vector<8x128xf32>
    %378 = arith.negf %377 : vector<8x128xf32>
    %379 = math.exp %378 : vector<8x128xf32>
    %cst_89 = arith.constant 1.000000e+00 : f32
    %380 = vector.broadcast %cst_89 : f32 to vector<8x128xf32>
    %381 = arith.addf %380, %379 : vector<8x128xf32>
    %382 = arith.divf %380, %381 : vector<8x128xf32>
    %383 = vector.extract_strided_slice %382 {offsets = [0, 0], sizes = [8, 32], strides = [1, 1]} : vector<8x128xf32> to vector<8x32xf32>
    %384 = vector.extract_strided_slice %382 {offsets = [0, 32], sizes = [8, 32], strides = [1, 1]} : vector<8x128xf32> to vector<8x32xf32>
    %385 = vector.extract_strided_slice %382 {offsets = [0, 64], sizes = [8, 32], strides = [1, 1]} : vector<8x128xf32> to vector<8x32xf32>
    %cst_90 = arith.constant 2.000000e+00 : f32
    %386 = vector.broadcast %cst_90 : f32 to vector<8x32xf32>
    %387 = arith.mulf %386, %385 : vector<8x32xf32>
    %cst_91 = arith.constant 1.000000e+00 : f32
    %388 = vector.broadcast %cst_91 : f32 to vector<8x32xf32>
    %389 = arith.subf %387, %388 : vector<8x32xf32>
    %390 = vector.extract_strided_slice %382 {offsets = [0, 96], sizes = [8, 32], strides = [1, 1]} : vector<8x128xf32> to vector<8x32xf32>
    %391 = arith.mulf %384, %373 : vector<8x32xf32>
    %392 = arith.mulf %383, %389 : vector<8x32xf32>
    %393 = arith.addf %391, %392 : vector<8x32xf32>
    %394 = math.tanh %393 : vector<8x32xf32>
    %395 = arith.mulf %390, %394 : vector<8x32xf32>
    %cst_92 = arith.constant dense<0.000000e+00> : vector<8x128xf32>
    %396 = tpu.matmul %395, %352, %cst_92 {dimension_numbers = #tpu.dot_dimension_numbers<[1], [0], [0], [1], [0, 0, 1, 1], [], []>} : vector<8x32xf32>, vector<32x128xf32>, vector<8x128xf32> -> vector<8x128xf32>
    %397 = arith.addf %396, %355 : vector<8x128xf32>
    %398 = arith.negf %397 : vector<8x128xf32>
    %399 = math.exp %398 : vector<8x128xf32>
    %cst_93 = arith.constant 1.000000e+00 : f32
    %400 = vector.broadcast %cst_93 : f32 to vector<8x128xf32>
    %401 = arith.addf %400, %399 : vector<8x128xf32>
    %402 = arith.divf %400, %401 : vector<8x128xf32>
    %403 = vector.extract_strided_slice %402 {offsets = [0, 0], sizes = [8, 32], strides = [1, 1]} : vector<8x128xf32> to vector<8x32xf32>
    %404 = vector.extract_strided_slice %402 {offsets = [0, 32], sizes = [8, 32], strides = [1, 1]} : vector<8x128xf32> to vector<8x32xf32>
    %405 = vector.extract_strided_slice %402 {offsets = [0, 64], sizes = [8, 32], strides = [1, 1]} : vector<8x128xf32> to vector<8x32xf32>
    %cst_94 = arith.constant 2.000000e+00 : f32
    %406 = vector.broadcast %cst_94 : f32 to vector<8x32xf32>
    %407 = arith.mulf %406, %405 : vector<8x32xf32>
    %cst_95 = arith.constant 1.000000e+00 : f32
    %408 = vector.broadcast %cst_95 : f32 to vector<8x32xf32>
    %409 = arith.subf %407, %408 : vector<8x32xf32>
    %410 = vector.extract_strided_slice %402 {offsets = [0, 96], sizes = [8, 32], strides = [1, 1]} : vector<8x128xf32> to vector<8x32xf32>
    %411 = arith.mulf %404, %393 : vector<8x32xf32>
    %412 = arith.mulf %403, %409 : vector<8x32xf32>
    %413 = arith.addf %411, %412 : vector<8x32xf32>
    %414 = math.tanh %413 : vector<8x32xf32>
    %415 = arith.mulf %410, %414 : vector<8x32xf32>
    %cst_96 = arith.constant dense<0.000000e+00> : vector<8x128xf32>
    %416 = tpu.matmul %415, %352, %cst_96 {dimension_numbers = #tpu.dot_dimension_numbers<[1], [0], [0], [1], [0, 0, 1, 1], [], []>} : vector<8x32xf32>, vector<32x128xf32>, vector<8x128xf32> -> vector<8x128xf32>
    %417 = arith.addf %416, %355 : vector<8x128xf32>
    %418 = arith.negf %417 : vector<8x128xf32>
    %419 = math.exp %418 : vector<8x128xf32>
    %cst_97 = arith.constant 1.000000e+00 : f32
    %420 = vector.broadcast %cst_97 : f32 to vector<8x128xf32>
    %421 = arith.addf %420, %419 : vector<8x128xf32>
    %422 = arith.divf %420, %421 : vector<8x128xf32>
    %423 = vector.extract_strided_slice %422 {offsets = [0, 0], sizes = [8, 32], strides = [1, 1]} : vector<8x128xf32> to vector<8x32xf32>
    %424 = vector.extract_strided_slice %422 {offsets = [0, 32], sizes = [8, 32], strides = [1, 1]} : vector<8x128xf32> to vector<8x32xf32>
    %425 = vector.extract_strided_slice %422 {offsets = [0, 64], sizes = [8, 32], strides = [1, 1]} : vector<8x128xf32> to vector<8x32xf32>
    %cst_98 = arith.constant 2.000000e+00 : f32
    %426 = vector.broadcast %cst_98 : f32 to vector<8x32xf32>
    %427 = arith.mulf %426, %425 : vector<8x32xf32>
    %cst_99 = arith.constant 1.000000e+00 : f32
    %428 = vector.broadcast %cst_99 : f32 to vector<8x32xf32>
    %429 = arith.subf %427, %428 : vector<8x32xf32>
    %430 = vector.extract_strided_slice %422 {offsets = [0, 96], sizes = [8, 32], strides = [1, 1]} : vector<8x128xf32> to vector<8x32xf32>
    %431 = arith.mulf %424, %413 : vector<8x32xf32>
    %432 = arith.mulf %423, %429 : vector<8x32xf32>
    %433 = arith.addf %431, %432 : vector<8x32xf32>
    %434 = math.tanh %433 : vector<8x32xf32>
    %435 = arith.mulf %430, %434 : vector<8x32xf32>
    %cst_100 = arith.constant dense<0.000000e+00> : vector<8x128xf32>
    %436 = tpu.matmul %435, %352, %cst_100 {dimension_numbers = #tpu.dot_dimension_numbers<[1], [0], [0], [1], [0, 0, 1, 1], [], []>} : vector<8x32xf32>, vector<32x128xf32>, vector<8x128xf32> -> vector<8x128xf32>
    %437 = arith.addf %436, %355 : vector<8x128xf32>
    %438 = arith.negf %437 : vector<8x128xf32>
    %439 = math.exp %438 : vector<8x128xf32>
    %cst_101 = arith.constant 1.000000e+00 : f32
    %440 = vector.broadcast %cst_101 : f32 to vector<8x128xf32>
    %441 = arith.addf %440, %439 : vector<8x128xf32>
    %442 = arith.divf %440, %441 : vector<8x128xf32>
    %443 = vector.extract_strided_slice %442 {offsets = [0, 0], sizes = [8, 32], strides = [1, 1]} : vector<8x128xf32> to vector<8x32xf32>
    %444 = vector.extract_strided_slice %442 {offsets = [0, 32], sizes = [8, 32], strides = [1, 1]} : vector<8x128xf32> to vector<8x32xf32>
    %445 = vector.extract_strided_slice %442 {offsets = [0, 64], sizes = [8, 32], strides = [1, 1]} : vector<8x128xf32> to vector<8x32xf32>
    %cst_102 = arith.constant 2.000000e+00 : f32
    %446 = vector.broadcast %cst_102 : f32 to vector<8x32xf32>
    %447 = arith.mulf %446, %445 : vector<8x32xf32>
    %cst_103 = arith.constant 1.000000e+00 : f32
    %448 = vector.broadcast %cst_103 : f32 to vector<8x32xf32>
    %449 = arith.subf %447, %448 : vector<8x32xf32>
    %450 = vector.extract_strided_slice %442 {offsets = [0, 96], sizes = [8, 32], strides = [1, 1]} : vector<8x128xf32> to vector<8x32xf32>
    %451 = arith.mulf %444, %433 : vector<8x32xf32>
    %452 = arith.mulf %443, %449 : vector<8x32xf32>
    %453 = arith.addf %451, %452 : vector<8x32xf32>
    %454 = math.tanh %453 : vector<8x32xf32>
    %455 = arith.mulf %450, %454 : vector<8x32xf32>
    %cst_104 = arith.constant dense<0.000000e+00> : vector<8x128xf32>
    %456 = tpu.matmul %455, %352, %cst_104 {dimension_numbers = #tpu.dot_dimension_numbers<[1], [0], [0], [1], [0, 0, 1, 1], [], []>} : vector<8x32xf32>, vector<32x128xf32>, vector<8x128xf32> -> vector<8x128xf32>
    %457 = arith.addf %456, %355 : vector<8x128xf32>
    %458 = arith.negf %457 : vector<8x128xf32>
    %459 = math.exp %458 : vector<8x128xf32>
    %cst_105 = arith.constant 1.000000e+00 : f32
    %460 = vector.broadcast %cst_105 : f32 to vector<8x128xf32>
    %461 = arith.addf %460, %459 : vector<8x128xf32>
    %462 = arith.divf %460, %461 : vector<8x128xf32>
    %463 = vector.extract_strided_slice %462 {offsets = [0, 0], sizes = [8, 32], strides = [1, 1]} : vector<8x128xf32> to vector<8x32xf32>
    %464 = vector.extract_strided_slice %462 {offsets = [0, 32], sizes = [8, 32], strides = [1, 1]} : vector<8x128xf32> to vector<8x32xf32>
    %465 = vector.extract_strided_slice %462 {offsets = [0, 64], sizes = [8, 32], strides = [1, 1]} : vector<8x128xf32> to vector<8x32xf32>
    %cst_106 = arith.constant 2.000000e+00 : f32
    %466 = vector.broadcast %cst_106 : f32 to vector<8x32xf32>
    %467 = arith.mulf %466, %465 : vector<8x32xf32>
    %cst_107 = arith.constant 1.000000e+00 : f32
    %468 = vector.broadcast %cst_107 : f32 to vector<8x32xf32>
    %469 = arith.subf %467, %468 : vector<8x32xf32>
    %470 = vector.extract_strided_slice %462 {offsets = [0, 96], sizes = [8, 32], strides = [1, 1]} : vector<8x128xf32> to vector<8x32xf32>
    %471 = arith.mulf %464, %453 : vector<8x32xf32>
    %472 = arith.mulf %463, %469 : vector<8x32xf32>
    %473 = arith.addf %471, %472 : vector<8x32xf32>
    %474 = math.tanh %473 : vector<8x32xf32>
    %475 = arith.mulf %470, %474 : vector<8x32xf32>
    %cst_108 = arith.constant dense<0.000000e+00> : vector<8x128xf32>
    %476 = tpu.matmul %475, %352, %cst_108 {dimension_numbers = #tpu.dot_dimension_numbers<[1], [0], [0], [1], [0, 0, 1, 1], [], []>} : vector<8x32xf32>, vector<32x128xf32>, vector<8x128xf32> -> vector<8x128xf32>
    %477 = arith.addf %476, %355 : vector<8x128xf32>
    %478 = arith.negf %477 : vector<8x128xf32>
    %479 = math.exp %478 : vector<8x128xf32>
    %cst_109 = arith.constant 1.000000e+00 : f32
    %480 = vector.broadcast %cst_109 : f32 to vector<8x128xf32>
    %481 = arith.addf %480, %479 : vector<8x128xf32>
    %482 = arith.divf %480, %481 : vector<8x128xf32>
    %483 = vector.extract_strided_slice %482 {offsets = [0, 0], sizes = [8, 32], strides = [1, 1]} : vector<8x128xf32> to vector<8x32xf32>
    %484 = vector.extract_strided_slice %482 {offsets = [0, 32], sizes = [8, 32], strides = [1, 1]} : vector<8x128xf32> to vector<8x32xf32>
    %485 = vector.extract_strided_slice %482 {offsets = [0, 64], sizes = [8, 32], strides = [1, 1]} : vector<8x128xf32> to vector<8x32xf32>
    %cst_110 = arith.constant 2.000000e+00 : f32
    %486 = vector.broadcast %cst_110 : f32 to vector<8x32xf32>
    %487 = arith.mulf %486, %485 : vector<8x32xf32>
    %cst_111 = arith.constant 1.000000e+00 : f32
    %488 = vector.broadcast %cst_111 : f32 to vector<8x32xf32>
    %489 = arith.subf %487, %488 : vector<8x32xf32>
    %490 = vector.extract_strided_slice %482 {offsets = [0, 96], sizes = [8, 32], strides = [1, 1]} : vector<8x128xf32> to vector<8x32xf32>
    %491 = arith.mulf %484, %473 : vector<8x32xf32>
    %492 = arith.mulf %483, %489 : vector<8x32xf32>
    %493 = arith.addf %491, %492 : vector<8x32xf32>
    %494 = math.tanh %493 : vector<8x32xf32>
    %495 = arith.mulf %490, %494 : vector<8x32xf32>
    %cst_112 = arith.constant dense<0.000000e+00> : vector<8x128xf32>
    %496 = tpu.matmul %495, %352, %cst_112 {dimension_numbers = #tpu.dot_dimension_numbers<[1], [0], [0], [1], [0, 0, 1, 1], [], []>} : vector<8x32xf32>, vector<32x128xf32>, vector<8x128xf32> -> vector<8x128xf32>
    %497 = arith.addf %496, %355 : vector<8x128xf32>
    %498 = arith.negf %497 : vector<8x128xf32>
    %499 = math.exp %498 : vector<8x128xf32>
    %cst_113 = arith.constant 1.000000e+00 : f32
    %500 = vector.broadcast %cst_113 : f32 to vector<8x128xf32>
    %501 = arith.addf %500, %499 : vector<8x128xf32>
    %502 = arith.divf %500, %501 : vector<8x128xf32>
    %503 = vector.extract_strided_slice %502 {offsets = [0, 0], sizes = [8, 32], strides = [1, 1]} : vector<8x128xf32> to vector<8x32xf32>
    %504 = vector.extract_strided_slice %502 {offsets = [0, 32], sizes = [8, 32], strides = [1, 1]} : vector<8x128xf32> to vector<8x32xf32>
    %505 = vector.extract_strided_slice %502 {offsets = [0, 64], sizes = [8, 32], strides = [1, 1]} : vector<8x128xf32> to vector<8x32xf32>
    %cst_114 = arith.constant 2.000000e+00 : f32
    %506 = vector.broadcast %cst_114 : f32 to vector<8x32xf32>
    %507 = arith.mulf %506, %505 : vector<8x32xf32>
    %cst_115 = arith.constant 1.000000e+00 : f32
    %508 = vector.broadcast %cst_115 : f32 to vector<8x32xf32>
    %509 = arith.subf %507, %508 : vector<8x32xf32>
    %510 = vector.extract_strided_slice %502 {offsets = [0, 96], sizes = [8, 32], strides = [1, 1]} : vector<8x128xf32> to vector<8x32xf32>
    %511 = arith.mulf %504, %493 : vector<8x32xf32>
    %512 = arith.mulf %503, %509 : vector<8x32xf32>
    %513 = arith.addf %511, %512 : vector<8x32xf32>
    %514 = math.tanh %513 : vector<8x32xf32>
    %515 = arith.mulf %510, %514 : vector<8x32xf32>
    %516 = tpu.concatenate %375, %395, %415, %435, %455, %475, %495, %515 in 0 : vector<8x32xf32>, vector<8x32xf32>, vector<8x32xf32>, vector<8x32xf32>, vector<8x32xf32>, vector<8x32xf32>, vector<8x32xf32>, vector<8x32xf32> -> vector<64x32xf32>
    %c0_116 = arith.constant 0 : index
    %c0_117 = arith.constant 0 : index
    %517 = vector.load %arg10[%c0_116, %c0_117] : memref<32x128xf32, #tpu.memory_space<vmem>>, vector<32x128xf32>
    %cst_118 = arith.constant dense<0.000000e+00> : vector<64x128xf32>
    %518 = tpu.matmul %516, %517, %cst_118 {dimension_numbers = #tpu.dot_dimension_numbers<[1], [0], [0], [1], [0, 0, 1, 1], [], []>} : vector<64x32xf32>, vector<32x128xf32>, vector<64x128xf32> -> vector<64x128xf32>
    %c0_119 = arith.constant 0 : index
    %c0_120 = arith.constant 0 : index
    %519 = vector.load %arg12[%c0_119, %c0_120] : memref<1x128xf32, #tpu.memory_space<vmem>>, vector<1x128xf32>
    %520 = vector.broadcast %519 : vector<1x128xf32> to vector<64x128xf32>
    %521 = arith.addf %518, %520 : vector<64x128xf32>
    %c0_121 = arith.constant 0 : index
    %c0_122 = arith.constant 0 : index
    %522 = vector.load %arg11[%c0_121, %c0_122] : memref<32x128xf32, #tpu.memory_space<vmem>>, vector<32x128xf32>
    %523 = vector.extract_strided_slice %521 {offsets = [0, 0], sizes = [8, 128], strides = [1, 1]} : vector<64x128xf32> to vector<8x128xf32>
    %cst_123 = arith.constant dense<0.000000e+00> : vector<8x128xf32>
    %524 = tpu.matmul %351, %522, %cst_123 {dimension_numbers = #tpu.dot_dimension_numbers<[1], [0], [0], [1], [0, 0, 1, 1], [], []>} : vector<8x32xf32>, vector<32x128xf32>, vector<8x128xf32> -> vector<8x128xf32>
    %525 = arith.addf %523, %524 : vector<8x128xf32>
    %526 = arith.negf %525 : vector<8x128xf32>
    %527 = math.exp %526 : vector<8x128xf32>
    %cst_124 = arith.constant 1.000000e+00 : f32
    %528 = vector.broadcast %cst_124 : f32 to vector<8x128xf32>
    %529 = arith.addf %528, %527 : vector<8x128xf32>
    %530 = arith.divf %528, %529 : vector<8x128xf32>
    %531 = vector.extract_strided_slice %530 {offsets = [0, 0], sizes = [8, 32], strides = [1, 1]} : vector<8x128xf32> to vector<8x32xf32>
    %532 = vector.extract_strided_slice %530 {offsets = [0, 32], sizes = [8, 32], strides = [1, 1]} : vector<8x128xf32> to vector<8x32xf32>
    %533 = vector.extract_strided_slice %530 {offsets = [0, 64], sizes = [8, 32], strides = [1, 1]} : vector<8x128xf32> to vector<8x32xf32>
    %cst_125 = arith.constant 2.000000e+00 : f32
    %534 = vector.broadcast %cst_125 : f32 to vector<8x32xf32>
    %535 = arith.mulf %534, %533 : vector<8x32xf32>
    %cst_126 = arith.constant 1.000000e+00 : f32
    %536 = vector.broadcast %cst_126 : f32 to vector<8x32xf32>
    %537 = arith.subf %535, %536 : vector<8x32xf32>
    %538 = vector.extract_strided_slice %530 {offsets = [0, 96], sizes = [8, 32], strides = [1, 1]} : vector<8x128xf32> to vector<8x32xf32>
    %539 = arith.mulf %532, %349 : vector<8x32xf32>
    %540 = arith.mulf %531, %537 : vector<8x32xf32>
    %541 = arith.addf %539, %540 : vector<8x32xf32>
    %542 = math.tanh %541 : vector<8x32xf32>
    %543 = arith.mulf %538, %542 : vector<8x32xf32>
    %544 = vector.extract_strided_slice %521 {offsets = [8, 0], sizes = [8, 128], strides = [1, 1]} : vector<64x128xf32> to vector<8x128xf32>
    %cst_127 = arith.constant dense<0.000000e+00> : vector<8x128xf32>
    %545 = tpu.matmul %543, %522, %cst_127 {dimension_numbers = #tpu.dot_dimension_numbers<[1], [0], [0], [1], [0, 0, 1, 1], [], []>} : vector<8x32xf32>, vector<32x128xf32>, vector<8x128xf32> -> vector<8x128xf32>
    %546 = arith.addf %544, %545 : vector<8x128xf32>
    %547 = arith.negf %546 : vector<8x128xf32>
    %548 = math.exp %547 : vector<8x128xf32>
    %cst_128 = arith.constant 1.000000e+00 : f32
    %549 = vector.broadcast %cst_128 : f32 to vector<8x128xf32>
    %550 = arith.addf %549, %548 : vector<8x128xf32>
    %551 = arith.divf %549, %550 : vector<8x128xf32>
    %552 = vector.extract_strided_slice %551 {offsets = [0, 0], sizes = [8, 32], strides = [1, 1]} : vector<8x128xf32> to vector<8x32xf32>
    %553 = vector.extract_strided_slice %551 {offsets = [0, 32], sizes = [8, 32], strides = [1, 1]} : vector<8x128xf32> to vector<8x32xf32>
    %554 = vector.extract_strided_slice %551 {offsets = [0, 64], sizes = [8, 32], strides = [1, 1]} : vector<8x128xf32> to vector<8x32xf32>
    %cst_129 = arith.constant 2.000000e+00 : f32
    %555 = vector.broadcast %cst_129 : f32 to vector<8x32xf32>
    %556 = arith.mulf %555, %554 : vector<8x32xf32>
    %cst_130 = arith.constant 1.000000e+00 : f32
    %557 = vector.broadcast %cst_130 : f32 to vector<8x32xf32>
    %558 = arith.subf %556, %557 : vector<8x32xf32>
    %559 = vector.extract_strided_slice %551 {offsets = [0, 96], sizes = [8, 32], strides = [1, 1]} : vector<8x128xf32> to vector<8x32xf32>
    %560 = arith.mulf %553, %541 : vector<8x32xf32>
    %561 = arith.mulf %552, %558 : vector<8x32xf32>
    %562 = arith.addf %560, %561 : vector<8x32xf32>
    %563 = math.tanh %562 : vector<8x32xf32>
    %564 = arith.mulf %559, %563 : vector<8x32xf32>
    %565 = vector.extract_strided_slice %521 {offsets = [16, 0], sizes = [8, 128], strides = [1, 1]} : vector<64x128xf32> to vector<8x128xf32>
    %cst_131 = arith.constant dense<0.000000e+00> : vector<8x128xf32>
    %566 = tpu.matmul %564, %522, %cst_131 {dimension_numbers = #tpu.dot_dimension_numbers<[1], [0], [0], [1], [0, 0, 1, 1], [], []>} : vector<8x32xf32>, vector<32x128xf32>, vector<8x128xf32> -> vector<8x128xf32>
    %567 = arith.addf %565, %566 : vector<8x128xf32>
    %568 = arith.negf %567 : vector<8x128xf32>
    %569 = math.exp %568 : vector<8x128xf32>
    %cst_132 = arith.constant 1.000000e+00 : f32
    %570 = vector.broadcast %cst_132 : f32 to vector<8x128xf32>
    %571 = arith.addf %570, %569 : vector<8x128xf32>
    %572 = arith.divf %570, %571 : vector<8x128xf32>
    %573 = vector.extract_strided_slice %572 {offsets = [0, 0], sizes = [8, 32], strides = [1, 1]} : vector<8x128xf32> to vector<8x32xf32>
    %574 = vector.extract_strided_slice %572 {offsets = [0, 32], sizes = [8, 32], strides = [1, 1]} : vector<8x128xf32> to vector<8x32xf32>
    %575 = vector.extract_strided_slice %572 {offsets = [0, 64], sizes = [8, 32], strides = [1, 1]} : vector<8x128xf32> to vector<8x32xf32>
    %cst_133 = arith.constant 2.000000e+00 : f32
    %576 = vector.broadcast %cst_133 : f32 to vector<8x32xf32>
    %577 = arith.mulf %576, %575 : vector<8x32xf32>
    %cst_134 = arith.constant 1.000000e+00 : f32
    %578 = vector.broadcast %cst_134 : f32 to vector<8x32xf32>
    %579 = arith.subf %577, %578 : vector<8x32xf32>
    %580 = vector.extract_strided_slice %572 {offsets = [0, 96], sizes = [8, 32], strides = [1, 1]} : vector<8x128xf32> to vector<8x32xf32>
    %581 = arith.mulf %574, %562 : vector<8x32xf32>
    %582 = arith.mulf %573, %579 : vector<8x32xf32>
    %583 = arith.addf %581, %582 : vector<8x32xf32>
    %584 = math.tanh %583 : vector<8x32xf32>
    %585 = arith.mulf %580, %584 : vector<8x32xf32>
    %586 = vector.extract_strided_slice %521 {offsets = [24, 0], sizes = [8, 128], strides = [1, 1]} : vector<64x128xf32> to vector<8x128xf32>
    %cst_135 = arith.constant dense<0.000000e+00> : vector<8x128xf32>
    %587 = tpu.matmul %585, %522, %cst_135 {dimension_numbers = #tpu.dot_dimension_numbers<[1], [0], [0], [1], [0, 0, 1, 1], [], []>} : vector<8x32xf32>, vector<32x128xf32>, vector<8x128xf32> -> vector<8x128xf32>
    %588 = arith.addf %586, %587 : vector<8x128xf32>
    %589 = arith.negf %588 : vector<8x128xf32>
    %590 = math.exp %589 : vector<8x128xf32>
    %cst_136 = arith.constant 1.000000e+00 : f32
    %591 = vector.broadcast %cst_136 : f32 to vector<8x128xf32>
    %592 = arith.addf %591, %590 : vector<8x128xf32>
    %593 = arith.divf %591, %592 : vector<8x128xf32>
    %594 = vector.extract_strided_slice %593 {offsets = [0, 0], sizes = [8, 32], strides = [1, 1]} : vector<8x128xf32> to vector<8x32xf32>
    %595 = vector.extract_strided_slice %593 {offsets = [0, 32], sizes = [8, 32], strides = [1, 1]} : vector<8x128xf32> to vector<8x32xf32>
    %596 = vector.extract_strided_slice %593 {offsets = [0, 64], sizes = [8, 32], strides = [1, 1]} : vector<8x128xf32> to vector<8x32xf32>
    %cst_137 = arith.constant 2.000000e+00 : f32
    %597 = vector.broadcast %cst_137 : f32 to vector<8x32xf32>
    %598 = arith.mulf %597, %596 : vector<8x32xf32>
    %cst_138 = arith.constant 1.000000e+00 : f32
    %599 = vector.broadcast %cst_138 : f32 to vector<8x32xf32>
    %600 = arith.subf %598, %599 : vector<8x32xf32>
    %601 = vector.extract_strided_slice %593 {offsets = [0, 96], sizes = [8, 32], strides = [1, 1]} : vector<8x128xf32> to vector<8x32xf32>
    %602 = arith.mulf %595, %583 : vector<8x32xf32>
    %603 = arith.mulf %594, %600 : vector<8x32xf32>
    %604 = arith.addf %602, %603 : vector<8x32xf32>
    %605 = math.tanh %604 : vector<8x32xf32>
    %606 = arith.mulf %601, %605 : vector<8x32xf32>
    %607 = vector.extract_strided_slice %521 {offsets = [32, 0], sizes = [8, 128], strides = [1, 1]} : vector<64x128xf32> to vector<8x128xf32>
    %cst_139 = arith.constant dense<0.000000e+00> : vector<8x128xf32>
    %608 = tpu.matmul %606, %522, %cst_139 {dimension_numbers = #tpu.dot_dimension_numbers<[1], [0], [0], [1], [0, 0, 1, 1], [], []>} : vector<8x32xf32>, vector<32x128xf32>, vector<8x128xf32> -> vector<8x128xf32>
    %609 = arith.addf %607, %608 : vector<8x128xf32>
    %610 = arith.negf %609 : vector<8x128xf32>
    %611 = math.exp %610 : vector<8x128xf32>
    %cst_140 = arith.constant 1.000000e+00 : f32
    %612 = vector.broadcast %cst_140 : f32 to vector<8x128xf32>
    %613 = arith.addf %612, %611 : vector<8x128xf32>
    %614 = arith.divf %612, %613 : vector<8x128xf32>
    %615 = vector.extract_strided_slice %614 {offsets = [0, 0], sizes = [8, 32], strides = [1, 1]} : vector<8x128xf32> to vector<8x32xf32>
    %616 = vector.extract_strided_slice %614 {offsets = [0, 32], sizes = [8, 32], strides = [1, 1]} : vector<8x128xf32> to vector<8x32xf32>
    %617 = vector.extract_strided_slice %614 {offsets = [0, 64], sizes = [8, 32], strides = [1, 1]} : vector<8x128xf32> to vector<8x32xf32>
    %cst_141 = arith.constant 2.000000e+00 : f32
    %618 = vector.broadcast %cst_141 : f32 to vector<8x32xf32>
    %619 = arith.mulf %618, %617 : vector<8x32xf32>
    %cst_142 = arith.constant 1.000000e+00 : f32
    %620 = vector.broadcast %cst_142 : f32 to vector<8x32xf32>
    %621 = arith.subf %619, %620 : vector<8x32xf32>
    %622 = vector.extract_strided_slice %614 {offsets = [0, 96], sizes = [8, 32], strides = [1, 1]} : vector<8x128xf32> to vector<8x32xf32>
    %623 = arith.mulf %616, %604 : vector<8x32xf32>
    %624 = arith.mulf %615, %621 : vector<8x32xf32>
    %625 = arith.addf %623, %624 : vector<8x32xf32>
    %626 = math.tanh %625 : vector<8x32xf32>
    %627 = arith.mulf %622, %626 : vector<8x32xf32>
    %628 = vector.extract_strided_slice %521 {offsets = [40, 0], sizes = [8, 128], strides = [1, 1]} : vector<64x128xf32> to vector<8x128xf32>
    %cst_143 = arith.constant dense<0.000000e+00> : vector<8x128xf32>
    %629 = tpu.matmul %627, %522, %cst_143 {dimension_numbers = #tpu.dot_dimension_numbers<[1], [0], [0], [1], [0, 0, 1, 1], [], []>} : vector<8x32xf32>, vector<32x128xf32>, vector<8x128xf32> -> vector<8x128xf32>
    %630 = arith.addf %628, %629 : vector<8x128xf32>
    %631 = arith.negf %630 : vector<8x128xf32>
    %632 = math.exp %631 : vector<8x128xf32>
    %cst_144 = arith.constant 1.000000e+00 : f32
    %633 = vector.broadcast %cst_144 : f32 to vector<8x128xf32>
    %634 = arith.addf %633, %632 : vector<8x128xf32>
    %635 = arith.divf %633, %634 : vector<8x128xf32>
    %636 = vector.extract_strided_slice %635 {offsets = [0, 0], sizes = [8, 32], strides = [1, 1]} : vector<8x128xf32> to vector<8x32xf32>
    %637 = vector.extract_strided_slice %635 {offsets = [0, 32], sizes = [8, 32], strides = [1, 1]} : vector<8x128xf32> to vector<8x32xf32>
    %638 = vector.extract_strided_slice %635 {offsets = [0, 64], sizes = [8, 32], strides = [1, 1]} : vector<8x128xf32> to vector<8x32xf32>
    %cst_145 = arith.constant 2.000000e+00 : f32
    %639 = vector.broadcast %cst_145 : f32 to vector<8x32xf32>
    %640 = arith.mulf %639, %638 : vector<8x32xf32>
    %cst_146 = arith.constant 1.000000e+00 : f32
    %641 = vector.broadcast %cst_146 : f32 to vector<8x32xf32>
    %642 = arith.subf %640, %641 : vector<8x32xf32>
    %643 = vector.extract_strided_slice %635 {offsets = [0, 96], sizes = [8, 32], strides = [1, 1]} : vector<8x128xf32> to vector<8x32xf32>
    %644 = arith.mulf %637, %625 : vector<8x32xf32>
    %645 = arith.mulf %636, %642 : vector<8x32xf32>
    %646 = arith.addf %644, %645 : vector<8x32xf32>
    %647 = math.tanh %646 : vector<8x32xf32>
    %648 = arith.mulf %643, %647 : vector<8x32xf32>
    %649 = vector.extract_strided_slice %521 {offsets = [48, 0], sizes = [8, 128], strides = [1, 1]} : vector<64x128xf32> to vector<8x128xf32>
    %cst_147 = arith.constant dense<0.000000e+00> : vector<8x128xf32>
    %650 = tpu.matmul %648, %522, %cst_147 {dimension_numbers = #tpu.dot_dimension_numbers<[1], [0], [0], [1], [0, 0, 1, 1], [], []>} : vector<8x32xf32>, vector<32x128xf32>, vector<8x128xf32> -> vector<8x128xf32>
    %651 = arith.addf %649, %650 : vector<8x128xf32>
    %652 = arith.negf %651 : vector<8x128xf32>
    %653 = math.exp %652 : vector<8x128xf32>
    %cst_148 = arith.constant 1.000000e+00 : f32
    %654 = vector.broadcast %cst_148 : f32 to vector<8x128xf32>
    %655 = arith.addf %654, %653 : vector<8x128xf32>
    %656 = arith.divf %654, %655 : vector<8x128xf32>
    %657 = vector.extract_strided_slice %656 {offsets = [0, 0], sizes = [8, 32], strides = [1, 1]} : vector<8x128xf32> to vector<8x32xf32>
    %658 = vector.extract_strided_slice %656 {offsets = [0, 32], sizes = [8, 32], strides = [1, 1]} : vector<8x128xf32> to vector<8x32xf32>
    %659 = vector.extract_strided_slice %656 {offsets = [0, 64], sizes = [8, 32], strides = [1, 1]} : vector<8x128xf32> to vector<8x32xf32>
    %cst_149 = arith.constant 2.000000e+00 : f32
    %660 = vector.broadcast %cst_149 : f32 to vector<8x32xf32>
    %661 = arith.mulf %660, %659 : vector<8x32xf32>
    %cst_150 = arith.constant 1.000000e+00 : f32
    %662 = vector.broadcast %cst_150 : f32 to vector<8x32xf32>
    %663 = arith.subf %661, %662 : vector<8x32xf32>
    %664 = vector.extract_strided_slice %656 {offsets = [0, 96], sizes = [8, 32], strides = [1, 1]} : vector<8x128xf32> to vector<8x32xf32>
    %665 = arith.mulf %658, %646 : vector<8x32xf32>
    %666 = arith.mulf %657, %663 : vector<8x32xf32>
    %667 = arith.addf %665, %666 : vector<8x32xf32>
    %668 = math.tanh %667 : vector<8x32xf32>
    %669 = arith.mulf %664, %668 : vector<8x32xf32>
    %670 = vector.extract_strided_slice %521 {offsets = [56, 0], sizes = [8, 128], strides = [1, 1]} : vector<64x128xf32> to vector<8x128xf32>
    %cst_151 = arith.constant dense<0.000000e+00> : vector<8x128xf32>
    %671 = tpu.matmul %669, %522, %cst_151 {dimension_numbers = #tpu.dot_dimension_numbers<[1], [0], [0], [1], [0, 0, 1, 1], [], []>} : vector<8x32xf32>, vector<32x128xf32>, vector<8x128xf32> -> vector<8x128xf32>
    %672 = arith.addf %670, %671 : vector<8x128xf32>
    %673 = arith.negf %672 : vector<8x128xf32>
    %674 = math.exp %673 : vector<8x128xf32>
    %cst_152 = arith.constant 1.000000e+00 : f32
    %675 = vector.broadcast %cst_152 : f32 to vector<8x128xf32>
    %676 = arith.addf %675, %674 : vector<8x128xf32>
    %677 = arith.divf %675, %676 : vector<8x128xf32>
    %678 = vector.extract_strided_slice %677 {offsets = [0, 0], sizes = [8, 32], strides = [1, 1]} : vector<8x128xf32> to vector<8x32xf32>
    %679 = vector.extract_strided_slice %677 {offsets = [0, 32], sizes = [8, 32], strides = [1, 1]} : vector<8x128xf32> to vector<8x32xf32>
    %680 = vector.extract_strided_slice %677 {offsets = [0, 64], sizes = [8, 32], strides = [1, 1]} : vector<8x128xf32> to vector<8x32xf32>
    %cst_153 = arith.constant 2.000000e+00 : f32
    %681 = vector.broadcast %cst_153 : f32 to vector<8x32xf32>
    %682 = arith.mulf %681, %680 : vector<8x32xf32>
    %cst_154 = arith.constant 1.000000e+00 : f32
    %683 = vector.broadcast %cst_154 : f32 to vector<8x32xf32>
    %684 = arith.subf %682, %683 : vector<8x32xf32>
    %685 = vector.extract_strided_slice %677 {offsets = [0, 96], sizes = [8, 32], strides = [1, 1]} : vector<8x128xf32> to vector<8x32xf32>
    %686 = arith.mulf %679, %667 : vector<8x32xf32>
    %687 = arith.mulf %678, %684 : vector<8x32xf32>
    %688 = arith.addf %686, %687 : vector<8x32xf32>
    %689 = math.tanh %688 : vector<8x32xf32>
    %690 = arith.mulf %685, %689 : vector<8x32xf32>
    %691 = tpu.concatenate %543, %564, %585, %606, %627, %648, %669, %690 in 0 : vector<8x32xf32>, vector<8x32xf32>, vector<8x32xf32>, vector<8x32xf32>, vector<8x32xf32>, vector<8x32xf32>, vector<8x32xf32>, vector<8x32xf32> -> vector<64x32xf32>
    %cst_155 = arith.constant dense<0.000000e+00> : vector<64xf32>
    %692 = vector.multi_reduction <add>, %691, %cst_155 [1] : vector<64x32xf32> to vector<64xf32>
    %693 = vector.shape_cast %692 : vector<64xf32> to vector<64x1xf32>
    %cst_156 = arith.constant 3.200000e+01 : f32
    %694 = vector.broadcast %cst_156 : f32 to vector<64x1xf32>
    %695 = arith.divf %693, %694 : vector<64x1xf32>
    %696 = vector.broadcast %695 : vector<64x1xf32> to vector<64x32xf32>
    %697 = arith.subf %691, %696 : vector<64x32xf32>
    %698 = arith.mulf %697, %697 : vector<64x32xf32>
    %cst_157 = arith.constant dense<0.000000e+00> : vector<64xf32>
    %699 = vector.multi_reduction <add>, %698, %cst_157 [1] : vector<64x32xf32> to vector<64xf32>
    %700 = vector.shape_cast %699 : vector<64xf32> to vector<64x1xf32>
    %cst_158 = arith.constant 3.200000e+01 : f32
    %701 = vector.broadcast %cst_158 : f32 to vector<64x1xf32>
    %702 = arith.divf %700, %701 : vector<64x1xf32>
    %703 = vector.broadcast %695 : vector<64x1xf32> to vector<64x32xf32>
    %704 = arith.subf %691, %703 : vector<64x32xf32>
    %cst_159 = arith.constant 9.99999974E-6 : f32
    %705 = vector.broadcast %cst_159 : f32 to vector<64x1xf32>
    %706 = arith.addf %702, %705 : vector<64x1xf32>
    %707 = math.rsqrt %706 : vector<64x1xf32>
    %708 = vector.broadcast %707 : vector<64x1xf32> to vector<64x32xf32>
    %709 = arith.mulf %704, %708 : vector<64x32xf32>
    %c0_160 = arith.constant 0 : index
    %c0_161 = arith.constant 0 : index
    %710 = vector.load %arg13[%c0_160, %c0_161] : memref<1x32xf32, #tpu.memory_space<vmem>>, vector<1x32xf32>
    %711 = vector.broadcast %710 : vector<1x32xf32> to vector<64x32xf32>
    %712 = arith.mulf %709, %711 : vector<64x32xf32>
    %c0_162 = arith.constant 0 : index
    %c0_163 = arith.constant 0 : index
    %713 = vector.load %arg14[%c0_162, %c0_163] : memref<1x32xf32, #tpu.memory_space<vmem>>, vector<1x32xf32>
    %714 = vector.broadcast %713 : vector<1x32xf32> to vector<64x32xf32>
    %715 = arith.addf %712, %714 : vector<64x32xf32>
    %c0_164 = arith.constant 0 : index
    %c0_165 = arith.constant 0 : index
    %716 = vector.load %arg15[%c0_164, %c0_165] : memref<32x16xf32, #tpu.memory_space<vmem>>, vector<32x16xf32>
    %cst_166 = arith.constant dense<0.000000e+00> : vector<64x16xf32>
    %717 = tpu.matmul %715, %716, %cst_166 {dimension_numbers = #tpu.dot_dimension_numbers<[1], [0], [0], [1], [0, 0, 1, 1], [], []>} : vector<64x32xf32>, vector<32x16xf32>, vector<64x16xf32> -> vector<64x16xf32>
    %c0_167 = arith.constant 0 : index
    %c0_168 = arith.constant 0 : index
    %718 = vector.load %arg16[%c0_167, %c0_168] : memref<1x16xf32, #tpu.memory_space<vmem>>, vector<1x16xf32>
    %719 = vector.broadcast %718 : vector<1x16xf32> to vector<64x16xf32>
    %720 = arith.addf %717, %719 : vector<64x16xf32>
    %721 = vector.shape_cast %720 : vector<64x16xf32> to vector<8x8x16xf32>
    %c0_169 = arith.constant 0 : index
    %c0_170 = arith.constant 0 : index
    %c0_171 = arith.constant 0 : index
    %722 = vector.load %arg17[%c0_169, %c0_170, %c0_171] : memref<8x8x16xf32, #tpu.memory_space<vmem>>, vector<8x8x16xf32>
    tpu.vector_store %arg17[%c0_169, %c0_170, %c0_171], %721 {strides = array<i32>} : memref<8x8x16xf32, #tpu.memory_space<vmem>>, vector<8x8x16xf32>,
    return
  }
  func.func @transform_0(%arg0: i32) -> (i32, i32, i32) {
    %c0_i32 = arith.constant 0 : i32
    %c0_i32_0 = arith.constant 0 : i32
    %c0_i32_1 = arith.constant 0 : i32
    return %c0_i32, %arg0, %c0_i32_0 : i32, i32, i32
  }
  func.func @transform_1(%arg0: i32) -> (i32, i32) {
    %c0_i32 = arith.constant 0 : i32
    %c0_i32_0 = arith.constant 0 : i32
    %c0_i32_1 = arith.constant 0 : i32
    return %c0_i32, %c0_i32_0 : i32, i32
  }
  func.func @transform_2(%arg0: i32) -> (i32, i32) {
    %c0_i32 = arith.constant 0 : i32
    %c0_i32_0 = arith.constant 0 : i32
    %c0_i32_1 = arith.constant 0 : i32
    return %c0_i32, %c0_i32_0 : i32, i32
  }
  func.func @transform_3(%arg0: i32) -> (i32, i32) {
    %c0_i32 = arith.constant 0 : i32
    %c0_i32_0 = arith.constant 0 : i32
    %c0_i32_1 = arith.constant 0 : i32
    return %c0_i32, %c0_i32_0 : i32, i32
  }
  func.func @transform_4(%arg0: i32) -> (i32, i32) {
    %c0_i32 = arith.constant 0 : i32
    %c0_i32_0 = arith.constant 0 : i32
    %c0_i32_1 = arith.constant 0 : i32
    return %c0_i32, %c0_i32_0 : i32, i32
  }
  func.func @transform_5(%arg0: i32) -> (i32, i32) {
    %c0_i32 = arith.constant 0 : i32
    %c0_i32_0 = arith.constant 0 : i32
    %c0_i32_1 = arith.constant 0 : i32
    return %c0_i32, %c0_i32_0 : i32, i32
  }
  func.func @transform_6(%arg0: i32) -> (i32, i32) {
    %c0_i32 = arith.constant 0 : i32
    %c0_i32_0 = arith.constant 0 : i32
    %c0_i32_1 = arith.constant 0 : i32
    return %c0_i32, %c0_i32_0 : i32, i32
  }
  func.func @transform_7(%arg0: i32) -> (i32, i32) {
    %c0_i32 = arith.constant 0 : i32
    %c0_i32_0 = arith.constant 0 : i32
    %c0_i32_1 = arith.constant 0 : i32
    return %c0_i32, %c0_i32_0 : i32, i32
  }
  func.func @transform_8(%arg0: i32) -> (i32, i32) {
    %c0_i32 = arith.constant 0 : i32
    %c0_i32_0 = arith.constant 0 : i32
    %c0_i32_1 = arith.constant 0 : i32
    return %c0_i32, %c0_i32_0 : i32, i32
  }
  func.func @transform_9(%arg0: i32) -> (i32, i32) {
    %c0_i32 = arith.constant 0 : i32
    %c0_i32_0 = arith.constant 0 : i32
    %c0_i32_1 = arith.constant 0 : i32
    return %c0_i32, %c0_i32_0 : i32, i32
  }
  func.func @transform_10(%arg0: i32) -> (i32, i32) {
    %c0_i32 = arith.constant 0 : i32
    %c0_i32_0 = arith.constant 0 : i32
    %c0_i32_1 = arith.constant 0 : i32
    return %c0_i32, %c0_i32_0 : i32, i32
  }
  func.func @transform_11(%arg0: i32) -> (i32, i32) {
    %c0_i32 = arith.constant 0 : i32
    %c0_i32_0 = arith.constant 0 : i32
    %c0_i32_1 = arith.constant 0 : i32
    return %c0_i32, %c0_i32_0 : i32, i32
  }
  func.func @transform_12(%arg0: i32) -> (i32, i32) {
    %c0_i32 = arith.constant 0 : i32
    %c0_i32_0 = arith.constant 0 : i32
    %c0_i32_1 = arith.constant 0 : i32
    return %c0_i32, %c0_i32_0 : i32, i32
  }
  func.func @transform_13(%arg0: i32) -> (i32, i32) {
    %c0_i32 = arith.constant 0 : i32
    %c0_i32_0 = arith.constant 0 : i32
    %c0_i32_1 = arith.constant 0 : i32
    return %c0_i32, %c0_i32_0 : i32, i32
  }
  func.func @transform_14(%arg0: i32) -> (i32, i32) {
    %c0_i32 = arith.constant 0 : i32
    %c0_i32_0 = arith.constant 0 : i32
    %c0_i32_1 = arith.constant 0 : i32
    return %c0_i32, %c0_i32_0 : i32, i32
  }
  func.func @transform_15(%arg0: i32) -> (i32, i32) {
    %c0_i32 = arith.constant 0 : i32
    %c0_i32_0 = arith.constant 0 : i32
    %c0_i32_1 = arith.constant 0 : i32
    return %c0_i32, %c0_i32_0 : i32, i32
  }
  func.func @transform_16(%arg0: i32) -> (i32, i32, i32) {
    %c0_i32 = arith.constant 0 : i32
    %c0_i32_0 = arith.constant 0 : i32
    %c0_i32_1 = arith.constant 0 : i32
    return %c0_i32, %arg0, %c0_i32_0 : i32, i32, i32
  }
}

</mosaic_0001>

<llo_original>
// kernel: tpu_custom_call.1
$region0: #{tpu_custom_call.1}
  #allocation0 [shape = 'u32[]', space=smem, size = 0x4, offset = 0x4, fixed_abs, tag = 'smem constant byte address 0x4 - core index']
  #allocation1 [shape = 'u32[144,128]{1,0:T(1,128)}', space=vmem, size = 0x12000, scoped, tag = 'internal scratch']
  %s0 = inlined_call_operand.hbm [shape: f32[8,8,16], index: 0, kind: input, shape index: {}]
  %s1 = inlined_call_operand.hbm [shape: f32[16,128], index: 1, kind: input, shape index: {}]
  %s2 = inlined_call_operand.vmem [shape: f32[32,128], index: 2, kind: input, shape index: {}]
  %s3 = inlined_call_operand.hbm [shape: f32[1,128], index: 3, kind: input, shape index: {}]
  %s4 = inlined_call_operand.hbm [shape: f32[32,128], index: 4, kind: input, shape index: {}]
  %s5 = inlined_call_operand.hbm [shape: f32[32,128], index: 5, kind: input, shape index: {}]
  %s6 = inlined_call_operand.hbm [shape: f32[1,128], index: 6, kind: input, shape index: {}]
  %s7 = inlined_call_operand.hbm [shape: f32[32,128], index: 7, kind: input, shape index: {}]
  %s8 = inlined_call_operand.hbm [shape: f32[1,128], index: 8, kind: input, shape index: {}]
  %s9 = inlined_call_operand.vmem [shape: f32[32,128], index: 9, kind: input, shape index: {}]
  %s10 = inlined_call_operand.hbm [shape: f32[32,128], index: 10, kind: input, shape index: {}]
  %s11 = inlined_call_operand.vmem [shape: f32[1,128], index: 11, kind: input, shape index: {}]
  %s12 = inlined_call_operand.vmem [shape: f32[1,32], index: 12, kind: input, shape index: {}]
  %s13 = inlined_call_operand.vmem [shape: f32[1,32], index: 13, kind: input, shape index: {}]
  %s14 = inlined_call_operand.vmem [shape: f32[32,16], index: 14, kind: input, shape index: {}]
  %s15 = inlined_call_operand.vmem [shape: f32[1,16], index: 15, kind: input, shape index: {}]
  %s16 = inlined_call_operand.hbm [shape: f32[8,8,16], index: 16, kind: output, shape index: {}]
  %s17 = sld [smem:[#allocation0]]
  $region110: #{tpu_custom_call.1} parent=0
    _
  %s19 = ssub.s32 1, %s17
  %s20 = scalar_select 0, %s19, %s17
  $region1: #{tpu_custom_call.1} parent=0
    #allocation2 [shape = 'u8[32768]{0}', space=vmem, size = 0x8000, scoped, tag = 'input window, operand 0, single buffered']
    #allocation3 [shape = 's32[1]{0}', space=sflag, size = 0x4, scoped, tag = 'scoped memory for tpu_custom_call.1']
    #allocation4 [shape = 's32[1]{0}', space=sflag, size = 0x4, scoped, tag = 'scoped memory for tpu_custom_call.1']
    #allocation5 [shape = 'u8[8192]{0}', space=vmem, size = 0x2000, scoped, tag = 'input window, operand 1, single buffered']
    #allocation6 [shape = 's32[1]{0}', space=sflag, size = 0x4, scoped, tag = 'scoped memory for tpu_custom_call.1']
    #allocation7 [shape = 'u8[512]{0}', space=vmem, size = 0x400, scoped, tag = 'input window, operand 3, single buffered']
    #allocation8 [shape = 'u8[16384]{0}', space=vmem, size = 0x4000, scoped, tag = 'input window, operand 4, single buffered']
    #allocation9 [shape = 's32[1]{0}', space=sflag, size = 0x4, scoped, tag = 'scoped memory for tpu_custom_call.1']
    #allocation10 [shape = 'u8[16384]{0}', space=vmem, size = 0x4000, scoped, tag = 'input window, operand 5, single buffered']
    #allocation11 [shape = 'u8[512]{0}', space=vmem, size = 0x400, scoped, tag = 'input window, operand 6, single buffered']
    #allocation12 [shape = 's32[1]{0}', space=sflag, size = 0x4, scoped, tag = 'scoped memory for tpu_custom_call.1']
    #allocation13 [shape = 'u8[16384]{0}', space=vmem, size = 0x4000, scoped, tag = 'input window, operand 7, single buffered']
    #allocation14 [shape = 'u8[512]{0}', space=vmem, size = 0x400, scoped, tag = 'input window, operand 8, single buffered']
    #allocation15 [shape = 's32[1]{0}', space=sflag, size = 0x4, scoped, tag = 'scoped memory for tpu_custom_call.1']
    #allocation16 [shape = 'u8[16384]{0}', space=vmem, size = 0x4000, scoped, tag = 'input window, operand 10, single buffered']
    #allocation17 [shape = 'u8[32768]{0}', space=vmem, size = 0x8000, scoped, tag = 'output window, operand 0, single buffered']
    %21 = vsyncpa [#allocation3], 0
    %22 = vsyncpa [#allocation6], 0
    %23 = vsyncpa [#allocation9], 0
    %24 = vsyncpa [#allocation12], 0
    %25 = vsyncpa [#allocation15], 0
    %26 = vsyncpa [#allocation4], 0
    // Predicated region
    $region2: #{tpu_custom_call.1} parent=1 // pred_check
      _
    $region3: #{tpu_custom_call.1} parent=1 // pred_check_branch
      %28 = sbr.rel (0) target = $region5
    $region4: #{tpu_custom_call.1} parent=1 // pred_region
      %s30 = ssub.s32 1024, 1024
      %31 = vsyncadd [#allocation3], %s30
      %s32 = sshll.u32 [#allocation2], 4
      %s33 = int_to_ptr.vmem [resolvable:$true] %s32
      %38 = dma.hbm_to_vmem [thread:$0]  %s0, 1024, %s33, [#allocation3], 128, 128, 8
    $region5: #{tpu_custom_call.1} parent=1 // pred_fallthru
      _
    // Predicated region
    $region6: #{tpu_custom_call.1} parent=1 // pred_check
      _
    $region7: #{tpu_custom_call.1} parent=1 // pred_check_branch
      %40 = sbr.rel (0) target = $region9
    $region8: #{tpu_custom_call.1} parent=1 // pred_region
      %s42 = ssub.s32 256, 256
      %43 = vsyncadd [#allocation6], %s42
      %s44 = sshll.u32 [#allocation5], 4
      %s45 = int_to_ptr.vmem [resolvable:$true] %s44
      %50 = dma.hbm_to_vmem [thread:$0]  %s1, 256, %s45, [#allocation6], 128, 128, 8
    $region9: #{tpu_custom_call.1} parent=1 // pred_fallthru
      _
    // Predicated region
    $region10: #{tpu_custom_call.1} parent=1 // pred_check
      _
    $region11: #{tpu_custom_call.1} parent=1 // pred_check_branch
      %52 = sbr.rel (0) target = $region13
    $region12: #{tpu_custom_call.1} parent=1 // pred_region
      _
    $region13: #{tpu_custom_call.1} parent=1 // pred_fallthru
      _
    // Predicated region
    $region14: #{tpu_custom_call.1} parent=1 // pred_check
      _
    $region15: #{tpu_custom_call.1} parent=1 // pred_check_branch
      %54 = sbr.rel (0) target = $region17
    $region16: #{tpu_custom_call.1} parent=1 // pred_region
      %s56 = ssub.s32 16, 16
      %57 = vsyncadd [#allocation6], %s56
      %s59 = sshll.u32 [#allocation7], 4
      %s60 = int_to_ptr.vmem [resolvable:$true] %s59
      %62 = dma.hbm_to_vmem [thread:$0]  %s3, 16, %s60, [#allocation6]
    $region17: #{tpu_custom_call.1} parent=1 // pred_fallthru
      _
    // Predicated region
    $region18: #{tpu_custom_call.1} parent=1 // pred_check
      _
    $region19: #{tpu_custom_call.1} parent=1 // pred_check_branch
      %64 = sbr.rel (0) target = $region21
    $region20: #{tpu_custom_call.1} parent=1 // pred_region
      %s66 = ssub.s32 512, 512
      %67 = vsyncadd [#allocation9], %s66
      %s68 = sshll.u32 [#allocation8], 4
      %s69 = int_to_ptr.vmem [resolvable:$true] %s68
      %74 = dma.hbm_to_vmem [thread:$0]  %s4, 512, %s69, [#allocation9], 128, 128, 8
    $region21: #{tpu_custom_call.1} parent=1 // pred_fallthru
      _
    // Predicated region
    $region22: #{tpu_custom_call.1} parent=1 // pred_check
      _
    $region23: #{tpu_custom_call.1} parent=1 // pred_check_branch
      %76 = sbr.rel (0) target = $region25
    $region24: #{tpu_custom_call.1} parent=1 // pred_region
      %s78 = ssub.s32 512, 512
      %79 = vsyncadd [#allocation9], %s78
      %s80 = sshll.u32 [#allocation10], 4
      %s81 = int_to_ptr.vmem [resolvable:$true] %s80
      %86 = dma.hbm_to_vmem [thread:$0]  %s5, 512, %s81, [#allocation9], 128, 128, 8
    $region25: #{tpu_custom_call.1} parent=1 // pred_fallthru
      _
    // Predicated region
    $region26: #{tpu_custom_call.1} parent=1 // pred_check
      _
    $region27: #{tpu_custom_call.1} parent=1 // pred_check_branch
      %88 = sbr.rel (0) target = $region29
    $region28: #{tpu_custom_call.1} parent=1 // pred_region
      %s90 = ssub.s32 16, 16
      %91 = vsyncadd [#allocation12], %s90
      %s93 = sshll.u32 [#allocation11], 4
      %s94 = int_to_ptr.vmem [resolvable:$true] %s93
      %96 = dma.hbm_to_vmem [thread:$0]  %s6, 16, %s94, [#allocation12]
    $region29: #{tpu_custom_call.1} parent=1 // pred_fallthru
      _
    // Predicated region
    $region30: #{tpu_custom_call.1} parent=1 // pred_check
      _
    $region31: #{tpu_custom_call.1} parent=1 // pred_check_branch
      %98 = sbr.rel (0) target = $region33
    $region32: #{tpu_custom_call.1} parent=1 // pred_region
      %s100 = ssub.s32 512, 512
      %101 = vsyncadd [#allocation12], %s100
      %s102 = sshll.u32 [#allocation13], 4
      %s103 = int_to_ptr.vmem [resolvable:$true] %s102
      %108 = dma.hbm_to_vmem [thread:$0]  %s7, 512, %s103, [#allocation12], 128, 128, 8
    $region33: #{tpu_custom_call.1} parent=1 // pred_fallthru
      _
    // Predicated region
    $region34: #{tpu_custom_call.1} parent=1 // pred_check
      _
    $region35: #{tpu_custom_call.1} parent=1 // pred_check_branch
      %110 = sbr.rel (0) target = $region37
    $region36: #{tpu_custom_call.1} parent=1 // pred_region
      %s112 = ssub.s32 16, 16
      %113 = vsyncadd [#allocation15], %s112
      %s115 = sshll.u32 [#allocation14], 4
      %s116 = int_to_ptr.vmem [resolvable:$true] %s115
      %118 = dma.hbm_to_vmem [thread:$0]  %s8, 16, %s116, [#allocation15]
    $region37: #{tpu_custom_call.1} parent=1 // pred_fallthru
      _
    // Predicated region
    $region38: #{tpu_custom_call.1} parent=1 // pred_check
      _
    $region39: #{tpu_custom_call.1} parent=1 // pred_check_branch
      %120 = sbr.rel (0) target = $region41
    $region40: #{tpu_custom_call.1} parent=1 // pred_region
      _
    $region41: #{tpu_custom_call.1} parent=1 // pred_fallthru
      _
    // Predicated region
    $region42: #{tpu_custom_call.1} parent=1 // pred_check
      _
    $region43: #{tpu_custom_call.1} parent=1 // pred_check_branch
      %122 = sbr.rel (0) target = $region45
    $region44: #{tpu_custom_call.1} parent=1 // pred_region
      %s124 = ssub.s32 512, 512
      %125 = vsyncadd [#allocation15], %s124
      %s126 = sshll.u32 [#allocation16], 4
      %s127 = int_to_ptr.vmem [resolvable:$true] %s126
      %132 = dma.hbm_to_vmem [thread:$0]  %s10, 512, %s127, [#allocation15], 128, 128, 8
    $region45: #{tpu_custom_call.1} parent=1 // pred_fallthru
      _
    // Predicated region
    $region46: #{tpu_custom_call.1} parent=1 // pred_check
      _
    $region47: #{tpu_custom_call.1} parent=1 // pred_check_branch
      %134 = sbr.rel (0) target = $region49
    $region48: #{tpu_custom_call.1} parent=1 // pred_region
      _
    $region49: #{tpu_custom_call.1} parent=1 // pred_fallthru
      _
    // Predicated region
    $region50: #{tpu_custom_call.1} parent=1 // pred_check
      _
    $region51: #{tpu_custom_call.1} parent=1 // pred_check_branch
      %136 = sbr.rel (0) target = $region53
    $region52: #{tpu_custom_call.1} parent=1 // pred_region
      _
    $region53: #{tpu_custom_call.1} parent=1 // pred_fallthru
      _
    // Predicated region
    $region54: #{tpu_custom_call.1} parent=1 // pred_check
      _
    $region55: #{tpu_custom_call.1} parent=1 // pred_check_branch
      %138 = sbr.rel (0) target = $region57
    $region56: #{tpu_custom_call.1} parent=1 // pred_region
      _
    $region57: #{tpu_custom_call.1} parent=1 // pred_fallthru
      _
    // Predicated region
    $region58: #{tpu_custom_call.1} parent=1 // pred_check
      _
    $region59: #{tpu_custom_call.1} parent=1 // pred_check_branch
      %140 = sbr.rel (0) target = $region61
    $region60: #{tpu_custom_call.1} parent=1 // pred_region
      _
    $region61: #{tpu_custom_call.1} parent=1 // pred_fallthru
      _
    // Predicated region
    $region62: #{tpu_custom_call.1} parent=1 // pred_check
      _
    $region63: #{tpu_custom_call.1} parent=1 // pred_check_branch
      %142 = sbr.rel (0) target = $region65
    $region64: #{tpu_custom_call.1} parent=1 // pred_region
      _
    $region65: #{tpu_custom_call.1} parent=1 // pred_fallthru
      _
    // Predicated region
    $region66: #{tpu_custom_call.1} parent=1 // pred_check
      _
    $region67: #{tpu_custom_call.1} parent=1 // pred_check_branch
      %144 = sbr.rel (0) target = $region69
    $region68: #{tpu_custom_call.1} parent=1 // pred_region
      %145 = dma.done [#allocation3], 1024
    $region69: #{tpu_custom_call.1} parent=1 // pred_fallthru
      _
    // Predicated region
    $region70: #{tpu_custom_call.1} parent=1 // pred_check
      _
    $region71: #{tpu_custom_call.1} parent=1 // pred_check_branch
      %147 = sbr.rel (0) target = $region73
    $region72: #{tpu_custom_call.1} parent=1 // pred_region
      %148 = dma.done [#allocation6], 256
    $region73: #{tpu_custom_call.1} parent=1 // pred_fallthru
      _
    // Predicated region
    $region74: #{tpu_custom_call.1} parent=1 // pred_check
      _
    $region75: #{tpu_custom_call.1} parent=1 // pred_check_branch
      %150 = sbr.rel (0) target = $region77
    $region76: #{tpu_custom_call.1} parent=1 // pred_region
      %151 = dma.done [#allocation6], 16
    $region77: #{tpu_custom_call.1} parent=1 // pred_fallthru
      _
    // Predicated region
    $region78: #{tpu_custom_call.1} parent=1 // pred_check
      _
    $region79: #{tpu_custom_call.1} parent=1 // pred_check_branch
      %153 = sbr.rel (0) target = $region81
    $region80: #{tpu_custom_call.1} parent=1 // pred_region
      %154 = dma.done [#allocation9], 512
    $region81: #{tpu_custom_call.1} parent=1 // pred_fallthru
      _
    // Predicated region
    $region82: #{tpu_custom_call.1} parent=1 // pred_check
      _
    $region83: #{tpu_custom_call.1} parent=1 // pred_check_branch
      %156 = sbr.rel (0) target = $region85
    $region84: #{tpu_custom_call.1} parent=1 // pred_region
      %157 = dma.done [#allocation9], 512
    $region85: #{tpu_custom_call.1} parent=1 // pred_fallthru
      _
    // Predicated region
    $region86: #{tpu_custom_call.1} parent=1 // pred_check
      _
    $region87: #{tpu_custom_call.1} parent=1 // pred_check_branch
      %159 = sbr.rel (0) target = $region89
    $region88: #{tpu_custom_call.1} parent=1 // pred_region
      %160 = dma.done [#allocation12], 16
    $region89: #{tpu_custom_call.1} parent=1 // pred_fallthru
      _
    // Predicated region
    $region90: #{tpu_custom_call.1} parent=1 // pred_check
      _
    $region91: #{tpu_custom_call.1} parent=1 // pred_check_branch
      %162 = sbr.rel (0) target = $region93
    $region92: #{tpu_custom_call.1} parent=1 // pred_region
      %163 = dma.done [#allocation12], 512
    $region93: #{tpu_custom_call.1} parent=1 // pred_fallthru
      _
    // Predicated region
    $region94: #{tpu_custom_call.1} parent=1 // pred_check
      _
    $region95: #{tpu_custom_call.1} parent=1 // pred_check_branch
      %165 = sbr.rel (0) target = $region97
    $region96: #{tpu_custom_call.1} parent=1 // pred_region
      %166 = dma.done [#allocation15], 16
    $region97: #{tpu_custom_call.1} parent=1 // pred_fallthru
      _
    // Predicated region
    $region98: #{tpu_custom_call.1} parent=1 // pred_check
      _
    $region99: #{tpu_custom_call.1} parent=1 // pred_check_branch
      %168 = sbr.rel (0) target = $region101
    $region100: #{tpu_custom_call.1} parent=1 // pred_region
      %169 = dma.done [#allocation15], 512
    $region101: #{tpu_custom_call.1} parent=1 // pred_fallthru
      _
    %v170 = vld [vmem:[#allocation2] sm:$0xff]
    %v171 = vld [vmem:[#allocation2 + $0x8] sm:$0xff]
    %v172 = vld [vmem:[#allocation2 + $0x10] sm:$0xff]
    %v173 = vld [vmem:[#allocation2 + $0x18] sm:$0xff]
    %v174 = vld [vmem:[#allocation2 + $0x20] sm:$0xff]
    %v175 = vld [vmem:[#allocation2 + $0x28] sm:$0xff]
    %v176 = vld [vmem:[#allocation2 + $0x30] sm:$0xff]
    %v177 = vld [vmem:[#allocation2 + $0x38] sm:$0xff]
    %v178 = vld [vmem:[#allocation5] sm:$0xff]
    %v179 = vld [vmem:[#allocation5 + $0x8] sm:$0xff]
    %v180 = vld [vmem:[#allocation7] sm:$0x1]
    %v182 = vlaneseq
    %v183 = vshrl.u32 %v182, 7
    %v184 = vsub.s32 0, %v183
    %v185 = vrot.slane %v180, %v184
    %vm187 = vcmask 130048
    %v189 = vsel %vm187, %v170, 0
    %v192 = vsel %vm187, %v171, 0
    %v195 = vsel %vm187, %v172, 0
    %v198 = vsel %vm187, %v173, 0
    %v201 = vsel %vm187, %v174, 0
    %v204 = vsel %vm187, %v175, 0
    %v207 = vsel %vm187, %v176, 0
    %v210 = vsel %vm187, %v177, 0
    %212 = vmatprep.subr.mxu0 0.0
    %213 = vmatpush1.msra.mxu0 0.0
    %214 = vmatprep.subr.mxu0 0.0
    %215 = vmatpush1.msra.mxu0 0.0
    %216 = vmatprep.subr.mxu0 0.0
    %217 = vmatpush1.msra.mxu0 0.0
    %218 = vmatprep.subr.mxu0 0.0
    %219 = vmatpush1.msra.mxu0 0.0
    %220 = vmatprep.subr.mxu0 0.0
    %221 = vmatpush1.msra.mxu0 0.0
    %222 = vmatprep.subr.mxu0 0.0
    %223 = vmatpush1.msra.mxu0 0.0
    %224 = vmatprep.subr.mxu0 0.0
    %225 = vmatpush1.msra.mxu0 0.0
    %226 = vmatprep.subr.mxu0 0.0
    %227 = vmatpush1.msra.mxu0 0.0
    %228 = vmatprep.subr.mxu0 0.0
    %229 = vmatpush1.msra.mxu0 0.0
    %230 = vmatprep.subr.mxu0 0.0
    %231 = vmatpush1.msra.mxu0 0.0
    %232 = vmatprep.subr.mxu0 0.0
    %233 = vmatpush1.msra.mxu0 0.0
    %234 = vmatprep.subr.mxu0 0.0
    %235 = vmatpush1.msra.mxu0 0.0
    %236 = vmatprep.subr.mxu0 0.0
    %237 = vmatpush1.msra.mxu0 0.0
    %238 = vmatprep.subr.mxu0 0.0
    %239 = vmatpush1.msra.mxu0 0.0
    %240 = vmatprep.subr.mxu0 0.0
    %241 = vmatpush1.msra.mxu0 %v179
    %242 = vmatprep.subr.mxu0 0.0
    %243 = vmatpush1.msra.mxu0 %v178
    %244 = vmatprep.subr.mxu0 0.0
    %245 = vmatpush2.msra.mxu0 0.0
    %246 = vmatprep.subr.mxu0 0.0
    %247 = vmatpush2.msra.mxu0 0.0
    %248 = vmatprep.subr.mxu0 0.0
    %249 = vmatpush2.msra.mxu0 0.0
    %250 = vmatprep.subr.mxu0 0.0
    %251 = vmatpush2.msra.mxu0 0.0
    %252 = vmatprep.subr.mxu0 0.0
    %253 = vmatpush2.msra.mxu0 0.0
    %254 = vmatprep.subr.mxu0 0.0
    %255 = vmatpush2.msra.mxu0 0.0
    %256 = vmatprep.subr.mxu0 0.0
    %257 = vmatpush2.msra.mxu0 0.0
    %258 = vmatprep.subr.mxu0 0.0
    %259 = vmatpush2.msra.mxu0 0.0
    %260 = vmatprep.subr.mxu0 0.0
    %261 = vmatpush2.msra.mxu0 0.0
    %262 = vmatprep.subr.mxu0 0.0
    %263 = vmatpush2.msra.mxu0 0.0
    %264 = vmatprep.subr.mxu0 0.0
    %265 = vmatpush2.msra.mxu0 0.0
    %266 = vmatprep.subr.mxu0 0.0
    %267 = vmatpush2.msra.mxu0 0.0
    %268 = vmatprep.subr.mxu0 0.0
    %269 = vmatpush2.msra.mxu0 0.0
    %270 = vmatprep.subr.mxu0 0.0
    %271 = vmatpush2.msra.mxu0 0.0
    %272 = vmatprep.subr.mxu0 0.0
    %273 = vmatpush2.msra.mxu0 0.0
    %274 = vmatprep.subr.mxu0 0.0
    %275 = vmatpush2.msra.mxu0 0.0
    %276 = vmatprep.mubr.f32.mxu0 0.0
    %277 = vmatmul.mubr.f32.gmra.mxu0 %v189
    %v278 = vpop.f32.mrf.mxu0
    %v279 = vadd.f32 %v185, %v278
    %v280 = vpop.f32.mrf.mxu0
    %281 = vmatprep.mubr.f32.mxu0 0.0
    %282 = vmatmul.mubr.f32.gmra.mxu0 %v192
    %v283 = vpop.f32.mrf.mxu0
    %v284 = vadd.f32 %v185, %v283
    %v285 = vpop.f32.mrf.mxu0
    %286 = vmatprep.mubr.f32.mxu0 0.0
    %287 = vmatmul.mubr.f32.gmra.mxu0 %v195
    %v288 = vpop.f32.mrf.mxu0
    %v289 = vadd.f32 %v185, %v288
    %v290 = vpop.f32.mrf.mxu0
    %291 = vmatprep.mubr.f32.mxu0 0.0
    %292 = vmatmul.mubr.f32.gmra.mxu0 %v198
    %v293 = vpop.f32.mrf.mxu0
    %v294 = vadd.f32 %v185, %v293
    %v295 = vpop.f32.mrf.mxu0
    %296 = vmatprep.mubr.f32.mxu0 0.0
    %297 = vmatmul.mubr.f32.gmra.mxu0 %v201
    %v298 = vpop.f32.mrf.mxu0
    %v299 = vadd.f32 %v185, %v298
    %v300 = vpop.f32.mrf.mxu0
    %301 = vmatprep.mubr.f32.mxu0 0.0
    %302 = vmatmul.mubr.f32.gmra.mxu0 %v204
    %v303 = vpop.f32.mrf.mxu0
    %v304 = vadd.f32 %v185, %v303
    %v305 = vpop.f32.mrf.mxu0
    %306 = vmatprep.mubr.f32.mxu0 0.0
    %307 = vmatmul.mubr.f32.gmra.mxu0 %v207
    %v308 = vpop.f32.mrf.mxu0
    %v309 = vadd.f32 %v185, %v308
    %v310 = vpop.f32.mrf.mxu0
    %311 = vmatprep.mubr.f32.mxu0 0.0
    %312 = vmatmul.mubr.f32.gmra.mxu0 %v210
    %v313 = vpop.f32.mrf.mxu0
    %v314 = vadd.f32 %v185, %v313
    %v315 = vpop.f32.mrf.mxu0
    %316 = vdwg.mxu0
    %v317 = vld [vmem:[%s2] sm:$0xff]
    %v318 = vld [vmem:[%s2 + $0x8] sm:$0xff]
    %v319 = vld [vmem:[%s2 + $0x10] sm:$0xff]
    %v320 = vld [vmem:[%s2 + $0x18] sm:$0xff]
    %vm321 = vcmask 261120
    %v323 = vsel %vm321, 0.0, 0
    %325 = vmatprep.subr.mxu0 0.0
    %326 = vmatpush1.msra.mxu0 0.0
    %327 = vmatprep.subr.mxu0 0.0
    %328 = vmatpush1.msra.mxu0 0.0
    %329 = vmatprep.subr.mxu0 0.0
    %330 = vmatpush1.msra.mxu0 0.0
    %331 = vmatprep.subr.mxu0 0.0
    %332 = vmatpush1.msra.mxu0 0.0
    %333 = vmatprep.subr.mxu0 0.0
    %334 = vmatpush1.msra.mxu0 0.0
    %335 = vmatprep.subr.mxu0 0.0
    %336 = vmatpush1.msra.mxu0 0.0
    %337 = vmatprep.subr.mxu0 0.0
    %338 = vmatpush1.msra.mxu0 0.0
    %339 = vmatprep.subr.mxu0 0.0
    %340 = vmatpush1.msra.mxu0 0.0
    %341 = vmatprep.subr.mxu0 0.0
    %342 = vmatpush1.msra.mxu0 0.0
    %343 = vmatprep.subr.mxu0 0.0
    %344 = vmatpush1.msra.mxu0 0.0
    %345 = vmatprep.subr.mxu0 0.0
    %346 = vmatpush1.msra.mxu0 0.0
    %347 = vmatprep.subr.mxu0 0.0
    %348 = vmatpush1.msra.mxu0 0.0
    %349 = vmatprep.subr.mxu0 0.0
    %350 = vmatpush1.msra.mxu0 %v320
    %351 = vmatprep.subr.mxu0 0.0
    %352 = vmatpush1.msra.mxu0 %v319
    %353 = vmatprep.subr.mxu0 0.0
    %354 = vmatpush1.msra.mxu0 %v318
    %355 = vmatprep.subr.mxu0 0.0
    %356 = vmatpush1.msra.mxu0 %v317
    %357 = vmatprep.subr.mxu0 0.0
    %358 = vmatpush2.msra.mxu0 0.0
    %359 = vmatprep.subr.mxu0 0.0
    %360 = vmatpush2.msra.mxu0 0.0
    %361 = vmatprep.subr.mxu0 0.0
    %362 = vmatpush2.msra.mxu0 0.0
    %363 = vmatprep.subr.mxu0 0.0
    %364 = vmatpush2.msra.mxu0 0.0
    %365 = vmatprep.subr.mxu0 0.0
    %366 = vmatpush2.msra.mxu0 0.0
    %367 = vmatprep.subr.mxu0 0.0
    %368 = vmatpush2.msra.mxu0 0.0
    %369 = vmatprep.subr.mxu0 0.0
    %370 = vmatpush2.msra.mxu0 0.0
    %371 = vmatprep.subr.mxu0 0.0
    %372 = vmatpush2.msra.mxu0 0.0
    %373 = vmatprep.subr.mxu0 0.0
    %374 = vmatpush2.msra.mxu0 0.0
    %375 = vmatprep.subr.mxu0 0.0
    %376 = vmatpush2.msra.mxu0 0.0
    %377 = vmatprep.subr.mxu0 0.0
    %378 = vmatpush2.msra.mxu0 0.0
    %379 = vmatprep.subr.mxu0 0.0
    %380 = vmatpush2.msra.mxu0 0.0
    %381 = vmatprep.subr.mxu0 0.0
    %382 = vmatpush2.msra.mxu0 0.0
    %383 = vmatprep.subr.mxu0 0.0
    %384 = vmatpush2.msra.mxu0 0.0
    %385 = vmatprep.subr.mxu0 0.0
    %386 = vmatpush2.msra.mxu0 0.0
    %387 = vmatprep.subr.mxu0 0.0
    %388 = vmatpush2.msra.mxu0 0.0
    %389 = vmatprep.mubr.f32.mxu0 0.0
    %390 = vmatmul.mubr.f32.gmra.mxu0 %v323
    %v391 = vpop.f32.mrf.mxu0
    %v392 = vadd.f32 0.0, %v391
    %v393 = vpop.f32.mrf.mxu0
    %394 = vdwg.mxu0
    %v395 = vadd.f32 %v279, %v392
    %v396 = vxor.u32 %v395, 2147483648
    %v397 = vmul.f32 %v396, 1.442695
    %v398 = vpow.pop %v397
    %v399 = vadd.f32 %v398, 1.0
    %v400 = vrcp.pop %v399
    %v401 = vmul.f32 1.0, %v400
    %v402 = vmul.f32 %v401, 2.0
    %v403 = vsub.f32 %v402, 1.0
    %v404 = vmul.f32 %v401, 0.0
    %406 = vrot.lane.b32.xlu0 %v403, 64
    %v407 = vpop.permute.xlu0 %406
    %v409 = vmul.f32 %v401, %v407
    %411 = vrot.lane.b32.xlu0 %v409, 32
    %v412 = vpop.permute.xlu0 %411
    %v414 = vadd.f32 %v404, %v412
    %v415 = vtanh.pop %v414
    %417 = vrot.lane.b32.xlu0 %v415, 64
    %v418 = vpop.permute.xlu0 %417
    %v420 = vmul.f32 %v401, %v418
    %422 = vrot.lane.b32.xlu0 %v420, 32
    %v423 = vpop.permute.xlu0 %422
    %v424 = vsel %vm321, %v423, 0
    %426 = vmatprep.subr.mxu0 0.0
    %427 = vmatpush1.msra.mxu0 0.0
    %428 = vmatprep.subr.mxu0 0.0
    %429 = vmatpush1.msra.mxu0 0.0
    %430 = vmatprep.subr.mxu0 0.0
    %431 = vmatpush1.msra.mxu0 0.0
    %432 = vmatprep.subr.mxu0 0.0
    %433 = vmatpush1.msra.mxu0 0.0
    %434 = vmatprep.subr.mxu0 0.0
    %435 = vmatpush1.msra.mxu0 0.0
    %436 = vmatprep.subr.mxu0 0.0
    %437 = vmatpush1.msra.mxu0 0.0
    %438 = vmatprep.subr.mxu0 0.0
    %439 = vmatpush1.msra.mxu0 0.0
    %440 = vmatprep.subr.mxu0 0.0
    %441 = vmatpush1.msra.mxu0 0.0
    %442 = vmatprep.subr.mxu0 0.0
    %443 = vmatpush1.msra.mxu0 0.0
    %444 = vmatprep.subr.mxu0 0.0
    %445 = vmatpush1.msra.mxu0 0.0
    %446 = vmatprep.subr.mxu0 0.0
    %447 = vmatpush1.msra.mxu0 0.0
    %448 = vmatprep.subr.mxu0 0.0
    %449 = vmatpush1.msra.mxu0 0.0
    %450 = vmatprep.subr.mxu0 0.0
    %451 = vmatpush1.msra.mxu0 %v320
    %452 = vmatprep.subr.mxu0 0.0
    %453 = vmatpush1.msra.mxu0 %v319
    %454 = vmatprep.subr.mxu0 0.0
    %455 = vmatpush1.msra.mxu0 %v318
    %456 = vmatprep.subr.mxu0 0.0
    %457 = vmatpush1.msra.mxu0 %v317
    %458 = vmatprep.subr.mxu0 0.0
    %459 = vmatpush2.msra.mxu0 0.0
    %460 = vmatprep.subr.mxu0 0.0
    %461 = vmatpush2.msra.mxu0 0.0
    %462 = vmatprep.subr.mxu0 0.0
    %463 = vmatpush2.msra.mxu0 0.0
    %464 = vmatprep.subr.mxu0 0.0
    %465 = vmatpush2.msra.mxu0 0.0
    %466 = vmatprep.subr.mxu0 0.0
    %467 = vmatpush2.msra.mxu0 0.0
    %468 = vmatprep.subr.mxu0 0.0
    %469 = vmatpush2.msra.mxu0 0.0
    %470 = vmatprep.subr.mxu0 0.0
    %471 = vmatpush2.msra.mxu0 0.0
    %472 = vmatprep.subr.mxu0 0.0
    %473 = vmatpush2.msra.mxu0 0.0
    %474 = vmatprep.subr.mxu0 0.0
    %475 = vmatpush2.msra.mxu0 0.0
    %476 = vmatprep.subr.mxu0 0.0
    %477 = vmatpush2.msra.mxu0 0.0
    %478 = vmatprep.subr.mxu0 0.0
    %479 = vmatpush2.msra.mxu0 0.0
    %480 = vmatprep.subr.mxu0 0.0
    %481 = vmatpush2.msra.mxu0 0.0
    %482 = vmatprep.subr.mxu0 0.0
    %483 = vmatpush2.msra.mxu0 0.0
    %484 = vmatprep.subr.mxu0 0.0
    %485 = vmatpush2.msra.mxu0 0.0
    %486 = vmatprep.subr.mxu0 0.0
    %487 = vmatpush2.msra.mxu0 0.0
    %488 = vmatprep.subr.mxu0 0.0
    %489 = vmatpush2.msra.mxu0 0.0
    %490 = vmatprep.mubr.f32.mxu0 0.0
    %491 = vmatmul.mubr.f32.gmra.mxu0 %v424
    %v492 = vpop.f32.mrf.mxu0
    %v493 = vadd.f32 0.0, %v492
    %v494 = vpop.f32.mrf.mxu0
    %495 = vdwg.mxu0
    %v496 = vadd.f32 %v284, %v493
    %v497 = vxor.u32 %v496, 2147483648
    %v498 = vmul.f32 %v497, 1.442695
    %v499 = vpow.pop %v498
    %v500 = vadd.f32 %v499, 1.0
    %v501 = vrcp.pop %v500
    %v502 = vmul.f32 1.0, %v501
    %v503 = vmul.f32 %v502, 2.0
    %v504 = vsub.f32 %v503, 1.0
    %v505 = vmul.f32 %v502, %v414
    %507 = vrot.lane.b32.xlu0 %v504, 64
    %v508 = vpop.permute.xlu0 %507
    %v510 = vmul.f32 %v502, %v508
    %512 = vrot.lane.b32.xlu0 %v510, 32
    %v513 = vpop.permute.xlu0 %512
    %v515 = vadd.f32 %v505, %v513
    %v516 = vtanh.pop %v515
    %518 = vrot.lane.b32.xlu0 %v516, 64
    %v519 = vpop.permute.xlu0 %518
    %v521 = vmul.f32 %v502, %v519
    %523 = vrot.lane.b32.xlu0 %v521, 32
    %v524 = vpop.permute.xlu0 %523
    %v525 = vsel %vm321, %v524, 0
    %527 = vmatprep.subr.mxu0 0.0
    %528 = vmatpush1.msra.mxu0 0.0
    %529 = vmatprep.subr.mxu0 0.0
    %530 = vmatpush1.msra.mxu0 0.0
    %531 = vmatprep.subr.mxu0 0.0
    %532 = vmatpush1.msra.mxu0 0.0
    %533 = vmatprep.subr.mxu0 0.0
    %534 = vmatpush1.msra.mxu0 0.0
    %535 = vmatprep.subr.mxu0 0.0
    %536 = vmatpush1.msra.mxu0 0.0
    %537 = vmatprep.subr.mxu0 0.0
    %538 = vmatpush1.msra.mxu0 0.0
    %539 = vmatprep.subr.mxu0 0.0
    %540 = vmatpush1.msra.mxu0 0.0
    %541 = vmatprep.subr.mxu0 0.0
    %542 = vmatpush1.msra.mxu0 0.0
    %543 = vmatprep.subr.mxu0 0.0
    %544 = vmatpush1.msra.mxu0 0.0
    %545 = vmatprep.subr.mxu0 0.0
    %546 = vmatpush1.msra.mxu0 0.0
    %547 = vmatprep.subr.mxu0 0.0
    %548 = vmatpush1.msra.mxu0 0.0
    %549 = vmatprep.subr.mxu0 0.0
    %550 = vmatpush1.msra.mxu0 0.0
    %551 = vmatprep.subr.mxu0 0.0
    %552 = vmatpush1.msra.mxu0 %v320
    %553 = vmatprep.subr.mxu0 0.0
    %554 = vmatpush1.msra.mxu0 %v319
    %555 = vmatprep.subr.mxu0 0.0
    %556 = vmatpush1.msra.mxu0 %v318
    %557 = vmatprep.subr.mxu0 0.0
    %558 = vmatpush1.msra.mxu0 %v317
    %559 = vmatprep.subr.mxu0 0.0
    %560 = vmatpush2.msra.mxu0 0.0
    %561 = vmatprep.subr.mxu0 0.0
    %562 = vmatpush2.msra.mxu0 0.0
    %563 = vmatprep.subr.mxu0 0.0
    %564 = vmatpush2.msra.mxu0 0.0
    %565 = vmatprep.subr.mxu0 0.0
    %566 = vmatpush2.msra.mxu0 0.0
    %567 = vmatprep.subr.mxu0 0.0
    %568 = vmatpush2.msra.mxu0 0.0
    %569 = vmatprep.subr.mxu0 0.0
    %570 = vmatpush2.msra.mxu0 0.0
    %571 = vmatprep.subr.mxu0 0.0
    %572 = vmatpush2.msra.mxu0 0.0
    %573 = vmatprep.subr.mxu0 0.0
    %574 = vmatpush2.msra.mxu0 0.0
    %575 = vmatprep.subr.mxu0 0.0
    %576 = vmatpush2.msra.mxu0 0.0
    %577 = vmatprep.subr.mxu0 0.0
    %578 = vmatpush2.msra.mxu0 0.0
    %579 = vmatprep.subr.mxu0 0.0
    %580 = vmatpush2.msra.mxu0 0.0
    %581 = vmatprep.subr.mxu0 0.0
    %582 = vmatpush2.msra.mxu0 0.0
    %583 = vmatprep.subr.mxu0 0.0
    %584 = vmatpush2.msra.mxu0 0.0
    %585 = vmatprep.subr.mxu0 0.0
    %586 = vmatpush2.msra.mxu0 0.0
    %587 = vmatprep.subr.mxu0 0.0
    %588 = vmatpush2.msra.mxu0 0.0
    %589 = vmatprep.subr.mxu0 0.0
    %590 = vmatpush2.msra.mxu0 0.0
    %591 = vmatprep.mubr.f32.mxu0 0.0
    %592 = vmatmul.mubr.f32.gmra.mxu0 %v525
    %v593 = vpop.f32.mrf.mxu0
    %v594 = vadd.f32 0.0, %v593
    %v595 = vpop.f32.mrf.mxu0
    %596 = vdwg.mxu0
    %v597 = vadd.f32 %v289, %v594
    %v598 = vxor.u32 %v597, 2147483648
    %v599 = vmul.f32 %v598, 1.442695
    %v600 = vpow.pop %v599
    %v601 = vadd.f32 %v600, 1.0
    %v602 = vrcp.pop %v601
    %v603 = vmul.f32 1.0, %v602
    %v604 = vmul.f32 %v603, 2.0
    %v605 = vsub.f32 %v604, 1.0
    %v606 = vmul.f32 %v603, %v515
    %608 = vrot.lane.b32.xlu0 %v605, 64
    %v609 = vpop.permute.xlu0 %608
    %v611 = vmul.f32 %v603, %v609
    %613 = vrot.lane.b32.xlu0 %v611, 32
    %v614 = vpop.permute.xlu0 %613
    %v616 = vadd.f32 %v606, %v614
    %v617 = vtanh.pop %v616
    %619 = vrot.lane.b32.xlu0 %v617, 64
    %v620 = vpop.permute.xlu0 %619
    %v622 = vmul.f32 %v603, %v620
    %624 = vrot.lane.b32.xlu0 %v622, 32
    %v625 = vpop.permute.xlu0 %624
    %v626 = vsel %vm321, %v625, 0
    %628 = vmatprep.subr.mxu0 0.0
    %629 = vmatpush1.msra.mxu0 0.0
    %630 = vmatprep.subr.mxu0 0.0
    %631 = vmatpush1.msra.mxu0 0.0
    %632 = vmatprep.subr.mxu0 0.0
    %633 = vmatpush1.msra.mxu0 0.0
    %634 = vmatprep.subr.mxu0 0.0
    %635 = vmatpush1.msra.mxu0 0.0
    %636 = vmatprep.subr.mxu0 0.0
    %637 = vmatpush1.msra.mxu0 0.0
    %638 = vmatprep.subr.mxu0 0.0
    %639 = vmatpush1.msra.mxu0 0.0
    %640 = vmatprep.subr.mxu0 0.0
    %641 = vmatpush1.msra.mxu0 0.0
    %642 = vmatprep.subr.mxu0 0.0
    %643 = vmatpush1.msra.mxu0 0.0
    %644 = vmatprep.subr.mxu0 0.0
    %645 = vmatpush1.msra.mxu0 0.0
    %646 = vmatprep.subr.mxu0 0.0
    %647 = vmatpush1.msra.mxu0 0.0
    %648 = vmatprep.subr.mxu0 0.0
    %649 = vmatpush1.msra.mxu0 0.0
    %650 = vmatprep.subr.mxu0 0.0
    %651 = vmatpush1.msra.mxu0 0.0
    %652 = vmatprep.subr.mxu0 0.0
    %653 = vmatpush1.msra.mxu0 %v320
    %654 = vmatprep.subr.mxu0 0.0
    %655 = vmatpush1.msra.mxu0 %v319
    %656 = vmatprep.subr.mxu0 0.0
    %657 = vmatpush1.msra.mxu0 %v318
    %658 = vmatprep.subr.mxu0 0.0
    %659 = vmatpush1.msra.mxu0 %v317
    %660 = vmatprep.subr.mxu0 0.0
    %661 = vmatpush2.msra.mxu0 0.0
    %662 = vmatprep.subr.mxu0 0.0
    %663 = vmatpush2.msra.mxu0 0.0
    %664 = vmatprep.subr.mxu0 0.0
    %665 = vmatpush2.msra.mxu0 0.0
    %666 = vmatprep.subr.mxu0 0.0
    %667 = vmatpush2.msra.mxu0 0.0
    %668 = vmatprep.subr.mxu0 0.0
    %669 = vmatpush2.msra.mxu0 0.0
    %670 = vmatprep.subr.mxu0 0.0
    %671 = vmatpush2.msra.mxu0 0.0
    %672 = vmatprep.subr.mxu0 0.0
    %673 = vmatpush2.msra.mxu0 0.0
    %674 = vmatprep.subr.mxu0 0.0
    %675 = vmatpush2.msra.mxu0 0.0
    %676 = vmatprep.subr.mxu0 0.0
    %677 = vmatpush2.msra.mxu0 0.0
    %678 = vmatprep.subr.mxu0 0.0
    %679 = vmatpush2.msra.mxu0 0.0
    %680 = vmatprep.subr.mxu0 0.0
    %681 = vmatpush2.msra.mxu0 0.0
    %682 = vmatprep.subr.mxu0 0.0
    %683 = vmatpush2.msra.mxu0 0.0
    %684 = vmatprep.subr.mxu0 0.0
    %685 = vmatpush2.msra.mxu0 0.0
    %686 = vmatprep.subr.mxu0 0.0
    %687 = vmatpush2.msra.mxu0 0.0
    %688 = vmatprep.subr.mxu0 0.0
    %689 = vmatpush2.msra.mxu0 0.0
    %690 = vmatprep.subr.mxu0 0.0
    %691 = vmatpush2.msra.mxu0 0.0
    %692 = vmatprep.mubr.f32.mxu0 0.0
    %693 = vmatmul.mubr.f32.gmra.mxu0 %v626
    %v694 = vpop.f32.mrf.mxu0
    %v695 = vadd.f32 0.0, %v694
    %v696 = vpop.f32.mrf.mxu0
    %697 = vdwg.mxu0
    %v698 = vadd.f32 %v294, %v695
    %v699 = vxor.u32 %v698, 2147483648
    %v700 = vmul.f32 %v699, 1.442695
    %v701 = vpow.pop %v700
    %v702 = vadd.f32 %v701, 1.0
    %v703 = vrcp.pop %v702
    %v704 = vmul.f32 1.0, %v703
    %v705 = vmul.f32 %v704, 2.0
    %v706 = vsub.f32 %v705, 1.0
    %v707 = vmul.f32 %v704, %v616
    %709 = vrot.lane.b32.xlu0 %v706, 64
    %v710 = vpop.permute.xlu0 %709
    %v712 = vmul.f32 %v704, %v710
    %714 = vrot.lane.b32.xlu0 %v712, 32
    %v715 = vpop.permute.xlu0 %714
    %v717 = vadd.f32 %v707, %v715
    %v718 = vtanh.pop %v717
    %720 = vrot.lane.b32.xlu0 %v718, 64
    %v721 = vpop.permute.xlu0 %720
    %v723 = vmul.f32 %v704, %v721
    %725 = vrot.lane.b32.xlu0 %v723, 32
    %v726 = vpop.permute.xlu0 %725
    %v727 = vsel %vm321, %v726, 0
    %729 = vmatprep.subr.mxu0 0.0
    %730 = vmatpush1.msra.mxu0 0.0
    %731 = vmatprep.subr.mxu0 0.0
    %732 = vmatpush1.msra.mxu0 0.0
    %733 = vmatprep.subr.mxu0 0.0
    %734 = vmatpush1.msra.mxu0 0.0
    %735 = vmatprep.subr.mxu0 0.0
    %736 = vmatpush1.msra.mxu0 0.0
    %737 = vmatprep.subr.mxu0 0.0
    %738 = vmatpush1.msra.mxu0 0.0
    %739 = vmatprep.subr.mxu0 0.0
    %740 = vmatpush1.msra.mxu0 0.0
    %741 = vmatprep.subr.mxu0 0.0
    %742 = vmatpush1.msra.mxu0 0.0
    %743 = vmatprep.subr.mxu0 0.0
    %744 = vmatpush1.msra.mxu0 0.0
    %745 = vmatprep.subr.mxu0 0.0
    %746 = vmatpush1.msra.mxu0 0.0
    %747 = vmatprep.subr.mxu0 0.0
    %748 = vmatpush1.msra.mxu0 0.0
    %749 = vmatprep.subr.mxu0 0.0
    %750 = vmatpush1.msra.mxu0 0.0
    %751 = vmatprep.subr.mxu0 0.0
    %752 = vmatpush1.msra.mxu0 0.0
    %753 = vmatprep.subr.mxu0 0.0
    %754 = vmatpush1.msra.mxu0 %v320
    %755 = vmatprep.subr.mxu0 0.0
    %756 = vmatpush1.msra.mxu0 %v319
    %757 = vmatprep.subr.mxu0 0.0
    %758 = vmatpush1.msra.mxu0 %v318
    %759 = vmatprep.subr.mxu0 0.0
    %760 = vmatpush1.msra.mxu0 %v317
    %761 = vmatprep.subr.mxu0 0.0
    %762 = vmatpush2.msra.mxu0 0.0
    %763 = vmatprep.subr.mxu0 0.0
    %764 = vmatpush2.msra.mxu0 0.0
    %765 = vmatprep.subr.mxu0 0.0
    %766 = vmatpush2.msra.mxu0 0.0
    %767 = vmatprep.subr.mxu0 0.0
    %768 = vmatpush2.msra.mxu0 0.0
    %769 = vmatprep.subr.mxu0 0.0
    %770 = vmatpush2.msra.mxu0 0.0
    %771 = vmatprep.subr.mxu0 0.0
    %772 = vmatpush2.msra.mxu0 0.0
    %773 = vmatprep.subr.mxu0 0.0
    %774 = vmatpush2.msra.mxu0 0.0
    %775 = vmatprep.subr.mxu0 0.0
    %776 = vmatpush2.msra.mxu0 0.0
    %777 = vmatprep.subr.mxu0 0.0
    %778 = vmatpush2.msra.mxu0 0.0
    %779 = vmatprep.subr.mxu0 0.0
    %780 = vmatpush2.msra.mxu0 0.0
    %781 = vmatprep.subr.mxu0 0.0
    %782 = vmatpush2.msra.mxu0 0.0
    %783 = vmatprep.subr.mxu0 0.0
    %784 = vmatpush2.msra.mxu0 0.0
    %785 = vmatprep.subr.mxu0 0.0
    %786 = vmatpush2.msra.mxu0 0.0
    %787 = vmatprep.subr.mxu0 0.0
    %788 = vmatpush2.msra.mxu0 0.0
    %789 = vmatprep.subr.mxu0 0.0
    %790 = vmatpush2.msra.mxu0 0.0
    %791 = vmatprep.subr.mxu0 0.0
    %792 = vmatpush2.msra.mxu0 0.0
    %793 = vmatprep.mubr.f32.mxu0 0.0
    %794 = vmatmul.mubr.f32.gmra.mxu0 %v727
    %v795 = vpop.f32.mrf.mxu0
    %v796 = vadd.f32 0.0, %v795
    %v797 = vpop.f32.mrf.mxu0
    %798 = vdwg.mxu0
    %v799 = vadd.f32 %v299, %v796
    %v800 = vxor.u32 %v799, 2147483648
    %v801 = vmul.f32 %v800, 1.442695
    %v802 = vpow.pop %v801
    %v803 = vadd.f32 %v802, 1.0
    %v804 = vrcp.pop %v803
    %v805 = vmul.f32 1.0, %v804
    %v806 = vmul.f32 %v805, 2.0
    %v807 = vsub.f32 %v806, 1.0
    %v808 = vmul.f32 %v805, %v717
    %810 = vrot.lane.b32.xlu0 %v807, 64
    %v811 = vpop.permute.xlu0 %810
    %v813 = vmul.f32 %v805, %v811
    %815 = vrot.lane.b32.xlu0 %v813, 32
    %v816 = vpop.permute.xlu0 %815
    %v818 = vadd.f32 %v808, %v816
    %v819 = vtanh.pop %v818
    %821 = vrot.lane.b32.xlu0 %v819, 64
    %v822 = vpop.permute.xlu0 %821
    %v824 = vmul.f32 %v805, %v822
    %826 = vrot.lane.b32.xlu0 %v824, 32
    %v827 = vpop.permute.xlu0 %826
    %v828 = vsel %vm321, %v827, 0
    %830 = vmatprep.subr.mxu0 0.0
    %831 = vmatpush1.msra.mxu0 0.0
    %832 = vmatprep.subr.mxu0 0.0
    %833 = vmatpush1.msra.mxu0 0.0
    %834 = vmatprep.subr.mxu0 0.0
    %835 = vmatpush1.msra.mxu0 0.0
    %836 = vmatprep.subr.mxu0 0.0
    %837 = vmatpush1.msra.mxu0 0.0
    %838 = vmatprep.subr.mxu0 0.0
    %839 = vmatpush1.msra.mxu0 0.0
    %840 = vmatprep.subr.mxu0 0.0
    %841 = vmatpush1.msra.mxu0 0.0
    %842 = vmatprep.subr.mxu0 0.0
    %843 = vmatpush1.msra.mxu0 0.0
    %844 = vmatprep.subr.mxu0 0.0
    %845 = vmatpush1.msra.mxu0 0.0
    %846 = vmatprep.subr.mxu0 0.0
    %847 = vmatpush1.msra.mxu0 0.0
    %848 = vmatprep.subr.mxu0 0.0
    %849 = vmatpush1.msra.mxu0 0.0
    %850 = vmatprep.subr.mxu0 0.0
    %851 = vmatpush1.msra.mxu0 0.0
    %852 = vmatprep.subr.mxu0 0.0
    %853 = vmatpush1.msra.mxu0 0.0
    %854 = vmatprep.subr.mxu0 0.0
    %855 = vmatpush1.msra.mxu0 %v320
    %856 = vmatprep.subr.mxu0 0.0
    %857 = vmatpush1.msra.mxu0 %v319
    %858 = vmatprep.subr.mxu0 0.0
    %859 = vmatpush1.msra.mxu0 %v318
    %860 = vmatprep.subr.mxu0 0.0
    %861 = vmatpush1.msra.mxu0 %v317
    %862 = vmatprep.subr.mxu0 0.0
    %863 = vmatpush2.msra.mxu0 0.0
    %864 = vmatprep.subr.mxu0 0.0
    %865 = vmatpush2.msra.mxu0 0.0
    %866 = vmatprep.subr.mxu0 0.0
    %867 = vmatpush2.msra.mxu0 0.0
    %868 = vmatprep.subr.mxu0 0.0
    %869 = vmatpush2.msra.mxu0 0.0
    %870 = vmatprep.subr.mxu0 0.0
    %871 = vmatpush2.msra.mxu0 0.0
    %872 = vmatprep.subr.mxu0 0.0
    %873 = vmatpush2.msra.mxu0 0.0
    %874 = vmatprep.subr.mxu0 0.0
    %875 = vmatpush2.msra.mxu0 0.0
    %876 = vmatprep.subr.mxu0 0.0
    %877 = vmatpush2.msra.mxu0 0.0
    %878 = vmatprep.subr.mxu0 0.0
    %879 = vmatpush2.msra.mxu0 0.0
    %880 = vmatprep.subr.mxu0 0.0
    %881 = vmatpush2.msra.mxu0 0.0
    %882 = vmatprep.subr.mxu0 0.0
    %883 = vmatpush2.msra.mxu0 0.0
    %884 = vmatprep.subr.mxu0 0.0
    %885 = vmatpush2.msra.mxu0 0.0
    %886 = vmatprep.subr.mxu0 0.0
    %887 = vmatpush2.msra.mxu0 0.0
    %888 = vmatprep.subr.mxu0 0.0
    %889 = vmatpush2.msra.mxu0 0.0
    %890 = vmatprep.subr.mxu0 0.0
    %891 = vmatpush2.msra.mxu0 0.0
    %892 = vmatprep.subr.mxu0 0.0
    %893 = vmatpush2.msra.mxu0 0.0
    %894 = vmatprep.mubr.f32.mxu0 0.0
    %895 = vmatmul.mubr.f32.gmra.mxu0 %v828
    %v896 = vpop.f32.mrf.mxu0
    %v897 = vadd.f32 0.0, %v896
    %v898 = vpop.f32.mrf.mxu0
    %899 = vdwg.mxu0
    %v900 = vadd.f32 %v304, %v897
    %v901 = vxor.u32 %v900, 2147483648
    %v902 = vmul.f32 %v901, 1.442695
    %v903 = vpow.pop %v902
    %v904 = vadd.f32 %v903, 1.0
    %v905 = vrcp.pop %v904
    %v906 = vmul.f32 1.0, %v905
    %v907 = vmul.f32 %v906, 2.0
    %v908 = vsub.f32 %v907, 1.0
    %v909 = vmul.f32 %v906, %v818
    %911 = vrot.lane.b32.xlu0 %v908, 64
    %v912 = vpop.permute.xlu0 %911
    %v914 = vmul.f32 %v906, %v912
    %916 = vrot.lane.b32.xlu0 %v914, 32
    %v917 = vpop.permute.xlu0 %916
    %v919 = vadd.f32 %v909, %v917
    %v920 = vtanh.pop %v919
    %922 = vrot.lane.b32.xlu0 %v920, 64
    %v923 = vpop.permute.xlu0 %922
    %v925 = vmul.f32 %v906, %v923
    %927 = vrot.lane.b32.xlu0 %v925, 32
    %v928 = vpop.permute.xlu0 %927
    %v929 = vsel %vm321, %v928, 0
    %931 = vmatprep.subr.mxu0 0.0
    %932 = vmatpush1.msra.mxu0 0.0
    %933 = vmatprep.subr.mxu0 0.0
    %934 = vmatpush1.msra.mxu0 0.0
    %935 = vmatprep.subr.mxu0 0.0
    %936 = vmatpush1.msra.mxu0 0.0
    %937 = vmatprep.subr.mxu0 0.0
    %938 = vmatpush1.msra.mxu0 0.0
    %939 = vmatprep.subr.mxu0 0.0
    %940 = vmatpush1.msra.mxu0 0.0
    %941 = vmatprep.subr.mxu0 0.0
    %942 = vmatpush1.msra.mxu0 0.0
    %943 = vmatprep.subr.mxu0 0.0
    %944 = vmatpush1.msra.mxu0 0.0
    %945 = vmatprep.subr.mxu0 0.0
    %946 = vmatpush1.msra.mxu0 0.0
    %947 = vmatprep.subr.mxu0 0.0
    %948 = vmatpush1.msra.mxu0 0.0
    %949 = vmatprep.subr.mxu0 0.0
    %950 = vmatpush1.msra.mxu0 0.0
    %951 = vmatprep.subr.mxu0 0.0
    %952 = vmatpush1.msra.mxu0 0.0
    %953 = vmatprep.subr.mxu0 0.0
    %954 = vmatpush1.msra.mxu0 0.0
    %955 = vmatprep.subr.mxu0 0.0
    %956 = vmatpush1.msra.mxu0 %v320
    %957 = vmatprep.subr.mxu0 0.0
    %958 = vmatpush1.msra.mxu0 %v319
    %959 = vmatprep.subr.mxu0 0.0
    %960 = vmatpush1.msra.mxu0 %v318
    %961 = vmatprep.subr.mxu0 0.0
    %962 = vmatpush1.msra.mxu0 %v317
    %963 = vmatprep.subr.mxu0 0.0
    %964 = vmatpush2.msra.mxu0 0.0
    %965 = vmatprep.subr.mxu0 0.0
    %966 = vmatpush2.msra.mxu0 0.0
    %967 = vmatprep.subr.mxu0 0.0
    %968 = vmatpush2.msra.mxu0 0.0
    %969 = vmatprep.subr.mxu0 0.0
    %970 = vmatpush2.msra.mxu0 0.0
    %971 = vmatprep.subr.mxu0 0.0
    %972 = vmatpush2.msra.mxu0 0.0
    %973 = vmatprep.subr.mxu0 0.0
    %974 = vmatpush2.msra.mxu0 0.0
    %975 = vmatprep.subr.mxu0 0.0
    %976 = vmatpush2.msra.mxu0 0.0
    %977 = vmatprep.subr.mxu0 0.0
    %978 = vmatpush2.msra.mxu0 0.0
    %979 = vmatprep.subr.mxu0 0.0
    %980 = vmatpush2.msra.mxu0 0.0
    %981 = vmatprep.subr.mxu0 0.0
    %982 = vmatpush2.msra.mxu0 0.0
    %983 = vmatprep.subr.mxu0 0.0
    %984 = vmatpush2.msra.mxu0 0.0
    %985 = vmatprep.subr.mxu0 0.0
    %986 = vmatpush2.msra.mxu0 0.0
    %987 = vmatprep.subr.mxu0 0.0
    %988 = vmatpush2.msra.mxu0 0.0
    %989 = vmatprep.subr.mxu0 0.0
    %990 = vmatpush2.msra.mxu0 0.0
    %991 = vmatprep.subr.mxu0 0.0
    %992 = vmatpush2.msra.mxu0 0.0
    %993 = vmatprep.subr.mxu0 0.0
    %994 = vmatpush2.msra.mxu0 0.0
    %995 = vmatprep.mubr.f32.mxu0 0.0
    %996 = vmatmul.mubr.f32.gmra.mxu0 %v929
    %v997 = vpop.f32.mrf.mxu0
    %v998 = vadd.f32 0.0, %v997
    %v999 = vpop.f32.mrf.mxu0
    %1000 = vdwg.mxu0
    %v1001 = vadd.f32 %v309, %v998
    %v1002 = vxor.u32 %v1001, 2147483648
    %v1003 = vmul.f32 %v1002, 1.442695
    %v1004 = vpow.pop %v1003
    %v1005 = vadd.f32 %v1004, 1.0
    %v1006 = vrcp.pop %v1005
    %v1007 = vmul.f32 1.0, %v1006
    %v1008 = vmul.f32 %v1007, 2.0
    %v1009 = vsub.f32 %v1008, 1.0
    %v1010 = vmul.f32 %v1007, %v919
    %1012 = vrot.lane.b32.xlu0 %v1009, 64
    %v1013 = vpop.permute.xlu0 %1012
    %v1015 = vmul.f32 %v1007, %v1013
    %1017 = vrot.lane.b32.xlu0 %v1015, 32
    %v1018 = vpop.permute.xlu0 %1017
    %v1020 = vadd.f32 %v1010, %v1018
    %v1021 = vtanh.pop %v1020
    %1023 = vrot.lane.b32.xlu0 %v1021, 64
    %v1024 = vpop.permute.xlu0 %1023
    %v1026 = vmul.f32 %v1007, %v1024
    %1028 = vrot.lane.b32.xlu0 %v1026, 32
    %v1029 = vpop.permute.xlu0 %1028
    %v1030 = vsel %vm321, %v1029, 0
    %1032 = vmatprep.subr.mxu0 0.0
    %1033 = vmatpush1.msra.mxu0 0.0
    %1034 = vmatprep.subr.mxu0 0.0
    %1035 = vmatpush1.msra.mxu0 0.0
    %1036 = vmatprep.subr.mxu0 0.0
    %1037 = vmatpush1.msra.mxu0 0.0
    %1038 = vmatprep.subr.mxu0 0.0
    %1039 = vmatpush1.msra.mxu0 0.0
    %1040 = vmatprep.subr.mxu0 0.0
    %1041 = vmatpush1.msra.mxu0 0.0
    %1042 = vmatprep.subr.mxu0 0.0
    %1043 = vmatpush1.msra.mxu0 0.0
    %1044 = vmatprep.subr.mxu0 0.0
    %1045 = vmatpush1.msra.mxu0 0.0
    %1046 = vmatprep.subr.mxu0 0.0
    %1047 = vmatpush1.msra.mxu0 0.0
    %1048 = vmatprep.subr.mxu0 0.0
    %1049 = vmatpush1.msra.mxu0 0.0
    %1050 = vmatprep.subr.mxu0 0.0
    %1051 = vmatpush1.msra.mxu0 0.0
    %1052 = vmatprep.subr.mxu0 0.0
    %1053 = vmatpush1.msra.mxu0 0.0
    %1054 = vmatprep.subr.mxu0 0.0
    %1055 = vmatpush1.msra.mxu0 0.0
    %1056 = vmatprep.subr.mxu0 0.0
    %1057 = vmatpush1.msra.mxu0 %v320
    %1058 = vmatprep.subr.mxu0 0.0
    %1059 = vmatpush1.msra.mxu0 %v319
    %1060 = vmatprep.subr.mxu0 0.0
    %1061 = vmatpush1.msra.mxu0 %v318
    %1062 = vmatprep.subr.mxu0 0.0
    %1063 = vmatpush1.msra.mxu0 %v317
    %1064 = vmatprep.subr.mxu0 0.0
    %1065 = vmatpush2.msra.mxu0 0.0
    %1066 = vmatprep.subr.mxu0 0.0
    %1067 = vmatpush2.msra.mxu0 0.0
    %1068 = vmatprep.subr.mxu0 0.0
    %1069 = vmatpush2.msra.mxu0 0.0
    %1070 = vmatprep.subr.mxu0 0.0
    %1071 = vmatpush2.msra.mxu0 0.0
    %1072 = vmatprep.subr.mxu0 0.0
    %1073 = vmatpush2.msra.mxu0 0.0
    %1074 = vmatprep.subr.mxu0 0.0
    %1075 = vmatpush2.msra.mxu0 0.0
    %1076 = vmatprep.subr.mxu0 0.0
    %1077 = vmatpush2.msra.mxu0 0.0
    %1078 = vmatprep.subr.mxu0 0.0
    %1079 = vmatpush2.msra.mxu0 0.0
    %1080 = vmatprep.subr.mxu0 0.0
    %1081 = vmatpush2.msra.mxu0 0.0
    %1082 = vmatprep.subr.mxu0 0.0
    %1083 = vmatpush2.msra.mxu0 0.0
    %1084 = vmatprep.subr.mxu0 0.0
    %1085 = vmatpush2.msra.mxu0 0.0
    %1086 = vmatprep.subr.mxu0 0.0
    %1087 = vmatpush2.msra.mxu0 0.0
    %1088 = vmatprep.subr.mxu0 0.0
    %1089 = vmatpush2.msra.mxu0 0.0
    %1090 = vmatprep.subr.mxu0 0.0
    %1091 = vmatpush2.msra.mxu0 0.0
    %1092 = vmatprep.subr.mxu0 0.0
    %1093 = vmatpush2.msra.mxu0 0.0
    %1094 = vmatprep.subr.mxu0 0.0
    %1095 = vmatpush2.msra.mxu0 0.0
    %1096 = vmatprep.mubr.f32.mxu0 0.0
    %1097 = vmatmul.mubr.f32.gmra.mxu0 %v1030
    %v1098 = vpop.f32.mrf.mxu0
    %v1099 = vadd.f32 0.0, %v1098
    %v1100 = vpop.f32.mrf.mxu0
    %1101 = vdwg.mxu0
    %v1102 = vadd.f32 %v314, %v1099
    %v1103 = vxor.u32 %v1102, 2147483648
    %v1104 = vmul.f32 %v1103, 1.442695
    %v1105 = vpow.pop %v1104
    %v1106 = vadd.f32 %v1105, 1.0
    %v1107 = vrcp.pop %v1106
    %v1108 = vmul.f32 1.0, %v1107
    %v1109 = vmul.f32 %v1108, 2.0
    %v1110 = vsub.f32 %v1109, 1.0
    %v1111 = vmul.f32 %v1108, %v1020
    %1113 = vrot.lane.b32.xlu0 %v1110, 64
    %v1114 = vpop.permute.xlu0 %1113
    %v1116 = vmul.f32 %v1108, %v1114
    %1118 = vrot.lane.b32.xlu0 %v1116, 32
    %v1119 = vpop.permute.xlu0 %1118
    %v1121 = vadd.f32 %v1111, %v1119
    %v1122 = vtanh.pop %v1121
    %1124 = vrot.lane.b32.xlu0 %v1122, 64
    %v1125 = vpop.permute.xlu0 %1124
    %v1127 = vmul.f32 %v1108, %v1125
    %v1128 = vld [vmem:[#allocation8] sm:$0xff]
    %v1129 = vld [vmem:[#allocation8 + $0x8] sm:$0xff]
    %v1130 = vld [vmem:[#allocation8 + $0x10] sm:$0xff]
    %v1131 = vld [vmem:[#allocation8 + $0x18] sm:$0xff]
    %v1132 = vld [vmem:[#allocation11] sm:$0x1]
    %v1134 = vlaneseq
    %v1135 = vshrl.u32 %v1134, 7
    %v1136 = vsub.s32 0, %v1135
    %v1137 = vrot.slane %v1132, %v1136
    %1140 = vrot.lane.b32.xlu0 %v1127, 32
    %v1141 = vpop.permute.xlu0 %1140
    %v1142 = vsel %vm321, %v1141, 0
    %1144 = vmatprep.subr.mxu0 0.0
    %1145 = vmatpush1.msra.mxu0 0.0
    %1146 = vmatprep.subr.mxu0 0.0
    %1147 = vmatpush1.msra.mxu0 0.0
    %1148 = vmatprep.subr.mxu0 0.0
    %1149 = vmatpush1.msra.mxu0 0.0
    %1150 = vmatprep.subr.mxu0 0.0
    %1151 = vmatpush1.msra.mxu0 0.0
    %1152 = vmatprep.subr.mxu0 0.0
    %1153 = vmatpush1.msra.mxu0 0.0
    %1154 = vmatprep.subr.mxu0 0.0
    %1155 = vmatpush1.msra.mxu0 0.0
    %1156 = vmatprep.subr.mxu0 0.0
    %1157 = vmatpush1.msra.mxu0 0.0
    %1158 = vmatprep.subr.mxu0 0.0
    %1159 = vmatpush1.msra.mxu0 0.0
    %1160 = vmatprep.subr.mxu0 0.0
    %1161 = vmatpush1.msra.mxu0 0.0
    %1162 = vmatprep.subr.mxu0 0.0
    %1163 = vmatpush1.msra.mxu0 0.0
    %1164 = vmatprep.subr.mxu0 0.0
    %1165 = vmatpush1.msra.mxu0 0.0
    %1166 = vmatprep.subr.mxu0 0.0
    %1167 = vmatpush1.msra.mxu0 0.0
    %1168 = vmatprep.subr.mxu0 0.0
    %1169 = vmatpush1.msra.mxu0 %v1131
    %1170 = vmatprep.subr.mxu0 0.0
    %1171 = vmatpush1.msra.mxu0 %v1130
    %1172 = vmatprep.subr.mxu0 0.0
    %1173 = vmatpush1.msra.mxu0 %v1129
    %1174 = vmatprep.subr.mxu0 0.0
    %1175 = vmatpush1.msra.mxu0 %v1128
    %1176 = vmatprep.subr.mxu0 0.0
    %1177 = vmatpush2.msra.mxu0 0.0
    %1178 = vmatprep.subr.mxu0 0.0
    %1179 = vmatpush2.msra.mxu0 0.0
    %1180 = vmatprep.subr.mxu0 0.0
    %1181 = vmatpush2.msra.mxu0 0.0
    %1182 = vmatprep.subr.mxu0 0.0
    %1183 = vmatpush2.msra.mxu0 0.0
    %1184 = vmatprep.subr.mxu0 0.0
    %1185 = vmatpush2.msra.mxu0 0.0
    %1186 = vmatprep.subr.mxu0 0.0
    %1187 = vmatpush2.msra.mxu0 0.0
    %1188 = vmatprep.subr.mxu0 0.0
    %1189 = vmatpush2.msra.mxu0 0.0
    %1190 = vmatprep.subr.mxu0 0.0
    %1191 = vmatpush2.msra.mxu0 0.0
    %1192 = vmatprep.subr.mxu0 0.0
    %1193 = vmatpush2.msra.mxu0 0.0
    %1194 = vmatprep.subr.mxu0 0.0
    %1195 = vmatpush2.msra.mxu0 0.0
    %1196 = vmatprep.subr.mxu0 0.0
    %1197 = vmatpush2.msra.mxu0 0.0
    %1198 = vmatprep.subr.mxu0 0.0
    %1199 = vmatpush2.msra.mxu0 0.0
    %1200 = vmatprep.subr.mxu0 0.0
    %1201 = vmatpush2.msra.mxu0 0.0
    %1202 = vmatprep.subr.mxu0 0.0
    %1203 = vmatpush2.msra.mxu0 0.0
    %1204 = vmatprep.subr.mxu0 0.0
    %1205 = vmatpush2.msra.mxu0 0.0
    %1206 = vmatprep.subr.mxu0 0.0
    %1207 = vmatpush2.msra.mxu0 0.0
    %1208 = vmatprep.mubr.f32.mxu0 0.0
    %1209 = vmatmul.mubr.f32.gmra.mxu0 %v424
    %v1210 = vpop.f32.mrf.mxu0
    %v1211 = vadd.f32 %v1137, %v1210
    %v1212 = vpop.f32.mrf.mxu0
    %1213 = vmatprep.mubr.f32.mxu0 0.0
    %1214 = vmatmul.mubr.f32.gmra.mxu0 %v525
    %v1215 = vpop.f32.mrf.mxu0
    %v1216 = vadd.f32 %v1137, %v1215
    %v1217 = vpop.f32.mrf.mxu0
    %1218 = vmatprep.mubr.f32.mxu0 0.0
    %1219 = vmatmul.mubr.f32.gmra.mxu0 %v626
    %v1220 = vpop.f32.mrf.mxu0
    %v1221 = vadd.f32 %v1137, %v1220
    %v1222 = vpop.f32.mrf.mxu0
    %1223 = vmatprep.mubr.f32.mxu0 0.0
    %1224 = vmatmul.mubr.f32.gmra.mxu0 %v727
    %v1225 = vpop.f32.mrf.mxu0
    %v1226 = vadd.f32 %v1137, %v1225
    %v1227 = vpop.f32.mrf.mxu0
    %1228 = vmatprep.mubr.f32.mxu0 0.0
    %1229 = vmatmul.mubr.f32.gmra.mxu0 %v828
    %v1230 = vpop.f32.mrf.mxu0
    %v1231 = vadd.f32 %v1137, %v1230
    %v1232 = vpop.f32.mrf.mxu0
    %1233 = vmatprep.mubr.f32.mxu0 0.0
    %1234 = vmatmul.mubr.f32.gmra.mxu0 %v929
    %v1235 = vpop.f32.mrf.mxu0
    %v1236 = vadd.f32 %v1137, %v1235
    %v1237 = vpop.f32.mrf.mxu0
    %1238 = vmatprep.mubr.f32.mxu0 0.0
    %1239 = vmatmul.mubr.f32.gmra.mxu0 %v1030
    %v1240 = vpop.f32.mrf.mxu0
    %v1241 = vadd.f32 %v1137, %v1240
    %v1242 = vpop.f32.mrf.mxu0
    %1243 = vmatprep.mubr.f32.mxu0 0.0
    %1244 = vmatmul.mubr.f32.gmra.mxu0 %v1142
    %v1245 = vpop.f32.mrf.mxu0
    %v1246 = vadd.f32 %v1137, %v1245
    %v1247 = vpop.f32.mrf.mxu0
    %1248 = vdwg.mxu0
    %v1249 = vld [vmem:[#allocation10] sm:$0xff]
    %v1250 = vld [vmem:[#allocation10 + $0x8] sm:$0xff]
    %v1251 = vld [vmem:[#allocation10 + $0x10] sm:$0xff]
    %v1252 = vld [vmem:[#allocation10 + $0x18] sm:$0xff]
    %1253 = vmatprep.subr.mxu0 0.0
    %1254 = vmatpush1.msra.mxu0 0.0
    %1255 = vmatprep.subr.mxu0 0.0
    %1256 = vmatpush1.msra.mxu0 0.0
    %1257 = vmatprep.subr.mxu0 0.0
    %1258 = vmatpush1.msra.mxu0 0.0
    %1259 = vmatprep.subr.mxu0 0.0
    %1260 = vmatpush1.msra.mxu0 0.0
    %1261 = vmatprep.subr.mxu0 0.0
    %1262 = vmatpush1.msra.mxu0 0.0
    %1263 = vmatprep.subr.mxu0 0.0
    %1264 = vmatpush1.msra.mxu0 0.0
    %1265 = vmatprep.subr.mxu0 0.0
    %1266 = vmatpush1.msra.mxu0 0.0
    %1267 = vmatprep.subr.mxu0 0.0
    %1268 = vmatpush1.msra.mxu0 0.0
    %1269 = vmatprep.subr.mxu0 0.0
    %1270 = vmatpush1.msra.mxu0 0.0
    %1271 = vmatprep.subr.mxu0 0.0
    %1272 = vmatpush1.msra.mxu0 0.0
    %1273 = vmatprep.subr.mxu0 0.0
    %1274 = vmatpush1.msra.mxu0 0.0
    %1275 = vmatprep.subr.mxu0 0.0
    %1276 = vmatpush1.msra.mxu0 0.0
    %1277 = vmatprep.subr.mxu0 0.0
    %1278 = vmatpush1.msra.mxu0 %v1252
    %1279 = vmatprep.subr.mxu0 0.0
    %1280 = vmatpush1.msra.mxu0 %v1251
    %1281 = vmatprep.subr.mxu0 0.0
    %1282 = vmatpush1.msra.mxu0 %v1250
    %1283 = vmatprep.subr.mxu0 0.0
    %1284 = vmatpush1.msra.mxu0 %v1249
    %1285 = vmatprep.subr.mxu0 0.0
    %1286 = vmatpush2.msra.mxu0 0.0
    %1287 = vmatprep.subr.mxu0 0.0
    %1288 = vmatpush2.msra.mxu0 0.0
    %1289 = vmatprep.subr.mxu0 0.0
    %1290 = vmatpush2.msra.mxu0 0.0
    %1291 = vmatprep.subr.mxu0 0.0
    %1292 = vmatpush2.msra.mxu0 0.0
    %1293 = vmatprep.subr.mxu0 0.0
    %1294 = vmatpush2.msra.mxu0 0.0
    %1295 = vmatprep.subr.mxu0 0.0
    %1296 = vmatpush2.msra.mxu0 0.0
    %1297 = vmatprep.subr.mxu0 0.0
    %1298 = vmatpush2.msra.mxu0 0.0
    %1299 = vmatprep.subr.mxu0 0.0
    %1300 = vmatpush2.msra.mxu0 0.0
    %1301 = vmatprep.subr.mxu0 0.0
    %1302 = vmatpush2.msra.mxu0 0.0
    %1303 = vmatprep.subr.mxu0 0.0
    %1304 = vmatpush2.msra.mxu0 0.0
    %1305 = vmatprep.subr.mxu0 0.0
    %1306 = vmatpush2.msra.mxu0 0.0
    %1307 = vmatprep.subr.mxu0 0.0
    %1308 = vmatpush2.msra.mxu0 0.0
    %1309 = vmatprep.subr.mxu0 0.0
    %1310 = vmatpush2.msra.mxu0 0.0
    %1311 = vmatprep.subr.mxu0 0.0
    %1312 = vmatpush2.msra.mxu0 0.0
    %1313 = vmatprep.subr.mxu0 0.0
    %1314 = vmatpush2.msra.mxu0 0.0
    %1315 = vmatprep.subr.mxu0 0.0
    %1316 = vmatpush2.msra.mxu0 0.0
    %1317 = vmatprep.mubr.f32.mxu0 0.0
    %1318 = vmatmul.mubr.f32.gmra.mxu0 %v323
    %v1319 = vpop.f32.mrf.mxu0
    %v1320 = vadd.f32 0.0, %v1319
    %v1321 = vpop.f32.mrf.mxu0
    %1322 = vdwg.mxu0
    %v1323 = vadd.f32 %v1211, %v1320
    %v1324 = vxor.u32 %v1323, 2147483648
    %v1325 = vmul.f32 %v1324, 1.442695
    %v1326 = vpow.pop %v1325
    %v1327 = vadd.f32 %v1326, 1.0
    %v1328 = vrcp.pop %v1327
    %v1329 = vmul.f32 1.0, %v1328
    %v1330 = vmul.f32 %v1329, 2.0
    %v1331 = vsub.f32 %v1330, 1.0
    %v1332 = vmul.f32 %v1329, 0.0
    %1334 = vrot.lane.b32.xlu0 %v1331, 64
    %v1335 = vpop.permute.xlu0 %1334
    %v1337 = vmul.f32 %v1329, %v1335
    %1339 = vrot.lane.b32.xlu0 %v1337, 32
    %v1340 = vpop.permute.xlu0 %1339
    %v1342 = vadd.f32 %v1332, %v1340
    %v1343 = vtanh.pop %v1342
    %1345 = vrot.lane.b32.xlu0 %v1343, 64
    %v1346 = vpop.permute.xlu0 %1345
    %v1348 = vmul.f32 %v1329, %v1346
    %1350 = vrot.lane.b32.xlu0 %v1348, 32
    %v1351 = vpop.permute.xlu0 %1350
    %v1352 = vsel %vm321, %v1351, 0
    %1354 = vmatprep.subr.mxu0 0.0
    %1355 = vmatpush1.msra.mxu0 0.0
    %1356 = vmatprep.subr.mxu0 0.0
    %1357 = vmatpush1.msra.mxu0 0.0
    %1358 = vmatprep.subr.mxu0 0.0
    %1359 = vmatpush1.msra.mxu0 0.0
    %1360 = vmatprep.subr.mxu0 0.0
    %1361 = vmatpush1.msra.mxu0 0.0
    %1362 = vmatprep.subr.mxu0 0.0
    %1363 = vmatpush1.msra.mxu0 0.0
    %1364 = vmatprep.subr.mxu0 0.0
    %1365 = vmatpush1.msra.mxu0 0.0
    %1366 = vmatprep.subr.mxu0 0.0
    %1367 = vmatpush1.msra.mxu0 0.0
    %1368 = vmatprep.subr.mxu0 0.0
    %1369 = vmatpush1.msra.mxu0 0.0
    %1370 = vmatprep.subr.mxu0 0.0
    %1371 = vmatpush1.msra.mxu0 0.0
    %1372 = vmatprep.subr.mxu0 0.0
    %1373 = vmatpush1.msra.mxu0 0.0
    %1374 = vmatprep.subr.mxu0 0.0
    %1375 = vmatpush1.msra.mxu0 0.0
    %1376 = vmatprep.subr.mxu0 0.0
    %1377 = vmatpush1.msra.mxu0 0.0
    %1378 = vmatprep.subr.mxu0 0.0
    %1379 = vmatpush1.msra.mxu0 %v1252
    %1380 = vmatprep.subr.mxu0 0.0
    %1381 = vmatpush1.msra.mxu0 %v1251
    %1382 = vmatprep.subr.mxu0 0.0
    %1383 = vmatpush1.msra.mxu0 %v1250
    %1384 = vmatprep.subr.mxu0 0.0
    %1385 = vmatpush1.msra.mxu0 %v1249
    %1386 = vmatprep.subr.mxu0 0.0
    %1387 = vmatpush2.msra.mxu0 0.0
    %1388 = vmatprep.subr.mxu0 0.0
    %1389 = vmatpush2.msra.mxu0 0.0
    %1390 = vmatprep.subr.mxu0 0.0
    %1391 = vmatpush2.msra.mxu0 0.0
    %1392 = vmatprep.subr.mxu0 0.0
    %1393 = vmatpush2.msra.mxu0 0.0
    %1394 = vmatprep.subr.mxu0 0.0
    %1395 = vmatpush2.msra.mxu0 0.0
    %1396 = vmatprep.subr.mxu0 0.0
    %1397 = vmatpush2.msra.mxu0 0.0
    %1398 = vmatprep.subr.mxu0 0.0
    %1399 = vmatpush2.msra.mxu0 0.0
    %1400 = vmatprep.subr.mxu0 0.0
    %1401 = vmatpush2.msra.mxu0 0.0
    %1402 = vmatprep.subr.mxu0 0.0
    %1403 = vmatpush2.msra.mxu0 0.0
    %1404 = vmatprep.subr.mxu0 0.0
    %1405 = vmatpush2.msra.mxu0 0.0
    %1406 = vmatprep.subr.mxu0 0.0
    %1407 = vmatpush2.msra.mxu0 0.0
    %1408 = vmatprep.subr.mxu0 0.0
    %1409 = vmatpush2.msra.mxu0 0.0
    %1410 = vmatprep.subr.mxu0 0.0
    %1411 = vmatpush2.msra.mxu0 0.0
    %1412 = vmatprep.subr.mxu0 0.0
    %1413 = vmatpush2.msra.mxu0 0.0
    %1414 = vmatprep.subr.mxu0 0.0
    %1415 = vmatpush2.msra.mxu0 0.0
    %1416 = vmatprep.subr.mxu0 0.0
    %1417 = vmatpush2.msra.mxu0 0.0
    %1418 = vmatprep.mubr.f32.mxu0 0.0
    %1419 = vmatmul.mubr.f32.gmra.mxu0 %v1352
    %v1420 = vpop.f32.mrf.mxu0
    %v1421 = vadd.f32 0.0, %v1420
    %v1422 = vpop.f32.mrf.mxu0
    %1423 = vdwg.mxu0
    %v1424 = vadd.f32 %v1216, %v1421
    %v1425 = vxor.u32 %v1424, 2147483648
    %v1426 = vmul.f32 %v1425, 1.442695
    %v1427 = vpow.pop %v1426
    %v1428 = vadd.f32 %v1427, 1.0
    %v1429 = vrcp.pop %v1428
    %v1430 = vmul.f32 1.0, %v1429
    %v1431 = vmul.f32 %v1430, 2.0
    %v1432 = vsub.f32 %v1431, 1.0
    %v1433 = vmul.f32 %v1430, %v1342
    %1435 = vrot.lane.b32.xlu0 %v1432, 64
    %v1436 = vpop.permute.xlu0 %1435
    %v1438 = vmul.f32 %v1430, %v1436
    %1440 = vrot.lane.b32.xlu0 %v1438, 32
    %v1441 = vpop.permute.xlu0 %1440
    %v1443 = vadd.f32 %v1433, %v1441
    %v1444 = vtanh.pop %v1443
    %1446 = vrot.lane.b32.xlu0 %v1444, 64
    %v1447 = vpop.permute.xlu0 %1446
    %v1449 = vmul.f32 %v1430, %v1447
    %1451 = vrot.lane.b32.xlu0 %v1449, 32
    %v1452 = vpop.permute.xlu0 %1451
    %v1453 = vsel %vm321, %v1452, 0
    %1455 = vmatprep.subr.mxu0 0.0
    %1456 = vmatpush1.msra.mxu0 0.0
    %1457 = vmatprep.subr.mxu0 0.0
    %1458 = vmatpush1.msra.mxu0 0.0
    %1459 = vmatprep.subr.mxu0 0.0
    %1460 = vmatpush1.msra.mxu0 0.0
    %1461 = vmatprep.subr.mxu0 0.0
    %1462 = vmatpush1.msra.mxu0 0.0
    %1463 = vmatprep.subr.mxu0 0.0
    %1464 = vmatpush1.msra.mxu0 0.0
    %1465 = vmatprep.subr.mxu0 0.0
    %1466 = vmatpush1.msra.mxu0 0.0
    %1467 = vmatprep.subr.mxu0 0.0
    %1468 = vmatpush1.msra.mxu0 0.0
    %1469 = vmatprep.subr.mxu0 0.0
    %1470 = vmatpush1.msra.mxu0 0.0
    %1471 = vmatprep.subr.mxu0 0.0
    %1472 = vmatpush1.msra.mxu0 0.0
    %1473 = vmatprep.subr.mxu0 0.0
    %1474 = vmatpush1.msra.mxu0 0.0
    %1475 = vmatprep.subr.mxu0 0.0
    %1476 = vmatpush1.msra.mxu0 0.0
    %1477 = vmatprep.subr.mxu0 0.0
    %1478 = vmatpush1.msra.mxu0 0.0
    %1479 = vmatprep.subr.mxu0 0.0
    %1480 = vmatpush1.msra.mxu0 %v1252
    %1481 = vmatprep.subr.mxu0 0.0
    %1482 = vmatpush1.msra.mxu0 %v1251
    %1483 = vmatprep.subr.mxu0 0.0
    %1484 = vmatpush1.msra.mxu0 %v1250
    %1485 = vmatprep.subr.mxu0 0.0
    %1486 = vmatpush1.msra.mxu0 %v1249
    %1487 = vmatprep.subr.mxu0 0.0
    %1488 = vmatpush2.msra.mxu0 0.0
    %1489 = vmatprep.subr.mxu0 0.0
    %1490 = vmatpush2.msra.mxu0 0.0
    %1491 = vmatprep.subr.mxu0 0.0
    %1492 = vmatpush2.msra.mxu0 0.0
    %1493 = vmatprep.subr.mxu0 0.0
    %1494 = vmatpush2.msra.mxu0 0.0
    %1495 = vmatprep.subr.mxu0 0.0
    %1496 = vmatpush2.msra.mxu0 0.0
    %1497 = vmatprep.subr.mxu0 0.0
    %1498 = vmatpush2.msra.mxu0 0.0
    %1499 = vmatprep.subr.mxu0 0.0
    %1500 = vmatpush2.msra.mxu0 0.0
    %1501 = vmatprep.subr.mxu0 0.0
    %1502 = vmatpush2.msra.mxu0 0.0
    %1503 = vmatprep.subr.mxu0 0.0
    %1504 = vmatpush2.msra.mxu0 0.0
    %1505 = vmatprep.subr.mxu0 0.0
    %1506 = vmatpush2.msra.mxu0 0.0
    %1507 = vmatprep.subr.mxu0 0.0
    %1508 = vmatpush2.msra.mxu0 0.0
    %1509 = vmatprep.subr.mxu0 0.0
    %1510 = vmatpush2.msra.mxu0 0.0
    %1511 = vmatprep.subr.mxu0 0.0
    %1512 = vmatpush2.msra.mxu0 0.0
    %1513 = vmatprep.subr.mxu0 0.0
    %1514 = vmatpush2.msra.mxu0 0.0
    %1515 = vmatprep.subr.mxu0 0.0
    %1516 = vmatpush2.msra.mxu0 0.0
    %1517 = vmatprep.subr.mxu0 0.0
    %1518 = vmatpush2.msra.mxu0 0.0
    %1519 = vmatprep.mubr.f32.mxu0 0.0
    %1520 = vmatmul.mubr.f32.gmra.mxu0 %v1453
    %v1521 = vpop.f32.mrf.mxu0
    %v1522 = vadd.f32 0.0, %v1521
    %v1523 = vpop.f32.mrf.mxu0
    %1524 = vdwg.mxu0
    %v1525 = vadd.f32 %v1221, %v1522
    %v1526 = vxor.u32 %v1525, 2147483648
    %v1527 = vmul.f32 %v1526, 1.442695
    %v1528 = vpow.pop %v1527
    %v1529 = vadd.f32 %v1528, 1.0
    %v1530 = vrcp.pop %v1529
    %v1531 = vmul.f32 1.0, %v1530
    %v1532 = vmul.f32 %v1531, 2.0
    %v1533 = vsub.f32 %v1532, 1.0
    %v1534 = vmul.f32 %v1531, %v1443
    %1536 = vrot.lane.b32.xlu0 %v1533, 64
    %v1537 = vpop.permute.xlu0 %1536
    %v1539 = vmul.f32 %v1531, %v1537
    %1541 = vrot.lane.b32.xlu0 %v1539, 32
    %v1542 = vpop.permute.xlu0 %1541
    %v1544 = vadd.f32 %v1534, %v1542
    %v1545 = vtanh.pop %v1544
    %1547 = vrot.lane.b32.xlu0 %v1545, 64
    %v1548 = vpop.permute.xlu0 %1547
    %v1550 = vmul.f32 %v1531, %v1548
    %1552 = vrot.lane.b32.xlu0 %v1550, 32
    %v1553 = vpop.permute.xlu0 %1552
    %v1554 = vsel %vm321, %v1553, 0
    %1556 = vmatprep.subr.mxu0 0.0
    %1557 = vmatpush1.msra.mxu0 0.0
    %1558 = vmatprep.subr.mxu0 0.0
    %1559 = vmatpush1.msra.mxu0 0.0
    %1560 = vmatprep.subr.mxu0 0.0
    %1561 = vmatpush1.msra.mxu0 0.0
    %1562 = vmatprep.subr.mxu0 0.0
    %1563 = vmatpush1.msra.mxu0 0.0
    %1564 = vmatprep.subr.mxu0 0.0
    %1565 = vmatpush1.msra.mxu0 0.0
    %1566 = vmatprep.subr.mxu0 0.0
    %1567 = vmatpush1.msra.mxu0 0.0
    %1568 = vmatprep.subr.mxu0 0.0
    %1569 = vmatpush1.msra.mxu0 0.0
    %1570 = vmatprep.subr.mxu0 0.0
    %1571 = vmatpush1.msra.mxu0 0.0
    %1572 = vmatprep.subr.mxu0 0.0
    %1573 = vmatpush1.msra.mxu0 0.0
    %1574 = vmatprep.subr.mxu0 0.0
    %1575 = vmatpush1.msra.mxu0 0.0
    %1576 = vmatprep.subr.mxu0 0.0
    %1577 = vmatpush1.msra.mxu0 0.0
    %1578 = vmatprep.subr.mxu0 0.0
    %1579 = vmatpush1.msra.mxu0 0.0
    %1580 = vmatprep.subr.mxu0 0.0
    %1581 = vmatpush1.msra.mxu0 %v1252
    %1582 = vmatprep.subr.mxu0 0.0
    %1583 = vmatpush1.msra.mxu0 %v1251
    %1584 = vmatprep.subr.mxu0 0.0
    %1585 = vmatpush1.msra.mxu0 %v1250
    %1586 = vmatprep.subr.mxu0 0.0
    %1587 = vmatpush1.msra.mxu0 %v1249
    %1588 = vmatprep.subr.mxu0 0.0
    %1589 = vmatpush2.msra.mxu0 0.0
    %1590 = vmatprep.subr.mxu0 0.0
    %1591 = vmatpush2.msra.mxu0 0.0
    %1592 = vmatprep.subr.mxu0 0.0
    %1593 = vmatpush2.msra.mxu0 0.0
    %1594 = vmatprep.subr.mxu0 0.0
    %1595 = vmatpush2.msra.mxu0 0.0
    %1596 = vmatprep.subr.mxu0 0.0
    %1597 = vmatpush2.msra.mxu0 0.0
    %1598 = vmatprep.subr.mxu0 0.0
    %1599 = vmatpush2.msra.mxu0 0.0
    %1600 = vmatprep.subr.mxu0 0.0
    %1601 = vmatpush2.msra.mxu0 0.0
    %1602 = vmatprep.subr.mxu0 0.0
    %1603 = vmatpush2.msra.mxu0 0.0
    %1604 = vmatprep.subr.mxu0 0.0
    %1605 = vmatpush2.msra.mxu0 0.0
    %1606 = vmatprep.subr.mxu0 0.0
    %1607 = vmatpush2.msra.mxu0 0.0
    %1608 = vmatprep.subr.mxu0 0.0
    %1609 = vmatpush2.msra.mxu0 0.0
    %1610 = vmatprep.subr.mxu0 0.0
    %1611 = vmatpush2.msra.mxu0 0.0
    %1612 = vmatprep.subr.mxu0 0.0
    %1613 = vmatpush2.msra.mxu0 0.0
    %1614 = vmatprep.subr.mxu0 0.0
    %1615 = vmatpush2.msra.mxu0 0.0
    %1616 = vmatprep.subr.mxu0 0.0
    %1617 = vmatpush2.msra.mxu0 0.0
    %1618 = vmatprep.subr.mxu0 0.0
    %1619 = vmatpush2.msra.mxu0 0.0
    %1620 = vmatprep.mubr.f32.mxu0 0.0
    %1621 = vmatmul.mubr.f32.gmra.mxu0 %v1554
    %v1622 = vpop.f32.mrf.mxu0
    %v1623 = vadd.f32 0.0, %v1622
    %v1624 = vpop.f32.mrf.mxu0
    %1625 = vdwg.mxu0
    %v1626 = vadd.f32 %v1226, %v1623
    %v1627 = vxor.u32 %v1626, 2147483648
    %v1628 = vmul.f32 %v1627, 1.442695
    %v1629 = vpow.pop %v1628
    %v1630 = vadd.f32 %v1629, 1.0
    %v1631 = vrcp.pop %v1630
    %v1632 = vmul.f32 1.0, %v1631
    %v1633 = vmul.f32 %v1632, 2.0
    %v1634 = vsub.f32 %v1633, 1.0
    %v1635 = vmul.f32 %v1632, %v1544
    %1637 = vrot.lane.b32.xlu0 %v1634, 64
    %v1638 = vpop.permute.xlu0 %1637
    %v1640 = vmul.f32 %v1632, %v1638
    %1642 = vrot.lane.b32.xlu0 %v1640, 32
    %v1643 = vpop.permute.xlu0 %1642
    %v1645 = vadd.f32 %v1635, %v1643
    %v1646 = vtanh.pop %v1645
    %1648 = vrot.lane.b32.xlu0 %v1646, 64
    %v1649 = vpop.permute.xlu0 %1648
    %v1651 = vmul.f32 %v1632, %v1649
    %1653 = vrot.lane.b32.xlu0 %v1651, 32
    %v1654 = vpop.permute.xlu0 %1653
    %v1655 = vsel %vm321, %v1654, 0
    %1657 = vmatprep.subr.mxu0 0.0
    %1658 = vmatpush1.msra.mxu0 0.0
    %1659 = vmatprep.subr.mxu0 0.0
    %1660 = vmatpush1.msra.mxu0 0.0
    %1661 = vmatprep.subr.mxu0 0.0
    %1662 = vmatpush1.msra.mxu0 0.0
    %1663 = vmatprep.subr.mxu0 0.0
    %1664 = vmatpush1.msra.mxu0 0.0
    %1665 = vmatprep.subr.mxu0 0.0
    %1666 = vmatpush1.msra.mxu0 0.0
    %1667 = vmatprep.subr.mxu0 0.0
    %1668 = vmatpush1.msra.mxu0 0.0
    %1669 = vmatprep.subr.mxu0 0.0
    %1670 = vmatpush1.msra.mxu0 0.0
    %1671 = vmatprep.subr.mxu0 0.0
    %1672 = vmatpush1.msra.mxu0 0.0
    %1673 = vmatprep.subr.mxu0 0.0
    %1674 = vmatpush1.msra.mxu0 0.0
    %1675 = vmatprep.subr.mxu0 0.0
    %1676 = vmatpush1.msra.mxu0 0.0
    %1677 = vmatprep.subr.mxu0 0.0
    %1678 = vmatpush1.msra.mxu0 0.0
    %1679 = vmatprep.subr.mxu0 0.0
    %1680 = vmatpush1.msra.mxu0 0.0
    %1681 = vmatprep.subr.mxu0 0.0
    %1682 = vmatpush1.msra.mxu0 %v1252
    %1683 = vmatprep.subr.mxu0 0.0
    %1684 = vmatpush1.msra.mxu0 %v1251
    %1685 = vmatprep.subr.mxu0 0.0
    %1686 = vmatpush1.msra.mxu0 %v1250
    %1687 = vmatprep.subr.mxu0 0.0
    %1688 = vmatpush1.msra.mxu0 %v1249
    %1689 = vmatprep.subr.mxu0 0.0
    %1690 = vmatpush2.msra.mxu0 0.0
    %1691 = vmatprep.subr.mxu0 0.0
    %1692 = vmatpush2.msra.mxu0 0.0
    %1693 = vmatprep.subr.mxu0 0.0
    %1694 = vmatpush2.msra.mxu0 0.0
    %1695 = vmatprep.subr.mxu0 0.0
    %1696 = vmatpush2.msra.mxu0 0.0
    %1697 = vmatprep.subr.mxu0 0.0
    %1698 = vmatpush2.msra.mxu0 0.0
    %1699 = vmatprep.subr.mxu0 0.0
    %1700 = vmatpush2.msra.mxu0 0.0
    %1701 = vmatprep.subr.mxu0 0.0
    %1702 = vmatpush2.msra.mxu0 0.0
    %1703 = vmatprep.subr.mxu0 0.0
    %1704 = vmatpush2.msra.mxu0 0.0
    %1705 = vmatprep.subr.mxu0 0.0
    %1706 = vmatpush2.msra.mxu0 0.0
    %1707 = vmatprep.subr.mxu0 0.0
    %1708 = vmatpush2.msra.mxu0 0.0
    %1709 = vmatprep.subr.mxu0 0.0
    %1710 = vmatpush2.msra.mxu0 0.0
    %1711 = vmatprep.subr.mxu0 0.0
    %1712 = vmatpush2.msra.mxu0 0.0
    %1713 = vmatprep.subr.mxu0 0.0
    %1714 = vmatpush2.msra.mxu0 0.0
    %1715 = vmatprep.subr.mxu0 0.0
    %1716 = vmatpush2.msra.mxu0 0.0
    %1717 = vmatprep.subr.mxu0 0.0
    %1718 = vmatpush2.msra.mxu0 0.0
    %1719 = vmatprep.subr.mxu0 0.0
    %1720 = vmatpush2.msra.mxu0 0.0
    %1721 = vmatprep.mubr.f32.mxu0 0.0
    %1722 = vmatmul.mubr.f32.gmra.mxu0 %v1655
    %v1723 = vpop.f32.mrf.mxu0
    %v1724 = vadd.f32 0.0, %v1723
    %v1725 = vpop.f32.mrf.mxu0
    %1726 = vdwg.mxu0
    %v1727 = vadd.f32 %v1231, %v1724
    %v1728 = vxor.u32 %v1727, 2147483648
    %v1729 = vmul.f32 %v1728, 1.442695
    %v1730 = vpow.pop %v1729
    %v1731 = vadd.f32 %v1730, 1.0
    %v1732 = vrcp.pop %v1731
    %v1733 = vmul.f32 1.0, %v1732
    %v1734 = vmul.f32 %v1733, 2.0
    %v1735 = vsub.f32 %v1734, 1.0
    %v1736 = vmul.f32 %v1733, %v1645
    %1738 = vrot.lane.b32.xlu0 %v1735, 64
    %v1739 = vpop.permute.xlu0 %1738
    %v1741 = vmul.f32 %v1733, %v1739
    %1743 = vrot.lane.b32.xlu0 %v1741, 32
    %v1744 = vpop.permute.xlu0 %1743
    %v1746 = vadd.f32 %v1736, %v1744
    %v1747 = vtanh.pop %v1746
    %1749 = vrot.lane.b32.xlu0 %v1747, 64
    %v1750 = vpop.permute.xlu0 %1749
    %v1752 = vmul.f32 %v1733, %v1750
    %1754 = vrot.lane.b32.xlu0 %v1752, 32
    %v1755 = vpop.permute.xlu0 %1754
    %v1756 = vsel %vm321, %v1755, 0
    %1758 = vmatprep.subr.mxu0 0.0
    %1759 = vmatpush1.msra.mxu0 0.0
    %1760 = vmatprep.subr.mxu0 0.0
    %1761 = vmatpush1.msra.mxu0 0.0
    %1762 = vmatprep.subr.mxu0 0.0
    %1763 = vmatpush1.msra.mxu0 0.0
    %1764 = vmatprep.subr.mxu0 0.0
    %1765 = vmatpush1.msra.mxu0 0.0
    %1766 = vmatprep.subr.mxu0 0.0
    %1767 = vmatpush1.msra.mxu0 0.0
    %1768 = vmatprep.subr.mxu0 0.0
    %1769 = vmatpush1.msra.mxu0 0.0
    %1770 = vmatprep.subr.mxu0 0.0
    %1771 = vmatpush1.msra.mxu0 0.0
    %1772 = vmatprep.subr.mxu0 0.0
    %1773 = vmatpush1.msra.mxu0 0.0
    %1774 = vmatprep.subr.mxu0 0.0
    %1775 = vmatpush1.msra.mxu0 0.0
    %1776 = vmatprep.subr.mxu0 0.0
    %1777 = vmatpush1.msra.mxu0 0.0
    %1778 = vmatprep.subr.mxu0 0.0
    %1779 = vmatpush1.msra.mxu0 0.0
    %1780 = vmatprep.subr.mxu0 0.0
    %1781 = vmatpush1.msra.mxu0 0.0
    %1782 = vmatprep.subr.mxu0 0.0
    %1783 = vmatpush1.msra.mxu0 %v1252
    %1784 = vmatprep.subr.mxu0 0.0
    %1785 = vmatpush1.msra.mxu0 %v1251
    %1786 = vmatprep.subr.mxu0 0.0
    %1787 = vmatpush1.msra.mxu0 %v1250
    %1788 = vmatprep.subr.mxu0 0.0
    %1789 = vmatpush1.msra.mxu0 %v1249
    %1790 = vmatprep.subr.mxu0 0.0
    %1791 = vmatpush2.msra.mxu0 0.0
    %1792 = vmatprep.subr.mxu0 0.0
    %1793 = vmatpush2.msra.mxu0 0.0
    %1794 = vmatprep.subr.mxu0 0.0
    %1795 = vmatpush2.msra.mxu0 0.0
    %1796 = vmatprep.subr.mxu0 0.0
    %1797 = vmatpush2.msra.mxu0 0.0
    %1798 = vmatprep.subr.mxu0 0.0
    %1799 = vmatpush2.msra.mxu0 0.0
    %1800 = vmatprep.subr.mxu0 0.0
    %1801 = vmatpush2.msra.mxu0 0.0
    %1802 = vmatprep.subr.mxu0 0.0
    %1803 = vmatpush2.msra.mxu0 0.0
    %1804 = vmatprep.subr.mxu0 0.0
    %1805 = vmatpush2.msra.mxu0 0.0
    %1806 = vmatprep.subr.mxu0 0.0
    %1807 = vmatpush2.msra.mxu0 0.0
    %1808 = vmatprep.subr.mxu0 0.0
    %1809 = vmatpush2.msra.mxu0 0.0
    %1810 = vmatprep.subr.mxu0 0.0
    %1811 = vmatpush2.msra.mxu0 0.0
    %1812 = vmatprep.subr.mxu0 0.0
    %1813 = vmatpush2.msra.mxu0 0.0
    %1814 = vmatprep.subr.mxu0 0.0
    %1815 = vmatpush2.msra.mxu0 0.0
    %1816 = vmatprep.subr.mxu0 0.0
    %1817 = vmatpush2.msra.mxu0 0.0
    %1818 = vmatprep.subr.mxu0 0.0
    %1819 = vmatpush2.msra.mxu0 0.0
    %1820 = vmatprep.subr.mxu0 0.0
    %1821 = vmatpush2.msra.mxu0 0.0
    %1822 = vmatprep.mubr.f32.mxu0 0.0
    %1823 = vmatmul.mubr.f32.gmra.mxu0 %v1756
    %v1824 = vpop.f32.mrf.mxu0
    %v1825 = vadd.f32 0.0, %v1824
    %v1826 = vpop.f32.mrf.mxu0
    %1827 = vdwg.mxu0
    %v1828 = vadd.f32 %v1236, %v1825
    %v1829 = vxor.u32 %v1828, 2147483648
    %v1830 = vmul.f32 %v1829, 1.442695
    %v1831 = vpow.pop %v1830
    %v1832 = vadd.f32 %v1831, 1.0
    %v1833 = vrcp.pop %v1832
    %v1834 = vmul.f32 1.0, %v1833
    %v1835 = vmul.f32 %v1834, 2.0
    %v1836 = vsub.f32 %v1835, 1.0
    %v1837 = vmul.f32 %v1834, %v1746
    %1839 = vrot.lane.b32.xlu0 %v1836, 64
    %v1840 = vpop.permute.xlu0 %1839
    %v1842 = vmul.f32 %v1834, %v1840
    %1844 = vrot.lane.b32.xlu0 %v1842, 32
    %v1845 = vpop.permute.xlu0 %1844
    %v1847 = vadd.f32 %v1837, %v1845
    %v1848 = vtanh.pop %v1847
    %1850 = vrot.lane.b32.xlu0 %v1848, 64
    %v1851 = vpop.permute.xlu0 %1850
    %v1853 = vmul.f32 %v1834, %v1851
    %1855 = vrot.lane.b32.xlu0 %v1853, 32
    %v1856 = vpop.permute.xlu0 %1855
    %v1857 = vsel %vm321, %v1856, 0
    %1859 = vmatprep.subr.mxu0 0.0
    %1860 = vmatpush1.msra.mxu0 0.0
    %1861 = vmatprep.subr.mxu0 0.0
    %1862 = vmatpush1.msra.mxu0 0.0
    %1863 = vmatprep.subr.mxu0 0.0
    %1864 = vmatpush1.msra.mxu0 0.0
    %1865 = vmatprep.subr.mxu0 0.0
    %1866 = vmatpush1.msra.mxu0 0.0
    %1867 = vmatprep.subr.mxu0 0.0
    %1868 = vmatpush1.msra.mxu0 0.0
    %1869 = vmatprep.subr.mxu0 0.0
    %1870 = vmatpush1.msra.mxu0 0.0
    %1871 = vmatprep.subr.mxu0 0.0
    %1872 = vmatpush1.msra.mxu0 0.0
    %1873 = vmatprep.subr.mxu0 0.0
    %1874 = vmatpush1.msra.mxu0 0.0
    %1875 = vmatprep.subr.mxu0 0.0
    %1876 = vmatpush1.msra.mxu0 0.0
    %1877 = vmatprep.subr.mxu0 0.0
    %1878 = vmatpush1.msra.mxu0 0.0
    %1879 = vmatprep.subr.mxu0 0.0
    %1880 = vmatpush1.msra.mxu0 0.0
    %1881 = vmatprep.subr.mxu0 0.0
    %1882 = vmatpush1.msra.mxu0 0.0
    %1883 = vmatprep.subr.mxu0 0.0
    %1884 = vmatpush1.msra.mxu0 %v1252
    %1885 = vmatprep.subr.mxu0 0.0
    %1886 = vmatpush1.msra.mxu0 %v1251
    %1887 = vmatprep.subr.mxu0 0.0
    %1888 = vmatpush1.msra.mxu0 %v1250
    %1889 = vmatprep.subr.mxu0 0.0
    %1890 = vmatpush1.msra.mxu0 %v1249
    %1891 = vmatprep.subr.mxu0 0.0
    %1892 = vmatpush2.msra.mxu0 0.0
    %1893 = vmatprep.subr.mxu0 0.0
    %1894 = vmatpush2.msra.mxu0 0.0
    %1895 = vmatprep.subr.mxu0 0.0
    %1896 = vmatpush2.msra.mxu0 0.0
    %1897 = vmatprep.subr.mxu0 0.0
    %1898 = vmatpush2.msra.mxu0 0.0
    %1899 = vmatprep.subr.mxu0 0.0
    %1900 = vmatpush2.msra.mxu0 0.0
    %1901 = vmatprep.subr.mxu0 0.0
    %1902 = vmatpush2.msra.mxu0 0.0
    %1903 = vmatprep.subr.mxu0 0.0
    %1904 = vmatpush2.msra.mxu0 0.0
    %1905 = vmatprep.subr.mxu0 0.0
    %1906 = vmatpush2.msra.mxu0 0.0
    %1907 = vmatprep.subr.mxu0 0.0
    %1908 = vmatpush2.msra.mxu0 0.0
    %1909 = vmatprep.subr.mxu0 0.0
    %1910 = vmatpush2.msra.mxu0 0.0
    %1911 = vmatprep.subr.mxu0 0.0
    %1912 = vmatpush2.msra.mxu0 0.0
    %1913 = vmatprep.subr.mxu0 0.0
    %1914 = vmatpush2.msra.mxu0 0.0
    %1915 = vmatprep.subr.mxu0 0.0
    %1916 = vmatpush2.msra.mxu0 0.0
    %1917 = vmatprep.subr.mxu0 0.0
    %1918 = vmatpush2.msra.mxu0 0.0
    %1919 = vmatprep.subr.mxu0 0.0
    %1920 = vmatpush2.msra.mxu0 0.0
    %1921 = vmatprep.subr.mxu0 0.0
    %1922 = vmatpush2.msra.mxu0 0.0
    %1923 = vmatprep.mubr.f32.mxu0 0.0
    %1924 = vmatmul.mubr.f32.gmra.mxu0 %v1857
    %v1925 = vpop.f32.mrf.mxu0
    %v1926 = vadd.f32 0.0, %v1925
    %v1927 = vpop.f32.mrf.mxu0
    %1928 = vdwg.mxu0
    %v1929 = vadd.f32 %v1241, %v1926
    %v1930 = vxor.u32 %v1929, 2147483648
    %v1931 = vmul.f32 %v1930, 1.442695
    %v1932 = vpow.pop %v1931
    %v1933 = vadd.f32 %v1932, 1.0
    %v1934 = vrcp.pop %v1933
    %v1935 = vmul.f32 1.0, %v1934
    %v1936 = vmul.f32 %v1935, 2.0
    %v1937 = vsub.f32 %v1936, 1.0
    %v1938 = vmul.f32 %v1935, %v1847
    %1940 = vrot.lane.b32.xlu0 %v1937, 64
    %v1941 = vpop.permute.xlu0 %1940
    %v1943 = vmul.f32 %v1935, %v1941
    %1945 = vrot.lane.b32.xlu0 %v1943, 32
    %v1946 = vpop.permute.xlu0 %1945
    %v1948 = vadd.f32 %v1938, %v1946
    %v1949 = vtanh.pop %v1948
    %1951 = vrot.lane.b32.xlu0 %v1949, 64
    %v1952 = vpop.permute.xlu0 %1951
    %v1954 = vmul.f32 %v1935, %v1952
    %1956 = vrot.lane.b32.xlu0 %v1954, 32
    %v1957 = vpop.permute.xlu0 %1956
    %v1958 = vsel %vm321, %v1957, 0
    %1960 = vmatprep.subr.mxu0 0.0
    %1961 = vmatpush1.msra.mxu0 0.0
    %1962 = vmatprep.subr.mxu0 0.0
    %1963 = vmatpush1.msra.mxu0 0.0
    %1964 = vmatprep.subr.mxu0 0.0
    %1965 = vmatpush1.msra.mxu0 0.0
    %1966 = vmatprep.subr.mxu0 0.0
    %1967 = vmatpush1.msra.mxu0 0.0
    %1968 = vmatprep.subr.mxu0 0.0
    %1969 = vmatpush1.msra.mxu0 0.0
    %1970 = vmatprep.subr.mxu0 0.0
    %1971 = vmatpush1.msra.mxu0 0.0
    %1972 = vmatprep.subr.mxu0 0.0
    %1973 = vmatpush1.msra.mxu0 0.0
    %1974 = vmatprep.subr.mxu0 0.0
    %1975 = vmatpush1.msra.mxu0 0.0
    %1976 = vmatprep.subr.mxu0 0.0
    %1977 = vmatpush1.msra.mxu0 0.0
    %1978 = vmatprep.subr.mxu0 0.0
    %1979 = vmatpush1.msra.mxu0 0.0
    %1980 = vmatprep.subr.mxu0 0.0
    %1981 = vmatpush1.msra.mxu0 0.0
    %1982 = vmatprep.subr.mxu0 0.0
    %1983 = vmatpush1.msra.mxu0 0.0
    %1984 = vmatprep.subr.mxu0 0.0
    %1985 = vmatpush1.msra.mxu0 %v1252
    %1986 = vmatprep.subr.mxu0 0.0
    %1987 = vmatpush1.msra.mxu0 %v1251
    %1988 = vmatprep.subr.mxu0 0.0
    %1989 = vmatpush1.msra.mxu0 %v1250
    %1990 = vmatprep.subr.mxu0 0.0
    %1991 = vmatpush1.msra.mxu0 %v1249
    %1992 = vmatprep.subr.mxu0 0.0
    %1993 = vmatpush2.msra.mxu0 0.0
    %1994 = vmatprep.subr.mxu0 0.0
    %1995 = vmatpush2.msra.mxu0 0.0
    %1996 = vmatprep.subr.mxu0 0.0
    %1997 = vmatpush2.msra.mxu0 0.0
    %1998 = vmatprep.subr.mxu0 0.0
    %1999 = vmatpush2.msra.mxu0 0.0
    %2000 = vmatprep.subr.mxu0 0.0
    %2001 = vmatpush2.msra.mxu0 0.0
    %2002 = vmatprep.subr.mxu0 0.0
    %2003 = vmatpush2.msra.mxu0 0.0
    %2004 = vmatprep.subr.mxu0 0.0
    %2005 = vmatpush2.msra.mxu0 0.0
    %2006 = vmatprep.subr.mxu0 0.0
    %2007 = vmatpush2.msra.mxu0 0.0
    %2008 = vmatprep.subr.mxu0 0.0
    %2009 = vmatpush2.msra.mxu0 0.0
    %2010 = vmatprep.subr.mxu0 0.0
    %2011 = vmatpush2.msra.mxu0 0.0
    %2012 = vmatprep.subr.mxu0 0.0
    %2013 = vmatpush2.msra.mxu0 0.0
    %2014 = vmatprep.subr.mxu0 0.0
    %2015 = vmatpush2.msra.mxu0 0.0
    %2016 = vmatprep.subr.mxu0 0.0
    %2017 = vmatpush2.msra.mxu0 0.0
    %2018 = vmatprep.subr.mxu0 0.0
    %2019 = vmatpush2.msra.mxu0 0.0
    %2020 = vmatprep.subr.mxu0 0.0
    %2021 = vmatpush2.msra.mxu0 0.0
    %2022 = vmatprep.subr.mxu0 0.0
    %2023 = vmatpush2.msra.mxu0 0.0
    %2024 = vmatprep.mubr.f32.mxu0 0.0
    %2025 = vmatmul.mubr.f32.gmra.mxu0 %v1958
    %v2026 = vpop.f32.mrf.mxu0
    %v2027 = vadd.f32 0.0, %v2026
    %v2028 = vpop.f32.mrf.mxu0
    %2029 = vdwg.mxu0
    %v2030 = vadd.f32 %v1246, %v2027
    %v2031 = vxor.u32 %v2030, 2147483648
    %v2032 = vmul.f32 %v2031, 1.442695
    %v2033 = vpow.pop %v2032
    %v2034 = vadd.f32 %v2033, 1.0
    %v2035 = vrcp.pop %v2034
    %v2036 = vmul.f32 1.0, %v2035
    %v2037 = vmul.f32 %v2036, 2.0
    %v2038 = vsub.f32 %v2037, 1.0
    %v2039 = vmul.f32 %v2036, %v1948
    %2041 = vrot.lane.b32.xlu0 %v2038, 64
    %v2042 = vpop.permute.xlu0 %2041
    %v2044 = vmul.f32 %v2036, %v2042
    %2046 = vrot.lane.b32.xlu0 %v2044, 32
    %v2047 = vpop.permute.xlu0 %2046
    %v2049 = vadd.f32 %v2039, %v2047
    %v2050 = vtanh.pop %v2049
    %2052 = vrot.lane.b32.xlu0 %v2050, 64
    %v2053 = vpop.permute.xlu0 %2052
    %v2055 = vmul.f32 %v2036, %v2053
    %v2056 = vld [vmem:[#allocation13] sm:$0xff]
    %v2057 = vld [vmem:[#allocation13 + $0x8] sm:$0xff]
    %v2058 = vld [vmem:[#allocation13 + $0x10] sm:$0xff]
    %v2059 = vld [vmem:[#allocation13 + $0x18] sm:$0xff]
    %v2060 = vld [vmem:[#allocation14] sm:$0x1]
    %v2062 = vlaneseq
    %v2063 = vshrl.u32 %v2062, 7
    %v2064 = vsub.s32 0, %v2063
    %v2065 = vrot.slane %v2060, %v2064
    %2067 = vmatprep.subr.mxu0 0.0
    %2068 = vmatpush1.msra.mxu0 0.0
    %2069 = vmatprep.subr.mxu0 0.0
    %2070 = vmatpush1.msra.mxu0 0.0
    %2071 = vmatprep.subr.mxu0 0.0
    %2072 = vmatpush1.msra.mxu0 0.0
    %2073 = vmatprep.subr.mxu0 0.0
    %2074 = vmatpush1.msra.mxu0 0.0
    %2075 = vmatprep.subr.mxu0 0.0
    %2076 = vmatpush1.msra.mxu0 0.0
    %2077 = vmatprep.subr.mxu0 0.0
    %2078 = vmatpush1.msra.mxu0 0.0
    %2079 = vmatprep.subr.mxu0 0.0
    %2080 = vmatpush1.msra.mxu0 0.0
    %2081 = vmatprep.subr.mxu0 0.0
    %2082 = vmatpush1.msra.mxu0 0.0
    %2083 = vmatprep.subr.mxu0 0.0
    %2084 = vmatpush1.msra.mxu0 0.0
    %2085 = vmatprep.subr.mxu0 0.0
    %2086 = vmatpush1.msra.mxu0 0.0
    %2087 = vmatprep.subr.mxu0 0.0
    %2088 = vmatpush1.msra.mxu0 0.0
    %2089 = vmatprep.subr.mxu0 0.0
    %2090 = vmatpush1.msra.mxu0 0.0
    %2091 = vmatprep.subr.mxu0 0.0
    %2092 = vmatpush1.msra.mxu0 %v2059
    %2093 = vmatprep.subr.mxu0 0.0
    %2094 = vmatpush1.msra.mxu0 %v2058
    %2095 = vmatprep.subr.mxu0 0.0
    %2096 = vmatpush1.msra.mxu0 %v2057
    %2097 = vmatprep.subr.mxu0 0.0
    %2098 = vmatpush1.msra.mxu0 %v2056
    %2099 = vmatprep.subr.mxu0 0.0
    %2100 = vmatpush2.msra.mxu0 0.0
    %2101 = vmatprep.subr.mxu0 0.0
    %2102 = vmatpush2.msra.mxu0 0.0
    %2103 = vmatprep.subr.mxu0 0.0
    %2104 = vmatpush2.msra.mxu0 0.0
    %2105 = vmatprep.subr.mxu0 0.0
    %2106 = vmatpush2.msra.mxu0 0.0
    %2107 = vmatprep.subr.mxu0 0.0
    %2108 = vmatpush2.msra.mxu0 0.0
    %2109 = vmatprep.subr.mxu0 0.0
    %2110 = vmatpush2.msra.mxu0 0.0
    %2111 = vmatprep.subr.mxu0 0.0
    %2112 = vmatpush2.msra.mxu0 0.0
    %2113 = vmatprep.subr.mxu0 0.0
    %2114 = vmatpush2.msra.mxu0 0.0
    %2115 = vmatprep.subr.mxu0 0.0
    %2116 = vmatpush2.msra.mxu0 0.0
    %2117 = vmatprep.subr.mxu0 0.0
    %2118 = vmatpush2.msra.mxu0 0.0
    %2119 = vmatprep.subr.mxu0 0.0
    %2120 = vmatpush2.msra.mxu0 0.0
    %2121 = vmatprep.subr.mxu0 0.0
    %2122 = vmatpush2.msra.mxu0 0.0
    %2123 = vmatprep.subr.mxu0 0.0
    %2124 = vmatpush2.msra.mxu0 0.0
    %2125 = vmatprep.subr.mxu0 0.0
    %2126 = vmatpush2.msra.mxu0 0.0
    %2127 = vmatprep.subr.mxu0 0.0
    %2128 = vmatpush2.msra.mxu0 0.0
    %2129 = vmatprep.subr.mxu0 0.0
    %2130 = vmatpush2.msra.mxu0 0.0
    %2131 = vmatprep.mubr.f32.mxu0 0.0
    %2132 = vmatmul.mubr.f32.gmra.mxu0 %v1142
    %v2133 = vpop.f32.mrf.mxu0
    %v2134 = vadd.f32 %v2065, %v2133
    %v2135 = vpop.f32.mrf.mxu0
    %2136 = vdwg.mxu0
    %v2137 = vxor.u32 %v2134, 2147483648
    %v2138 = vmul.f32 %v2137, 1.442695
    %v2139 = vpow.pop %v2138
    %v2140 = vadd.f32 %v2139, 1.0
    %v2141 = vrcp.pop %v2140
    %v2142 = vmul.f32 1.0, %v2141
    %v2143 = vmul.f32 %v2142, 2.0
    %v2144 = vsub.f32 %v2143, 1.0
    %v2145 = vmul.f32 %v2142, %v1121
    %2147 = vrot.lane.b32.xlu0 %v2144, 64
    %v2148 = vpop.permute.xlu0 %2147
    %v2150 = vmul.f32 %v2142, %v2148
    %2152 = vrot.lane.b32.xlu0 %v2150, 32
    %v2153 = vpop.permute.xlu0 %2152
    %v2155 = vadd.f32 %v2145, %v2153
    %v2156 = vtanh.pop %v2155
    %2158 = vrot.lane.b32.xlu0 %v2156, 64
    %v2159 = vpop.permute.xlu0 %2158
    %v2161 = vmul.f32 %v2142, %v2159
    %2163 = vrot.lane.b32.xlu0 %v2161, 32
    %v2164 = vpop.permute.xlu0 %2163
    %v2165 = vsel %vm321, %v2164, 0
    %2167 = vmatprep.subr.mxu0 0.0
    %2168 = vmatpush1.msra.mxu0 0.0
    %2169 = vmatprep.subr.mxu0 0.0
    %2170 = vmatpush1.msra.mxu0 0.0
    %2171 = vmatprep.subr.mxu0 0.0
    %2172 = vmatpush1.msra.mxu0 0.0
    %2173 = vmatprep.subr.mxu0 0.0
    %2174 = vmatpush1.msra.mxu0 0.0
    %2175 = vmatprep.subr.mxu0 0.0
    %2176 = vmatpush1.msra.mxu0 0.0
    %2177 = vmatprep.subr.mxu0 0.0
    %2178 = vmatpush1.msra.mxu0 0.0
    %2179 = vmatprep.subr.mxu0 0.0
    %2180 = vmatpush1.msra.mxu0 0.0
    %2181 = vmatprep.subr.mxu0 0.0
    %2182 = vmatpush1.msra.mxu0 0.0
    %2183 = vmatprep.subr.mxu0 0.0
    %2184 = vmatpush1.msra.mxu0 0.0
    %2185 = vmatprep.subr.mxu0 0.0
    %2186 = vmatpush1.msra.mxu0 0.0
    %2187 = vmatprep.subr.mxu0 0.0
    %2188 = vmatpush1.msra.mxu0 0.0
    %2189 = vmatprep.subr.mxu0 0.0
    %2190 = vmatpush1.msra.mxu0 0.0
    %2191 = vmatprep.subr.mxu0 0.0
    %2192 = vmatpush1.msra.mxu0 %v2059
    %2193 = vmatprep.subr.mxu0 0.0
    %2194 = vmatpush1.msra.mxu0 %v2058
    %2195 = vmatprep.subr.mxu0 0.0
    %2196 = vmatpush1.msra.mxu0 %v2057
    %2197 = vmatprep.subr.mxu0 0.0
    %2198 = vmatpush1.msra.mxu0 %v2056
    %2199 = vmatprep.subr.mxu0 0.0
    %2200 = vmatpush2.msra.mxu0 0.0
    %2201 = vmatprep.subr.mxu0 0.0
    %2202 = vmatpush2.msra.mxu0 0.0
    %2203 = vmatprep.subr.mxu0 0.0
    %2204 = vmatpush2.msra.mxu0 0.0
    %2205 = vmatprep.subr.mxu0 0.0
    %2206 = vmatpush2.msra.mxu0 0.0
    %2207 = vmatprep.subr.mxu0 0.0
    %2208 = vmatpush2.msra.mxu0 0.0
    %2209 = vmatprep.subr.mxu0 0.0
    %2210 = vmatpush2.msra.mxu0 0.0
    %2211 = vmatprep.subr.mxu0 0.0
    %2212 = vmatpush2.msra.mxu0 0.0
    %2213 = vmatprep.subr.mxu0 0.0
    %2214 = vmatpush2.msra.mxu0 0.0
    %2215 = vmatprep.subr.mxu0 0.0
    %2216 = vmatpush2.msra.mxu0 0.0
    %2217 = vmatprep.subr.mxu0 0.0
    %2218 = vmatpush2.msra.mxu0 0.0
    %2219 = vmatprep.subr.mxu0 0.0
    %2220 = vmatpush2.msra.mxu0 0.0
    %2221 = vmatprep.subr.mxu0 0.0
    %2222 = vmatpush2.msra.mxu0 0.0
    %2223 = vmatprep.subr.mxu0 0.0
    %2224 = vmatpush2.msra.mxu0 0.0
    %2225 = vmatprep.subr.mxu0 0.0
    %2226 = vmatpush2.msra.mxu0 0.0
    %2227 = vmatprep.subr.mxu0 0.0
    %2228 = vmatpush2.msra.mxu0 0.0
    %2229 = vmatprep.subr.mxu0 0.0
    %2230 = vmatpush2.msra.mxu0 0.0
    %2231 = vmatprep.mubr.f32.mxu0 0.0
    %2232 = vmatmul.mubr.f32.gmra.mxu0 %v2165
    %v2233 = vpop.f32.mrf.mxu0
    %v2234 = vadd.f32 %v2065, %v2233
    %v2235 = vpop.f32.mrf.mxu0
    %2236 = vdwg.mxu0
    %v2237 = vxor.u32 %v2234, 2147483648
    %v2238 = vmul.f32 %v2237, 1.442695
    %v2239 = vpow.pop %v2238
    %v2240 = vadd.f32 %v2239, 1.0
    %v2241 = vrcp.pop %v2240
    %v2242 = vmul.f32 1.0, %v2241
    %v2243 = vmul.f32 %v2242, 2.0
    %v2244 = vsub.f32 %v2243, 1.0
    %v2245 = vmul.f32 %v2242, %v2155
    %2247 = vrot.lane.b32.xlu0 %v2244, 64
    %v2248 = vpop.permute.xlu0 %2247
    %v2250 = vmul.f32 %v2242, %v2248
    %2252 = vrot.lane.b32.xlu0 %v2250, 32
    %v2253 = vpop.permute.xlu0 %2252
    %v2255 = vadd.f32 %v2245, %v2253
    %v2256 = vtanh.pop %v2255
    %2258 = vrot.lane.b32.xlu0 %v2256, 64
    %v2259 = vpop.permute.xlu0 %2258
    %v2261 = vmul.f32 %v2242, %v2259
    %2263 = vrot.lane.b32.xlu0 %v2261, 32
    %v2264 = vpop.permute.xlu0 %2263
    %v2265 = vsel %vm321, %v2264, 0
    %2267 = vmatprep.subr.mxu0 0.0
    %2268 = vmatpush1.msra.mxu0 0.0
    %2269 = vmatprep.subr.mxu0 0.0
    %2270 = vmatpush1.msra.mxu0 0.0
    %2271 = vmatprep.subr.mxu0 0.0
    %2272 = vmatpush1.msra.mxu0 0.0
    %2273 = vmatprep.subr.mxu0 0.0
    %2274 = vmatpush1.msra.mxu0 0.0
    %2275 = vmatprep.subr.mxu0 0.0
    %2276 = vmatpush1.msra.mxu0 0.0
    %2277 = vmatprep.subr.mxu0 0.0
    %2278 = vmatpush1.msra.mxu0 0.0
    %2279 = vmatprep.subr.mxu0 0.0
    %2280 = vmatpush1.msra.mxu0 0.0
    %2281 = vmatprep.subr.mxu0 0.0
    %2282 = vmatpush1.msra.mxu0 0.0
    %2283 = vmatprep.subr.mxu0 0.0
    %2284 = vmatpush1.msra.mxu0 0.0
    %2285 = vmatprep.subr.mxu0 0.0
    %2286 = vmatpush1.msra.mxu0 0.0
    %2287 = vmatprep.subr.mxu0 0.0
    %2288 = vmatpush1.msra.mxu0 0.0
    %2289 = vmatprep.subr.mxu0 0.0
    %2290 = vmatpush1.msra.mxu0 0.0
    %2291 = vmatprep.subr.mxu0 0.0
    %2292 = vmatpush1.msra.mxu0 %v2059
    %2293 = vmatprep.subr.mxu0 0.0
    %2294 = vmatpush1.msra.mxu0 %v2058
    %2295 = vmatprep.subr.mxu0 0.0
    %2296 = vmatpush1.msra.mxu0 %v2057
    %2297 = vmatprep.subr.mxu0 0.0
    %2298 = vmatpush1.msra.mxu0 %v2056
    %2299 = vmatprep.subr.mxu0 0.0
    %2300 = vmatpush2.msra.mxu0 0.0
    %2301 = vmatprep.subr.mxu0 0.0
    %2302 = vmatpush2.msra.mxu0 0.0
    %2303 = vmatprep.subr.mxu0 0.0
    %2304 = vmatpush2.msra.mxu0 0.0
    %2305 = vmatprep.subr.mxu0 0.0
    %2306 = vmatpush2.msra.mxu0 0.0
    %2307 = vmatprep.subr.mxu0 0.0
    %2308 = vmatpush2.msra.mxu0 0.0
    %2309 = vmatprep.subr.mxu0 0.0
    %2310 = vmatpush2.msra.mxu0 0.0
    %2311 = vmatprep.subr.mxu0 0.0
    %2312 = vmatpush2.msra.mxu0 0.0
    %2313 = vmatprep.subr.mxu0 0.0
    %2314 = vmatpush2.msra.mxu0 0.0
    %2315 = vmatprep.subr.mxu0 0.0
    %2316 = vmatpush2.msra.mxu0 0.0
    %2317 = vmatprep.subr.mxu0 0.0
    %2318 = vmatpush2.msra.mxu0 0.0
    %2319 = vmatprep.subr.mxu0 0.0
    %2320 = vmatpush2.msra.mxu0 0.0
    %2321 = vmatprep.subr.mxu0 0.0
    %2322 = vmatpush2.msra.mxu0 0.0
    %2323 = vmatprep.subr.mxu0 0.0
    %2324 = vmatpush2.msra.mxu0 0.0
    %2325 = vmatprep.subr.mxu0 0.0
    %2326 = vmatpush2.msra.mxu0 0.0
    %2327 = vmatprep.subr.mxu0 0.0
    %2328 = vmatpush2.msra.mxu0 0.0
    %2329 = vmatprep.subr.mxu0 0.0
    %2330 = vmatpush2.msra.mxu0 0.0
    %2331 = vmatprep.mubr.f32.mxu0 0.0
    %2332 = vmatmul.mubr.f32.gmra.mxu0 %v2265
    %v2333 = vpop.f32.mrf.mxu0
    %v2334 = vadd.f32 %v2065, %v2333
    %v2335 = vpop.f32.mrf.mxu0
    %2336 = vdwg.mxu0
    %v2337 = vxor.u32 %v2334, 2147483648
    %v2338 = vmul.f32 %v2337, 1.442695
    %v2339 = vpow.pop %v2338
    %v2340 = vadd.f32 %v2339, 1.0
    %v2341 = vrcp.pop %v2340
    %v2342 = vmul.f32 1.0, %v2341
    %v2343 = vmul.f32 %v2342, 2.0
    %v2344 = vsub.f32 %v2343, 1.0
    %v2345 = vmul.f32 %v2342, %v2255
    %2347 = vrot.lane.b32.xlu0 %v2344, 64
    %v2348 = vpop.permute.xlu0 %2347
    %v2350 = vmul.f32 %v2342, %v2348
    %2352 = vrot.lane.b32.xlu0 %v2350, 32
    %v2353 = vpop.permute.xlu0 %2352
    %v2355 = vadd.f32 %v2345, %v2353
    %v2356 = vtanh.pop %v2355
    %2358 = vrot.lane.b32.xlu0 %v2356, 64
    %v2359 = vpop.permute.xlu0 %2358
    %v2361 = vmul.f32 %v2342, %v2359
    %2363 = vrot.lane.b32.xlu0 %v2361, 32
    %v2364 = vpop.permute.xlu0 %2363
    %v2365 = vsel %vm321, %v2364, 0
    %2367 = vmatprep.subr.mxu0 0.0
    %2368 = vmatpush1.msra.mxu0 0.0
    %2369 = vmatprep.subr.mxu0 0.0
    %2370 = vmatpush1.msra.mxu0 0.0
    %2371 = vmatprep.subr.mxu0 0.0
    %2372 = vmatpush1.msra.mxu0 0.0
    %2373 = vmatprep.subr.mxu0 0.0
    %2374 = vmatpush1.msra.mxu0 0.0
    %2375 = vmatprep.subr.mxu0 0.0
    %2376 = vmatpush1.msra.mxu0 0.0
    %2377 = vmatprep.subr.mxu0 0.0
    %2378 = vmatpush1.msra.mxu0 0.0
    %2379 = vmatprep.subr.mxu0 0.0
    %2380 = vmatpush1.msra.mxu0 0.0
    %2381 = vmatprep.subr.mxu0 0.0
    %2382 = vmatpush1.msra.mxu0 0.0
    %2383 = vmatprep.subr.mxu0 0.0
    %2384 = vmatpush1.msra.mxu0 0.0
    %2385 = vmatprep.subr.mxu0 0.0
    %2386 = vmatpush1.msra.mxu0 0.0
    %2387 = vmatprep.subr.mxu0 0.0
    %2388 = vmatpush1.msra.mxu0 0.0
    %2389 = vmatprep.subr.mxu0 0.0
    %2390 = vmatpush1.msra.mxu0 0.0
    %2391 = vmatprep.subr.mxu0 0.0
    %2392 = vmatpush1.msra.mxu0 %v2059
    %2393 = vmatprep.subr.mxu0 0.0
    %2394 = vmatpush1.msra.mxu0 %v2058
    %2395 = vmatprep.subr.mxu0 0.0
    %2396 = vmatpush1.msra.mxu0 %v2057
    %2397 = vmatprep.subr.mxu0 0.0
    %2398 = vmatpush1.msra.mxu0 %v2056
    %2399 = vmatprep.subr.mxu0 0.0
    %2400 = vmatpush2.msra.mxu0 0.0
    %2401 = vmatprep.subr.mxu0 0.0
    %2402 = vmatpush2.msra.mxu0 0.0
    %2403 = vmatprep.subr.mxu0 0.0
    %2404 = vmatpush2.msra.mxu0 0.0
    %2405 = vmatprep.subr.mxu0 0.0
    %2406 = vmatpush2.msra.mxu0 0.0
    %2407 = vmatprep.subr.mxu0 0.0
    %2408 = vmatpush2.msra.mxu0 0.0
    %2409 = vmatprep.subr.mxu0 0.0
    %2410 = vmatpush2.msra.mxu0 0.0
    %2411 = vmatprep.subr.mxu0 0.0
    %2412 = vmatpush2.msra.mxu0 0.0
    %2413 = vmatprep.subr.mxu0 0.0
    %2414 = vmatpush2.msra.mxu0 0.0
    %2415 = vmatprep.subr.mxu0 0.0
    %2416 = vmatpush2.msra.mxu0 0.0
    %2417 = vmatprep.subr.mxu0 0.0
    %2418 = vmatpush2.msra.mxu0 0.0
    %2419 = vmatprep.subr.mxu0 0.0
    %2420 = vmatpush2.msra.mxu0 0.0
    %2421 = vmatprep.subr.mxu0 0.0
    %2422 = vmatpush2.msra.mxu0 0.0
    %2423 = vmatprep.subr.mxu0 0.0
    %2424 = vmatpush2.msra.mxu0 0.0
    %2425 = vmatprep.subr.mxu0 0.0
    %2426 = vmatpush2.msra.mxu0 0.0
    %2427 = vmatprep.subr.mxu0 0.0
    %2428 = vmatpush2.msra.mxu0 0.0
    %2429 = vmatprep.subr.mxu0 0.0
    %2430 = vmatpush2.msra.mxu0 0.0
    %2431 = vmatprep.mubr.f32.mxu0 0.0
    %2432 = vmatmul.mubr.f32.gmra.mxu0 %v2365
    %v2433 = vpop.f32.mrf.mxu0
    %v2434 = vadd.f32 %v2065, %v2433
    %v2435 = vpop.f32.mrf.mxu0
    %2436 = vdwg.mxu0
    %v2437 = vxor.u32 %v2434, 2147483648
    %v2438 = vmul.f32 %v2437, 1.442695
    %v2439 = vpow.pop %v2438
    %v2440 = vadd.f32 %v2439, 1.0
    %v2441 = vrcp.pop %v2440
    %v2442 = vmul.f32 1.0, %v2441
    %v2443 = vmul.f32 %v2442, 2.0
    %v2444 = vsub.f32 %v2443, 1.0
    %v2445 = vmul.f32 %v2442, %v2355
    %2447 = vrot.lane.b32.xlu0 %v2444, 64
    %v2448 = vpop.permute.xlu0 %2447
    %v2450 = vmul.f32 %v2442, %v2448
    %2452 = vrot.lane.b32.xlu0 %v2450, 32
    %v2453 = vpop.permute.xlu0 %2452
    %v2455 = vadd.f32 %v2445, %v2453
    %v2456 = vtanh.pop %v2455
    %2458 = vrot.lane.b32.xlu0 %v2456, 64
    %v2459 = vpop.permute.xlu0 %2458
    %v2461 = vmul.f32 %v2442, %v2459
    %2463 = vrot.lane.b32.xlu0 %v2461, 32
    %v2464 = vpop.permute.xlu0 %2463
    %v2465 = vsel %vm321, %v2464, 0
    %2467 = vmatprep.subr.mxu0 0.0
    %2468 = vmatpush1.msra.mxu0 0.0
    %2469 = vmatprep.subr.mxu0 0.0
    %2470 = vmatpush1.msra.mxu0 0.0
    %2471 = vmatprep.subr.mxu0 0.0
    %2472 = vmatpush1.msra.mxu0 0.0
    %2473 = vmatprep.subr.mxu0 0.0
    %2474 = vmatpush1.msra.mxu0 0.0
    %2475 = vmatprep.subr.mxu0 0.0
    %2476 = vmatpush1.msra.mxu0 0.0
    %2477 = vmatprep.subr.mxu0 0.0
    %2478 = vmatpush1.msra.mxu0 0.0
    %2479 = vmatprep.subr.mxu0 0.0
    %2480 = vmatpush1.msra.mxu0 0.0
    %2481 = vmatprep.subr.mxu0 0.0
    %2482 = vmatpush1.msra.mxu0 0.0
    %2483 = vmatprep.subr.mxu0 0.0
    %2484 = vmatpush1.msra.mxu0 0.0
    %2485 = vmatprep.subr.mxu0 0.0
    %2486 = vmatpush1.msra.mxu0 0.0
    %2487 = vmatprep.subr.mxu0 0.0
    %2488 = vmatpush1.msra.mxu0 0.0
    %2489 = vmatprep.subr.mxu0 0.0
    %2490 = vmatpush1.msra.mxu0 0.0
    %2491 = vmatprep.subr.mxu0 0.0
    %2492 = vmatpush1.msra.mxu0 %v2059
    %2493 = vmatprep.subr.mxu0 0.0
    %2494 = vmatpush1.msra.mxu0 %v2058
    %2495 = vmatprep.subr.mxu0 0.0
    %2496 = vmatpush1.msra.mxu0 %v2057
    %2497 = vmatprep.subr.mxu0 0.0
    %2498 = vmatpush1.msra.mxu0 %v2056
    %2499 = vmatprep.subr.mxu0 0.0
    %2500 = vmatpush2.msra.mxu0 0.0
    %2501 = vmatprep.subr.mxu0 0.0
    %2502 = vmatpush2.msra.mxu0 0.0
    %2503 = vmatprep.subr.mxu0 0.0
    %2504 = vmatpush2.msra.mxu0 0.0
    %2505 = vmatprep.subr.mxu0 0.0
    %2506 = vmatpush2.msra.mxu0 0.0
    %2507 = vmatprep.subr.mxu0 0.0
    %2508 = vmatpush2.msra.mxu0 0.0
    %2509 = vmatprep.subr.mxu0 0.0
    %2510 = vmatpush2.msra.mxu0 0.0
    %2511 = vmatprep.subr.mxu0 0.0
    %2512 = vmatpush2.msra.mxu0 0.0
    %2513 = vmatprep.subr.mxu0 0.0
    %2514 = vmatpush2.msra.mxu0 0.0
    %2515 = vmatprep.subr.mxu0 0.0
    %2516 = vmatpush2.msra.mxu0 0.0
    %2517 = vmatprep.subr.mxu0 0.0
    %2518 = vmatpush2.msra.mxu0 0.0
    %2519 = vmatprep.subr.mxu0 0.0
    %2520 = vmatpush2.msra.mxu0 0.0
    %2521 = vmatprep.subr.mxu0 0.0
    %2522 = vmatpush2.msra.mxu0 0.0
    %2523 = vmatprep.subr.mxu0 0.0
    %2524 = vmatpush2.msra.mxu0 0.0
    %2525 = vmatprep.subr.mxu0 0.0
    %2526 = vmatpush2.msra.mxu0 0.0
    %2527 = vmatprep.subr.mxu0 0.0
    %2528 = vmatpush2.msra.mxu0 0.0
    %2529 = vmatprep.subr.mxu0 0.0
    %2530 = vmatpush2.msra.mxu0 0.0
    %2531 = vmatprep.mubr.f32.mxu0 0.0
    %2532 = vmatmul.mubr.f32.gmra.mxu0 %v2465
    %v2533 = vpop.f32.mrf.mxu0
    %v2534 = vadd.f32 %v2065, %v2533
    %v2535 = vpop.f32.mrf.mxu0
    %2536 = vdwg.mxu0
    %v2537 = vxor.u32 %v2534, 2147483648
    %v2538 = vmul.f32 %v2537, 1.442695
    %v2539 = vpow.pop %v2538
    %v2540 = vadd.f32 %v2539, 1.0
    %v2541 = vrcp.pop %v2540
    %v2542 = vmul.f32 1.0, %v2541
    %v2543 = vmul.f32 %v2542, 2.0
    %v2544 = vsub.f32 %v2543, 1.0
    %v2545 = vmul.f32 %v2542, %v2455
    %2547 = vrot.lane.b32.xlu0 %v2544, 64
    %v2548 = vpop.permute.xlu0 %2547
    %v2550 = vmul.f32 %v2542, %v2548
    %2552 = vrot.lane.b32.xlu0 %v2550, 32
    %v2553 = vpop.permute.xlu0 %2552
    %v2555 = vadd.f32 %v2545, %v2553
    %v2556 = vtanh.pop %v2555
    %2558 = vrot.lane.b32.xlu0 %v2556, 64
    %v2559 = vpop.permute.xlu0 %2558
    %v2561 = vmul.f32 %v2542, %v2559
    %2563 = vrot.lane.b32.xlu0 %v2561, 32
    %v2564 = vpop.permute.xlu0 %2563
    %v2565 = vsel %vm321, %v2564, 0
    %2567 = vmatprep.subr.mxu0 0.0
    %2568 = vmatpush1.msra.mxu0 0.0
    %2569 = vmatprep.subr.mxu0 0.0
    %2570 = vmatpush1.msra.mxu0 0.0
    %2571 = vmatprep.subr.mxu0 0.0
    %2572 = vmatpush1.msra.mxu0 0.0
    %2573 = vmatprep.subr.mxu0 0.0
    %2574 = vmatpush1.msra.mxu0 0.0
    %2575 = vmatprep.subr.mxu0 0.0
    %2576 = vmatpush1.msra.mxu0 0.0
    %2577 = vmatprep.subr.mxu0 0.0
    %2578 = vmatpush1.msra.mxu0 0.0
    %2579 = vmatprep.subr.mxu0 0.0
    %2580 = vmatpush1.msra.mxu0 0.0
    %2581 = vmatprep.subr.mxu0 0.0
    %2582 = vmatpush1.msra.mxu0 0.0
    %2583 = vmatprep.subr.mxu0 0.0
    %2584 = vmatpush1.msra.mxu0 0.0
    %2585 = vmatprep.subr.mxu0 0.0
    %2586 = vmatpush1.msra.mxu0 0.0
    %2587 = vmatprep.subr.mxu0 0.0
    %2588 = vmatpush1.msra.mxu0 0.0
    %2589 = vmatprep.subr.mxu0 0.0
    %2590 = vmatpush1.msra.mxu0 0.0
    %2591 = vmatprep.subr.mxu0 0.0
    %2592 = vmatpush1.msra.mxu0 %v2059
    %2593 = vmatprep.subr.mxu0 0.0
    %2594 = vmatpush1.msra.mxu0 %v2058
    %2595 = vmatprep.subr.mxu0 0.0
    %2596 = vmatpush1.msra.mxu0 %v2057
    %2597 = vmatprep.subr.mxu0 0.0
    %2598 = vmatpush1.msra.mxu0 %v2056
    %2599 = vmatprep.subr.mxu0 0.0
    %2600 = vmatpush2.msra.mxu0 0.0
    %2601 = vmatprep.subr.mxu0 0.0
    %2602 = vmatpush2.msra.mxu0 0.0
    %2603 = vmatprep.subr.mxu0 0.0
    %2604 = vmatpush2.msra.mxu0 0.0
    %2605 = vmatprep.subr.mxu0 0.0
    %2606 = vmatpush2.msra.mxu0 0.0
    %2607 = vmatprep.subr.mxu0 0.0
    %2608 = vmatpush2.msra.mxu0 0.0
    %2609 = vmatprep.subr.mxu0 0.0
    %2610 = vmatpush2.msra.mxu0 0.0
    %2611 = vmatprep.subr.mxu0 0.0
    %2612 = vmatpush2.msra.mxu0 0.0
    %2613 = vmatprep.subr.mxu0 0.0
    %2614 = vmatpush2.msra.mxu0 0.0
    %2615 = vmatprep.subr.mxu0 0.0
    %2616 = vmatpush2.msra.mxu0 0.0
    %2617 = vmatprep.subr.mxu0 0.0
    %2618 = vmatpush2.msra.mxu0 0.0
    %2619 = vmatprep.subr.mxu0 0.0
    %2620 = vmatpush2.msra.mxu0 0.0
    %2621 = vmatprep.subr.mxu0 0.0
    %2622 = vmatpush2.msra.mxu0 0.0
    %2623 = vmatprep.subr.mxu0 0.0
    %2624 = vmatpush2.msra.mxu0 0.0
    %2625 = vmatprep.subr.mxu0 0.0
    %2626 = vmatpush2.msra.mxu0 0.0
    %2627 = vmatprep.subr.mxu0 0.0
    %2628 = vmatpush2.msra.mxu0 0.0
    %2629 = vmatprep.subr.mxu0 0.0
    %2630 = vmatpush2.msra.mxu0 0.0
    %2631 = vmatprep.mubr.f32.mxu0 0.0
    %2632 = vmatmul.mubr.f32.gmra.mxu0 %v2565
    %v2633 = vpop.f32.mrf.mxu0
    %v2634 = vadd.f32 %v2065, %v2633
    %v2635 = vpop.f32.mrf.mxu0
    %2636 = vdwg.mxu0
    %v2637 = vxor.u32 %v2634, 2147483648
    %v2638 = vmul.f32 %v2637, 1.442695
    %v2639 = vpow.pop %v2638
    %v2640 = vadd.f32 %v2639, 1.0
    %v2641 = vrcp.pop %v2640
    %v2642 = vmul.f32 1.0, %v2641
    %v2643 = vmul.f32 %v2642, 2.0
    %v2644 = vsub.f32 %v2643, 1.0
    %v2645 = vmul.f32 %v2642, %v2555
    %2647 = vrot.lane.b32.xlu0 %v2644, 64
    %v2648 = vpop.permute.xlu0 %2647
    %v2650 = vmul.f32 %v2642, %v2648
    %2652 = vrot.lane.b32.xlu0 %v2650, 32
    %v2653 = vpop.permute.xlu0 %2652
    %v2655 = vadd.f32 %v2645, %v2653
    %v2656 = vtanh.pop %v2655
    %2658 = vrot.lane.b32.xlu0 %v2656, 64
    %v2659 = vpop.permute.xlu0 %2658
    %v2661 = vmul.f32 %v2642, %v2659
    %2663 = vrot.lane.b32.xlu0 %v2661, 32
    %v2664 = vpop.permute.xlu0 %2663
    %v2665 = vsel %vm321, %v2664, 0
    %2667 = vmatprep.subr.mxu0 0.0
    %2668 = vmatpush1.msra.mxu0 0.0
    %2669 = vmatprep.subr.mxu0 0.0
    %2670 = vmatpush1.msra.mxu0 0.0
    %2671 = vmatprep.subr.mxu0 0.0
    %2672 = vmatpush1.msra.mxu0 0.0
    %2673 = vmatprep.subr.mxu0 0.0
    %2674 = vmatpush1.msra.mxu0 0.0
    %2675 = vmatprep.subr.mxu0 0.0
    %2676 = vmatpush1.msra.mxu0 0.0
    %2677 = vmatprep.subr.mxu0 0.0
    %2678 = vmatpush1.msra.mxu0 0.0
    %2679 = vmatprep.subr.mxu0 0.0
    %2680 = vmatpush1.msra.mxu0 0.0
    %2681 = vmatprep.subr.mxu0 0.0
    %2682 = vmatpush1.msra.mxu0 0.0
    %2683 = vmatprep.subr.mxu0 0.0
    %2684 = vmatpush1.msra.mxu0 0.0
    %2685 = vmatprep.subr.mxu0 0.0
    %2686 = vmatpush1.msra.mxu0 0.0
    %2687 = vmatprep.subr.mxu0 0.0
    %2688 = vmatpush1.msra.mxu0 0.0
    %2689 = vmatprep.subr.mxu0 0.0
    %2690 = vmatpush1.msra.mxu0 0.0
    %2691 = vmatprep.subr.mxu0 0.0
    %2692 = vmatpush1.msra.mxu0 %v2059
    %2693 = vmatprep.subr.mxu0 0.0
    %2694 = vmatpush1.msra.mxu0 %v2058
    %2695 = vmatprep.subr.mxu0 0.0
    %2696 = vmatpush1.msra.mxu0 %v2057
    %2697 = vmatprep.subr.mxu0 0.0
    %2698 = vmatpush1.msra.mxu0 %v2056
    %2699 = vmatprep.subr.mxu0 0.0
    %2700 = vmatpush2.msra.mxu0 0.0
    %2701 = vmatprep.subr.mxu0 0.0
    %2702 = vmatpush2.msra.mxu0 0.0
    %2703 = vmatprep.subr.mxu0 0.0
    %2704 = vmatpush2.msra.mxu0 0.0
    %2705 = vmatprep.subr.mxu0 0.0
    %2706 = vmatpush2.msra.mxu0 0.0
    %2707 = vmatprep.subr.mxu0 0.0
    %2708 = vmatpush2.msra.mxu0 0.0
    %2709 = vmatprep.subr.mxu0 0.0
    %2710 = vmatpush2.msra.mxu0 0.0
    %2711 = vmatprep.subr.mxu0 0.0
    %2712 = vmatpush2.msra.mxu0 0.0
    %2713 = vmatprep.subr.mxu0 0.0
    %2714 = vmatpush2.msra.mxu0 0.0
    %2715 = vmatprep.subr.mxu0 0.0
    %2716 = vmatpush2.msra.mxu0 0.0
    %2717 = vmatprep.subr.mxu0 0.0
    %2718 = vmatpush2.msra.mxu0 0.0
    %2719 = vmatprep.subr.mxu0 0.0
    %2720 = vmatpush2.msra.mxu0 0.0
    %2721 = vmatprep.subr.mxu0 0.0
    %2722 = vmatpush2.msra.mxu0 0.0
    %2723 = vmatprep.subr.mxu0 0.0
    %2724 = vmatpush2.msra.mxu0 0.0
    %2725 = vmatprep.subr.mxu0 0.0
    %2726 = vmatpush2.msra.mxu0 0.0
    %2727 = vmatprep.subr.mxu0 0.0
    %2728 = vmatpush2.msra.mxu0 0.0
    %2729 = vmatprep.subr.mxu0 0.0
    %2730 = vmatpush2.msra.mxu0 0.0
    %2731 = vmatprep.mubr.f32.mxu0 0.0
    %2732 = vmatmul.mubr.f32.gmra.mxu0 %v2665
    %v2733 = vpop.f32.mrf.mxu0
    %v2734 = vadd.f32 %v2065, %v2733
    %v2735 = vpop.f32.mrf.mxu0
    %2736 = vdwg.mxu0
    %v2737 = vxor.u32 %v2734, 2147483648
    %v2738 = vmul.f32 %v2737, 1.442695
    %v2739 = vpow.pop %v2738
    %v2740 = vadd.f32 %v2739, 1.0
    %v2741 = vrcp.pop %v2740
    %v2742 = vmul.f32 1.0, %v2741
    %v2743 = vmul.f32 %v2742, 2.0
    %v2744 = vsub.f32 %v2743, 1.0
    %v2745 = vmul.f32 %v2742, %v2655
    %2747 = vrot.lane.b32.xlu0 %v2744, 64
    %v2748 = vpop.permute.xlu0 %2747
    %v2750 = vmul.f32 %v2742, %v2748
    %2752 = vrot.lane.b32.xlu0 %v2750, 32
    %v2753 = vpop.permute.xlu0 %2752
    %v2755 = vadd.f32 %v2745, %v2753
    %v2756 = vtanh.pop %v2755
    %2758 = vrot.lane.b32.xlu0 %v2756, 64
    %v2759 = vpop.permute.xlu0 %2758
    %v2761 = vmul.f32 %v2742, %v2759
    %2763 = vrot.lane.b32.xlu0 %v2761, 32
    %v2764 = vpop.permute.xlu0 %2763
    %v2765 = vsel %vm321, %v2764, 0
    %2767 = vmatprep.subr.mxu0 0.0
    %2768 = vmatpush1.msra.mxu0 0.0
    %2769 = vmatprep.subr.mxu0 0.0
    %2770 = vmatpush1.msra.mxu0 0.0
    %2771 = vmatprep.subr.mxu0 0.0
    %2772 = vmatpush1.msra.mxu0 0.0
    %2773 = vmatprep.subr.mxu0 0.0
    %2774 = vmatpush1.msra.mxu0 0.0
    %2775 = vmatprep.subr.mxu0 0.0
    %2776 = vmatpush1.msra.mxu0 0.0
    %2777 = vmatprep.subr.mxu0 0.0
    %2778 = vmatpush1.msra.mxu0 0.0
    %2779 = vmatprep.subr.mxu0 0.0
    %2780 = vmatpush1.msra.mxu0 0.0
    %2781 = vmatprep.subr.mxu0 0.0
    %2782 = vmatpush1.msra.mxu0 0.0
    %2783 = vmatprep.subr.mxu0 0.0
    %2784 = vmatpush1.msra.mxu0 0.0
    %2785 = vmatprep.subr.mxu0 0.0
    %2786 = vmatpush1.msra.mxu0 0.0
    %2787 = vmatprep.subr.mxu0 0.0
    %2788 = vmatpush1.msra.mxu0 0.0
    %2789 = vmatprep.subr.mxu0 0.0
    %2790 = vmatpush1.msra.mxu0 0.0
    %2791 = vmatprep.subr.mxu0 0.0
    %2792 = vmatpush1.msra.mxu0 %v2059
    %2793 = vmatprep.subr.mxu0 0.0
    %2794 = vmatpush1.msra.mxu0 %v2058
    %2795 = vmatprep.subr.mxu0 0.0
    %2796 = vmatpush1.msra.mxu0 %v2057
    %2797 = vmatprep.subr.mxu0 0.0
    %2798 = vmatpush1.msra.mxu0 %v2056
    %2799 = vmatprep.subr.mxu0 0.0
    %2800 = vmatpush2.msra.mxu0 0.0
    %2801 = vmatprep.subr.mxu0 0.0
    %2802 = vmatpush2.msra.mxu0 0.0
    %2803 = vmatprep.subr.mxu0 0.0
    %2804 = vmatpush2.msra.mxu0 0.0
    %2805 = vmatprep.subr.mxu0 0.0
    %2806 = vmatpush2.msra.mxu0 0.0
    %2807 = vmatprep.subr.mxu0 0.0
    %2808 = vmatpush2.msra.mxu0 0.0
    %2809 = vmatprep.subr.mxu0 0.0
    %2810 = vmatpush2.msra.mxu0 0.0
    %2811 = vmatprep.subr.mxu0 0.0
    %2812 = vmatpush2.msra.mxu0 0.0
    %2813 = vmatprep.subr.mxu0 0.0
    %2814 = vmatpush2.msra.mxu0 0.0
    %2815 = vmatprep.subr.mxu0 0.0
    %2816 = vmatpush2.msra.mxu0 0.0
    %2817 = vmatprep.subr.mxu0 0.0
    %2818 = vmatpush2.msra.mxu0 0.0
    %2819 = vmatprep.subr.mxu0 0.0
    %2820 = vmatpush2.msra.mxu0 0.0
    %2821 = vmatprep.subr.mxu0 0.0
    %2822 = vmatpush2.msra.mxu0 0.0
    %2823 = vmatprep.subr.mxu0 0.0
    %2824 = vmatpush2.msra.mxu0 0.0
    %2825 = vmatprep.subr.mxu0 0.0
    %2826 = vmatpush2.msra.mxu0 0.0
    %2827 = vmatprep.subr.mxu0 0.0
    %2828 = vmatpush2.msra.mxu0 0.0
    %2829 = vmatprep.subr.mxu0 0.0
    %2830 = vmatpush2.msra.mxu0 0.0
    %2831 = vmatprep.mubr.f32.mxu0 0.0
    %2832 = vmatmul.mubr.f32.gmra.mxu0 %v2765
    %v2833 = vpop.f32.mrf.mxu0
    %v2834 = vadd.f32 %v2065, %v2833
    %v2835 = vpop.f32.mrf.mxu0
    %2836 = vdwg.mxu0
    %v2837 = vxor.u32 %v2834, 2147483648
    %v2838 = vmul.f32 %v2837, 1.442695
    %v2839 = vpow.pop %v2838
    %v2840 = vadd.f32 %v2839, 1.0
    %v2841 = vrcp.pop %v2840
    %v2842 = vmul.f32 1.0, %v2841
    %v2843 = vmul.f32 %v2842, 2.0
    %v2844 = vsub.f32 %v2843, 1.0
    %v2845 = vmul.f32 %v2842, %v2755
    %2847 = vrot.lane.b32.xlu0 %v2844, 64
    %v2848 = vpop.permute.xlu0 %2847
    %v2850 = vmul.f32 %v2842, %v2848
    %2852 = vrot.lane.b32.xlu0 %v2850, 32
    %v2853 = vpop.permute.xlu0 %2852
    %v2855 = vadd.f32 %v2845, %v2853
    %v2856 = vtanh.pop %v2855
    %2858 = vrot.lane.b32.xlu0 %v2856, 64
    %v2859 = vpop.permute.xlu0 %2858
    %v2861 = vmul.f32 %v2842, %v2859
    %v2862 = vld [vmem:[%s9] sm:$0xff]
    %v2863 = vld [vmem:[%s9 + $0x8] sm:$0xff]
    %v2864 = vld [vmem:[%s9 + $0x10] sm:$0xff]
    %v2865 = vld [vmem:[%s9 + $0x18] sm:$0xff]
    %v2866 = vld [vmem:[%s11] sm:$0x1]
    %v2868 = vlaneseq
    %v2869 = vshrl.u32 %v2868, 7
    %v2870 = vsub.s32 0, %v2869
    %v2871 = vrot.slane %v2866, %v2870
    %2874 = vrot.lane.b32.xlu0 %v2861, 32
    %v2875 = vpop.permute.xlu0 %2874
    %v2876 = vsel %vm321, %v2875, 0
    %2878 = vmatprep.subr.mxu0 0.0
    %2879 = vmatpush1.msra.mxu0 0.0
    %2880 = vmatprep.subr.mxu0 0.0
    %2881 = vmatpush1.msra.mxu0 0.0
    %2882 = vmatprep.subr.mxu0 0.0
    %2883 = vmatpush1.msra.mxu0 0.0
    %2884 = vmatprep.subr.mxu0 0.0
    %2885 = vmatpush1.msra.mxu0 0.0
    %2886 = vmatprep.subr.mxu0 0.0
    %2887 = vmatpush1.msra.mxu0 0.0
    %2888 = vmatprep.subr.mxu0 0.0
    %2889 = vmatpush1.msra.mxu0 0.0
    %2890 = vmatprep.subr.mxu0 0.0
    %2891 = vmatpush1.msra.mxu0 0.0
    %2892 = vmatprep.subr.mxu0 0.0
    %2893 = vmatpush1.msra.mxu0 0.0
    %2894 = vmatprep.subr.mxu0 0.0
    %2895 = vmatpush1.msra.mxu0 0.0
    %2896 = vmatprep.subr.mxu0 0.0
    %2897 = vmatpush1.msra.mxu0 0.0
    %2898 = vmatprep.subr.mxu0 0.0
    %2899 = vmatpush1.msra.mxu0 0.0
    %2900 = vmatprep.subr.mxu0 0.0
    %2901 = vmatpush1.msra.mxu0 0.0
    %2902 = vmatprep.subr.mxu0 0.0
    %2903 = vmatpush1.msra.mxu0 %v2865
    %2904 = vmatprep.subr.mxu0 0.0
    %2905 = vmatpush1.msra.mxu0 %v2864
    %2906 = vmatprep.subr.mxu0 0.0
    %2907 = vmatpush1.msra.mxu0 %v2863
    %2908 = vmatprep.subr.mxu0 0.0
    %2909 = vmatpush1.msra.mxu0 %v2862
    %2910 = vmatprep.subr.mxu0 0.0
    %2911 = vmatpush2.msra.mxu0 0.0
    %2912 = vmatprep.subr.mxu0 0.0
    %2913 = vmatpush2.msra.mxu0 0.0
    %2914 = vmatprep.subr.mxu0 0.0
    %2915 = vmatpush2.msra.mxu0 0.0
    %2916 = vmatprep.subr.mxu0 0.0
    %2917 = vmatpush2.msra.mxu0 0.0
    %2918 = vmatprep.subr.mxu0 0.0
    %2919 = vmatpush2.msra.mxu0 0.0
    %2920 = vmatprep.subr.mxu0 0.0
    %2921 = vmatpush2.msra.mxu0 0.0
    %2922 = vmatprep.subr.mxu0 0.0
    %2923 = vmatpush2.msra.mxu0 0.0
    %2924 = vmatprep.subr.mxu0 0.0
    %2925 = vmatpush2.msra.mxu0 0.0
    %2926 = vmatprep.subr.mxu0 0.0
    %2927 = vmatpush2.msra.mxu0 0.0
    %2928 = vmatprep.subr.mxu0 0.0
    %2929 = vmatpush2.msra.mxu0 0.0
    %2930 = vmatprep.subr.mxu0 0.0
    %2931 = vmatpush2.msra.mxu0 0.0
    %2932 = vmatprep.subr.mxu0 0.0
    %2933 = vmatpush2.msra.mxu0 0.0
    %2934 = vmatprep.subr.mxu0 0.0
    %2935 = vmatpush2.msra.mxu0 0.0
    %2936 = vmatprep.subr.mxu0 0.0
    %2937 = vmatpush2.msra.mxu0 0.0
    %2938 = vmatprep.subr.mxu0 0.0
    %2939 = vmatpush2.msra.mxu0 0.0
    %2940 = vmatprep.subr.mxu0 0.0
    %2941 = vmatpush2.msra.mxu0 0.0
    %2942 = vmatprep.mubr.f32.mxu0 0.0
    %2943 = vmatmul.mubr.f32.gmra.mxu0 %v2165
    %v2944 = vpop.f32.mrf.mxu0
    %v2945 = vadd.f32 %v2871, %v2944
    %v2946 = vpop.f32.mrf.mxu0
    %2947 = vmatprep.mubr.f32.mxu0 0.0
    %2948 = vmatmul.mubr.f32.gmra.mxu0 %v2265
    %v2949 = vpop.f32.mrf.mxu0
    %v2950 = vadd.f32 %v2871, %v2949
    %v2951 = vpop.f32.mrf.mxu0
    %2952 = vmatprep.mubr.f32.mxu0 0.0
    %2953 = vmatmul.mubr.f32.gmra.mxu0 %v2365
    %v2954 = vpop.f32.mrf.mxu0
    %v2955 = vadd.f32 %v2871, %v2954
    %v2956 = vpop.f32.mrf.mxu0
    %2957 = vmatprep.mubr.f32.mxu0 0.0
    %2958 = vmatmul.mubr.f32.gmra.mxu0 %v2465
    %v2959 = vpop.f32.mrf.mxu0
    %v2960 = vadd.f32 %v2871, %v2959
    %v2961 = vpop.f32.mrf.mxu0
    %2962 = vmatprep.mubr.f32.mxu0 0.0
    %2963 = vmatmul.mubr.f32.gmra.mxu0 %v2565
    %v2964 = vpop.f32.mrf.mxu0
    %v2965 = vadd.f32 %v2871, %v2964
    %v2966 = vpop.f32.mrf.mxu0
    %2967 = vmatprep.mubr.f32.mxu0 0.0
    %2968 = vmatmul.mubr.f32.gmra.mxu0 %v2665
    %v2969 = vpop.f32.mrf.mxu0
    %v2970 = vadd.f32 %v2871, %v2969
    %v2971 = vpop.f32.mrf.mxu0
    %2972 = vmatprep.mubr.f32.mxu0 0.0
    %2973 = vmatmul.mubr.f32.gmra.mxu0 %v2765
    %v2974 = vpop.f32.mrf.mxu0
    %v2975 = vadd.f32 %v2871, %v2974
    %v2976 = vpop.f32.mrf.mxu0
    %2977 = vmatprep.mubr.f32.mxu0 0.0
    %2978 = vmatmul.mubr.f32.gmra.mxu0 %v2876
    %v2979 = vpop.f32.mrf.mxu0
    %v2980 = vadd.f32 %v2871, %v2979
    %v2981 = vpop.f32.mrf.mxu0
    %2982 = vdwg.mxu0
    %v2983 = vld [vmem:[#allocation16] sm:$0xff]
    %v2984 = vld [vmem:[#allocation16 + $0x8] sm:$0xff]
    %v2985 = vld [vmem:[#allocation16 + $0x10] sm:$0xff]
    %v2986 = vld [vmem:[#allocation16 + $0x18] sm:$0xff]
    %2988 = vrot.lane.b32.xlu0 %v2055, 32
    %v2989 = vpop.permute.xlu0 %2988
    %v2990 = vsel %vm321, %v2989, 0
    %2992 = vmatprep.subr.mxu0 0.0
    %2993 = vmatpush1.msra.mxu0 0.0
    %2994 = vmatprep.subr.mxu0 0.0
    %2995 = vmatpush1.msra.mxu0 0.0
    %2996 = vmatprep.subr.mxu0 0.0
    %2997 = vmatpush1.msra.mxu0 0.0
    %2998 = vmatprep.subr.mxu0 0.0
    %2999 = vmatpush1.msra.mxu0 0.0
    %3000 = vmatprep.subr.mxu0 0.0
    %3001 = vmatpush1.msra.mxu0 0.0
    %3002 = vmatprep.subr.mxu0 0.0
    %3003 = vmatpush1.msra.mxu0 0.0
    %3004 = vmatprep.subr.mxu0 0.0
    %3005 = vmatpush1.msra.mxu0 0.0
    %3006 = vmatprep.subr.mxu0 0.0
    %3007 = vmatpush1.msra.mxu0 0.0
    %3008 = vmatprep.subr.mxu0 0.0
    %3009 = vmatpush1.msra.mxu0 0.0
    %3010 = vmatprep.subr.mxu0 0.0
    %3011 = vmatpush1.msra.mxu0 0.0
    %3012 = vmatprep.subr.mxu0 0.0
    %3013 = vmatpush1.msra.mxu0 0.0
    %3014 = vmatprep.subr.mxu0 0.0
    %3015 = vmatpush1.msra.mxu0 0.0
    %3016 = vmatprep.subr.mxu0 0.0
    %3017 = vmatpush1.msra.mxu0 %v2986
    %3018 = vmatprep.subr.mxu0 0.0
    %3019 = vmatpush1.msra.mxu0 %v2985
    %3020 = vmatprep.subr.mxu0 0.0
    %3021 = vmatpush1.msra.mxu0 %v2984
    %3022 = vmatprep.subr.mxu0 0.0
    %3023 = vmatpush1.msra.mxu0 %v2983
    %3024 = vmatprep.subr.mxu0 0.0
    %3025 = vmatpush2.msra.mxu0 0.0
    %3026 = vmatprep.subr.mxu0 0.0
    %3027 = vmatpush2.msra.mxu0 0.0
    %3028 = vmatprep.subr.mxu0 0.0
    %3029 = vmatpush2.msra.mxu0 0.0
    %3030 = vmatprep.subr.mxu0 0.0
    %3031 = vmatpush2.msra.mxu0 0.0
    %3032 = vmatprep.subr.mxu0 0.0
    %3033 = vmatpush2.msra.mxu0 0.0
    %3034 = vmatprep.subr.mxu0 0.0
    %3035 = vmatpush2.msra.mxu0 0.0
    %3036 = vmatprep.subr.mxu0 0.0
    %3037 = vmatpush2.msra.mxu0 0.0
    %3038 = vmatprep.subr.mxu0 0.0
    %3039 = vmatpush2.msra.mxu0 0.0
    %3040 = vmatprep.subr.mxu0 0.0
    %3041 = vmatpush2.msra.mxu0 0.0
    %3042 = vmatprep.subr.mxu0 0.0
    %3043 = vmatpush2.msra.mxu0 0.0
    %3044 = vmatprep.subr.mxu0 0.0
    %3045 = vmatpush2.msra.mxu0 0.0
    %3046 = vmatprep.subr.mxu0 0.0
    %3047 = vmatpush2.msra.mxu0 0.0
    %3048 = vmatprep.subr.mxu0 0.0
    %3049 = vmatpush2.msra.mxu0 0.0
    %3050 = vmatprep.subr.mxu0 0.0
    %3051 = vmatpush2.msra.mxu0 0.0
    %3052 = vmatprep.subr.mxu0 0.0
    %3053 = vmatpush2.msra.mxu0 0.0
    %3054 = vmatprep.subr.mxu0 0.0
    %3055 = vmatpush2.msra.mxu0 0.0
    %3056 = vmatprep.mubr.f32.mxu0 0.0
    %3057 = vmatmul.mubr.f32.gmra.mxu0 %v2990
    %v3058 = vpop.f32.mrf.mxu0
    %v3059 = vadd.f32 0.0, %v3058
    %v3060 = vpop.f32.mrf.mxu0
    %3061 = vdwg.mxu0
    %v3062 = vadd.f32 %v2945, %v3059
    %v3063 = vxor.u32 %v3062, 2147483648
    %v3064 = vmul.f32 %v3063, 1.442695
    %v3065 = vpow.pop %v3064
    %v3066 = vadd.f32 %v3065, 1.0
    %v3067 = vrcp.pop %v3066
    %v3068 = vmul.f32 1.0, %v3067
    %v3069 = vmul.f32 %v3068, 2.0
    %v3070 = vsub.f32 %v3069, 1.0
    %v3071 = vmul.f32 %v3068, %v2049
    %3073 = vrot.lane.b32.xlu0 %v3070, 64
    %v3074 = vpop.permute.xlu0 %3073
    %v3076 = vmul.f32 %v3068, %v3074
    %3078 = vrot.lane.b32.xlu0 %v3076, 32
    %v3079 = vpop.permute.xlu0 %3078
    %v3081 = vadd.f32 %v3071, %v3079
    %v3082 = vtanh.pop %v3081
    %3084 = vrot.lane.b32.xlu0 %v3082, 64
    %v3085 = vpop.permute.xlu0 %3084
    %v3087 = vmul.f32 %v3068, %v3085
    %3089 = vrot.lane.b32.xlu0 %v3087, 32
    %v3090 = vpop.permute.xlu0 %3089
    %v3091 = vsel %vm321, %v3090, 0
    %3093 = vmatprep.subr.mxu0 0.0
    %3094 = vmatpush1.msra.mxu0 0.0
    %3095 = vmatprep.subr.mxu0 0.0
    %3096 = vmatpush1.msra.mxu0 0.0
    %3097 = vmatprep.subr.mxu0 0.0
    %3098 = vmatpush1.msra.mxu0 0.0
    %3099 = vmatprep.subr.mxu0 0.0
    %3100 = vmatpush1.msra.mxu0 0.0
    %3101 = vmatprep.subr.mxu0 0.0
    %3102 = vmatpush1.msra.mxu0 0.0
    %3103 = vmatprep.subr.mxu0 0.0
    %3104 = vmatpush1.msra.mxu0 0.0
    %3105 = vmatprep.subr.mxu0 0.0
    %3106 = vmatpush1.msra.mxu0 0.0
    %3107 = vmatprep.subr.mxu0 0.0
    %3108 = vmatpush1.msra.mxu0 0.0
    %3109 = vmatprep.subr.mxu0 0.0
    %3110 = vmatpush1.msra.mxu0 0.0
    %3111 = vmatprep.subr.mxu0 0.0
    %3112 = vmatpush1.msra.mxu0 0.0
    %3113 = vmatprep.subr.mxu0 0.0
    %3114 = vmatpush1.msra.mxu0 0.0
    %3115 = vmatprep.subr.mxu0 0.0
    %3116 = vmatpush1.msra.mxu0 0.0
    %3117 = vmatprep.subr.mxu0 0.0
    %3118 = vmatpush1.msra.mxu0 %v2986
    %3119 = vmatprep.subr.mxu0 0.0
    %3120 = vmatpush1.msra.mxu0 %v2985
    %3121 = vmatprep.subr.mxu0 0.0
    %3122 = vmatpush1.msra.mxu0 %v2984
    %3123 = vmatprep.subr.mxu0 0.0
    %3124 = vmatpush1.msra.mxu0 %v2983
    %3125 = vmatprep.subr.mxu0 0.0
    %3126 = vmatpush2.msra.mxu0 0.0
    %3127 = vmatprep.subr.mxu0 0.0
    %3128 = vmatpush2.msra.mxu0 0.0
    %3129 = vmatprep.subr.mxu0 0.0
    %3130 = vmatpush2.msra.mxu0 0.0
    %3131 = vmatprep.subr.mxu0 0.0
    %3132 = vmatpush2.msra.mxu0 0.0
    %3133 = vmatprep.subr.mxu0 0.0
    %3134 = vmatpush2.msra.mxu0 0.0
    %3135 = vmatprep.subr.mxu0 0.0
    %3136 = vmatpush2.msra.mxu0 0.0
    %3137 = vmatprep.subr.mxu0 0.0
    %3138 = vmatpush2.msra.mxu0 0.0
    %3139 = vmatprep.subr.mxu0 0.0
    %3140 = vmatpush2.msra.mxu0 0.0
    %3141 = vmatprep.subr.mxu0 0.0
    %3142 = vmatpush2.msra.mxu0 0.0
    %3143 = vmatprep.subr.mxu0 0.0
    %3144 = vmatpush2.msra.mxu0 0.0
    %3145 = vmatprep.subr.mxu0 0.0
    %3146 = vmatpush2.msra.mxu0 0.0
    %3147 = vmatprep.subr.mxu0 0.0
    %3148 = vmatpush2.msra.mxu0 0.0
    %3149 = vmatprep.subr.mxu0 0.0
    %3150 = vmatpush2.msra.mxu0 0.0
    %3151 = vmatprep.subr.mxu0 0.0
    %3152 = vmatpush2.msra.mxu0 0.0
    %3153 = vmatprep.subr.mxu0 0.0
    %3154 = vmatpush2.msra.mxu0 0.0
    %3155 = vmatprep.subr.mxu0 0.0
    %3156 = vmatpush2.msra.mxu0 0.0
    %3157 = vmatprep.mubr.f32.mxu0 0.0
    %3158 = vmatmul.mubr.f32.gmra.mxu0 %v3091
    %v3159 = vpop.f32.mrf.mxu0
    %v3160 = vadd.f32 0.0, %v3159
    %v3161 = vpop.f32.mrf.mxu0
    %3162 = vdwg.mxu0
    %v3163 = vadd.f32 %v2950, %v3160
    %v3164 = vxor.u32 %v3163, 2147483648
    %v3165 = vmul.f32 %v3164, 1.442695
    %v3166 = vpow.pop %v3165
    %v3167 = vadd.f32 %v3166, 1.0
    %v3168 = vrcp.pop %v3167
    %v3169 = vmul.f32 1.0, %v3168
    %v3170 = vmul.f32 %v3169, 2.0
    %v3171 = vsub.f32 %v3170, 1.0
    %v3172 = vmul.f32 %v3169, %v3081
    %3174 = vrot.lane.b32.xlu0 %v3171, 64
    %v3175 = vpop.permute.xlu0 %3174
    %v3177 = vmul.f32 %v3169, %v3175
    %3179 = vrot.lane.b32.xlu0 %v3177, 32
    %v3180 = vpop.permute.xlu0 %3179
    %v3182 = vadd.f32 %v3172, %v3180
    %v3183 = vtanh.pop %v3182
    %3185 = vrot.lane.b32.xlu0 %v3183, 64
    %v3186 = vpop.permute.xlu0 %3185
    %v3188 = vmul.f32 %v3169, %v3186
    %3190 = vrot.lane.b32.xlu0 %v3188, 32
    %v3191 = vpop.permute.xlu0 %3190
    %v3192 = vsel %vm321, %v3191, 0
    %3194 = vmatprep.subr.mxu0 0.0
    %3195 = vmatpush1.msra.mxu0 0.0
    %3196 = vmatprep.subr.mxu0 0.0
    %3197 = vmatpush1.msra.mxu0 0.0
    %3198 = vmatprep.subr.mxu0 0.0
    %3199 = vmatpush1.msra.mxu0 0.0
    %3200 = vmatprep.subr.mxu0 0.0
    %3201 = vmatpush1.msra.mxu0 0.0
    %3202 = vmatprep.subr.mxu0 0.0
    %3203 = vmatpush1.msra.mxu0 0.0
    %3204 = vmatprep.subr.mxu0 0.0
    %3205 = vmatpush1.msra.mxu0 0.0
    %3206 = vmatprep.subr.mxu0 0.0
    %3207 = vmatpush1.msra.mxu0 0.0
    %3208 = vmatprep.subr.mxu0 0.0
    %3209 = vmatpush1.msra.mxu0 0.0
    %3210 = vmatprep.subr.mxu0 0.0
    %3211 = vmatpush1.msra.mxu0 0.0
    %3212 = vmatprep.subr.mxu0 0.0
    %3213 = vmatpush1.msra.mxu0 0.0
    %3214 = vmatprep.subr.mxu0 0.0
    %3215 = vmatpush1.msra.mxu0 0.0
    %3216 = vmatprep.subr.mxu0 0.0
    %3217 = vmatpush1.msra.mxu0 0.0
    %3218 = vmatprep.subr.mxu0 0.0
    %3219 = vmatpush1.msra.mxu0 %v2986
    %3220 = vmatprep.subr.mxu0 0.0
    %3221 = vmatpush1.msra.mxu0 %v2985
    %3222 = vmatprep.subr.mxu0 0.0
    %3223 = vmatpush1.msra.mxu0 %v2984
    %3224 = vmatprep.subr.mxu0 0.0
    %3225 = vmatpush1.msra.mxu0 %v2983
    %3226 = vmatprep.subr.mxu0 0.0
    %3227 = vmatpush2.msra.mxu0 0.0
    %3228 = vmatprep.subr.mxu0 0.0
    %3229 = vmatpush2.msra.mxu0 0.0
    %3230 = vmatprep.subr.mxu0 0.0
    %3231 = vmatpush2.msra.mxu0 0.0
    %3232 = vmatprep.subr.mxu0 0.0
    %3233 = vmatpush2.msra.mxu0 0.0
    %3234 = vmatprep.subr.mxu0 0.0
    %3235 = vmatpush2.msra.mxu0 0.0
    %3236 = vmatprep.subr.mxu0 0.0
    %3237 = vmatpush2.msra.mxu0 0.0
    %3238 = vmatprep.subr.mxu0 0.0
    %3239 = vmatpush2.msra.mxu0 0.0
    %3240 = vmatprep.subr.mxu0 0.0
    %3241 = vmatpush2.msra.mxu0 0.0
    %3242 = vmatprep.subr.mxu0 0.0
    %3243 = vmatpush2.msra.mxu0 0.0
    %3244 = vmatprep.subr.mxu0 0.0
    %3245 = vmatpush2.msra.mxu0 0.0
    %3246 = vmatprep.subr.mxu0 0.0
    %3247 = vmatpush2.msra.mxu0 0.0
    %3248 = vmatprep.subr.mxu0 0.0
    %3249 = vmatpush2.msra.mxu0 0.0
    %3250 = vmatprep.subr.mxu0 0.0
    %3251 = vmatpush2.msra.mxu0 0.0
    %3252 = vmatprep.subr.mxu0 0.0
    %3253 = vmatpush2.msra.mxu0 0.0
    %3254 = vmatprep.subr.mxu0 0.0
    %3255 = vmatpush2.msra.mxu0 0.0
    %3256 = vmatprep.subr.mxu0 0.0
    %3257 = vmatpush2.msra.mxu0 0.0
    %3258 = vmatprep.mubr.f32.mxu0 0.0
    %3259 = vmatmul.mubr.f32.gmra.mxu0 %v3192
    %v3260 = vpop.f32.mrf.mxu0
    %v3261 = vadd.f32 0.0, %v3260
    %v3262 = vpop.f32.mrf.mxu0
    %3263 = vdwg.mxu0
    %v3264 = vadd.f32 %v2955, %v3261
    %v3265 = vxor.u32 %v3264, 2147483648
    %v3266 = vmul.f32 %v3265, 1.442695
    %v3267 = vpow.pop %v3266
    %v3268 = vadd.f32 %v3267, 1.0
    %v3269 = vrcp.pop %v3268
    %v3270 = vmul.f32 1.0, %v3269
    %v3271 = vmul.f32 %v3270, 2.0
    %v3272 = vsub.f32 %v3271, 1.0
    %v3273 = vmul.f32 %v3270, %v3182
    %3275 = vrot.lane.b32.xlu0 %v3272, 64
    %v3276 = vpop.permute.xlu0 %3275
    %v3278 = vmul.f32 %v3270, %v3276
    %3280 = vrot.lane.b32.xlu0 %v3278, 32
    %v3281 = vpop.permute.xlu0 %3280
    %v3283 = vadd.f32 %v3273, %v3281
    %v3284 = vtanh.pop %v3283
    %3286 = vrot.lane.b32.xlu0 %v3284, 64
    %v3287 = vpop.permute.xlu0 %3286
    %v3289 = vmul.f32 %v3270, %v3287
    %3291 = vrot.lane.b32.xlu0 %v3289, 32
    %v3292 = vpop.permute.xlu0 %3291
    %v3293 = vsel %vm321, %v3292, 0
    %3295 = vmatprep.subr.mxu0 0.0
    %3296 = vmatpush1.msra.mxu0 0.0
    %3297 = vmatprep.subr.mxu0 0.0
    %3298 = vmatpush1.msra.mxu0 0.0
    %3299 = vmatprep.subr.mxu0 0.0
    %3300 = vmatpush1.msra.mxu0 0.0
    %3301 = vmatprep.subr.mxu0 0.0
    %3302 = vmatpush1.msra.mxu0 0.0
    %3303 = vmatprep.subr.mxu0 0.0
    %3304 = vmatpush1.msra.mxu0 0.0
    %3305 = vmatprep.subr.mxu0 0.0
    %3306 = vmatpush1.msra.mxu0 0.0
    %3307 = vmatprep.subr.mxu0 0.0
    %3308 = vmatpush1.msra.mxu0 0.0
    %3309 = vmatprep.subr.mxu0 0.0
    %3310 = vmatpush1.msra.mxu0 0.0
    %3311 = vmatprep.subr.mxu0 0.0
    %3312 = vmatpush1.msra.mxu0 0.0
    %3313 = vmatprep.subr.mxu0 0.0
    %3314 = vmatpush1.msra.mxu0 0.0
    %3315 = vmatprep.subr.mxu0 0.0
    %3316 = vmatpush1.msra.mxu0 0.0
    %3317 = vmatprep.subr.mxu0 0.0
    %3318 = vmatpush1.msra.mxu0 0.0
    %3319 = vmatprep.subr.mxu0 0.0
    %3320 = vmatpush1.msra.mxu0 %v2986
    %3321 = vmatprep.subr.mxu0 0.0
    %3322 = vmatpush1.msra.mxu0 %v2985
    %3323 = vmatprep.subr.mxu0 0.0
    %3324 = vmatpush1.msra.mxu0 %v2984
    %3325 = vmatprep.subr.mxu0 0.0
    %3326 = vmatpush1.msra.mxu0 %v2983
    %3327 = vmatprep.subr.mxu0 0.0
    %3328 = vmatpush2.msra.mxu0 0.0
    %3329 = vmatprep.subr.mxu0 0.0
    %3330 = vmatpush2.msra.mxu0 0.0
    %3331 = vmatprep.subr.mxu0 0.0
    %3332 = vmatpush2.msra.mxu0 0.0
    %3333 = vmatprep.subr.mxu0 0.0
    %3334 = vmatpush2.msra.mxu0 0.0
    %3335 = vmatprep.subr.mxu0 0.0
    %3336 = vmatpush2.msra.mxu0 0.0
    %3337 = vmatprep.subr.mxu0 0.0
    %3338 = vmatpush2.msra.mxu0 0.0
    %3339 = vmatprep.subr.mxu0 0.0
    %3340 = vmatpush2.msra.mxu0 0.0
    %3341 = vmatprep.subr.mxu0 0.0
    %3342 = vmatpush2.msra.mxu0 0.0
    %3343 = vmatprep.subr.mxu0 0.0
    %3344 = vmatpush2.msra.mxu0 0.0
    %3345 = vmatprep.subr.mxu0 0.0
    %3346 = vmatpush2.msra.mxu0 0.0
    %3347 = vmatprep.subr.mxu0 0.0
    %3348 = vmatpush2.msra.mxu0 0.0
    %3349 = vmatprep.subr.mxu0 0.0
    %3350 = vmatpush2.msra.mxu0 0.0
    %3351 = vmatprep.subr.mxu0 0.0
    %3352 = vmatpush2.msra.mxu0 0.0
    %3353 = vmatprep.subr.mxu0 0.0
    %3354 = vmatpush2.msra.mxu0 0.0
    %3355 = vmatprep.subr.mxu0 0.0
    %3356 = vmatpush2.msra.mxu0 0.0
    %3357 = vmatprep.subr.mxu0 0.0
    %3358 = vmatpush2.msra.mxu0 0.0
    %3359 = vmatprep.mubr.f32.mxu0 0.0
    %3360 = vmatmul.mubr.f32.gmra.mxu0 %v3293
    %v3361 = vpop.f32.mrf.mxu0
    %v3362 = vadd.f32 0.0, %v3361
    %v3363 = vpop.f32.mrf.mxu0
    %3364 = vdwg.mxu0
    %v3365 = vadd.f32 %v2960, %v3362
    %v3366 = vxor.u32 %v3365, 2147483648
    %v3367 = vmul.f32 %v3366, 1.442695
    %v3368 = vpow.pop %v3367
    %v3369 = vadd.f32 %v3368, 1.0
    %v3370 = vrcp.pop %v3369
    %v3371 = vmul.f32 1.0, %v3370
    %v3372 = vmul.f32 %v3371, 2.0
    %v3373 = vsub.f32 %v3372, 1.0
    %v3374 = vmul.f32 %v3371, %v3283
    %3376 = vrot.lane.b32.xlu0 %v3373, 64
    %v3377 = vpop.permute.xlu0 %3376
    %v3379 = vmul.f32 %v3371, %v3377
    %3381 = vrot.lane.b32.xlu0 %v3379, 32
    %v3382 = vpop.permute.xlu0 %3381
    %v3384 = vadd.f32 %v3374, %v3382
    %v3385 = vtanh.pop %v3384
    %3387 = vrot.lane.b32.xlu0 %v3385, 64
    %v3388 = vpop.permute.xlu0 %3387
    %v3390 = vmul.f32 %v3371, %v3388
    %3392 = vrot.lane.b32.xlu0 %v3390, 32
    %v3393 = vpop.permute.xlu0 %3392
    %v3394 = vsel %vm321, %v3393, 0
    %3396 = vmatprep.subr.mxu0 0.0
    %3397 = vmatpush1.msra.mxu0 0.0
    %3398 = vmatprep.subr.mxu0 0.0
    %3399 = vmatpush1.msra.mxu0 0.0
    %3400 = vmatprep.subr.mxu0 0.0
    %3401 = vmatpush1.msra.mxu0 0.0
    %3402 = vmatprep.subr.mxu0 0.0
    %3403 = vmatpush1.msra.mxu0 0.0
    %3404 = vmatprep.subr.mxu0 0.0
    %3405 = vmatpush1.msra.mxu0 0.0
    %3406 = vmatprep.subr.mxu0 0.0
    %3407 = vmatpush1.msra.mxu0 0.0
    %3408 = vmatprep.subr.mxu0 0.0
    %3409 = vmatpush1.msra.mxu0 0.0
    %3410 = vmatprep.subr.mxu0 0.0
    %3411 = vmatpush1.msra.mxu0 0.0
    %3412 = vmatprep.subr.mxu0 0.0
    %3413 = vmatpush1.msra.mxu0 0.0
    %3414 = vmatprep.subr.mxu0 0.0
    %3415 = vmatpush1.msra.mxu0 0.0
    %3416 = vmatprep.subr.mxu0 0.0
    %3417 = vmatpush1.msra.mxu0 0.0
    %3418 = vmatprep.subr.mxu0 0.0
    %3419 = vmatpush1.msra.mxu0 0.0
    %3420 = vmatprep.subr.mxu0 0.0
    %3421 = vmatpush1.msra.mxu0 %v2986
    %3422 = vmatprep.subr.mxu0 0.0
    %3423 = vmatpush1.msra.mxu0 %v2985
    %3424 = vmatprep.subr.mxu0 0.0
    %3425 = vmatpush1.msra.mxu0 %v2984
    %3426 = vmatprep.subr.mxu0 0.0
    %3427 = vmatpush1.msra.mxu0 %v2983
    %3428 = vmatprep.subr.mxu0 0.0
    %3429 = vmatpush2.msra.mxu0 0.0
    %3430 = vmatprep.subr.mxu0 0.0
    %3431 = vmatpush2.msra.mxu0 0.0
    %3432 = vmatprep.subr.mxu0 0.0
    %3433 = vmatpush2.msra.mxu0 0.0
    %3434 = vmatprep.subr.mxu0 0.0
    %3435 = vmatpush2.msra.mxu0 0.0
    %3436 = vmatprep.subr.mxu0 0.0
    %3437 = vmatpush2.msra.mxu0 0.0
    %3438 = vmatprep.subr.mxu0 0.0
    %3439 = vmatpush2.msra.mxu0 0.0
    %3440 = vmatprep.subr.mxu0 0.0
    %3441 = vmatpush2.msra.mxu0 0.0
    %3442 = vmatprep.subr.mxu0 0.0
    %3443 = vmatpush2.msra.mxu0 0.0
    %3444 = vmatprep.subr.mxu0 0.0
    %3445 = vmatpush2.msra.mxu0 0.0
    %3446 = vmatprep.subr.mxu0 0.0
    %3447 = vmatpush2.msra.mxu0 0.0
    %3448 = vmatprep.subr.mxu0 0.0
    %3449 = vmatpush2.msra.mxu0 0.0
    %3450 = vmatprep.subr.mxu0 0.0
    %3451 = vmatpush2.msra.mxu0 0.0
    %3452 = vmatprep.subr.mxu0 0.0
    %3453 = vmatpush2.msra.mxu0 0.0
    %3454 = vmatprep.subr.mxu0 0.0
    %3455 = vmatpush2.msra.mxu0 0.0
    %3456 = vmatprep.subr.mxu0 0.0
    %3457 = vmatpush2.msra.mxu0 0.0
    %3458 = vmatprep.subr.mxu0 0.0
    %3459 = vmatpush2.msra.mxu0 0.0
    %3460 = vmatprep.mubr.f32.mxu0 0.0
    %3461 = vmatmul.mubr.f32.gmra.mxu0 %v3394
    %v3462 = vpop.f32.mrf.mxu0
    %v3463 = vadd.f32 0.0, %v3462
    %v3464 = vpop.f32.mrf.mxu0
    %3465 = vdwg.mxu0
    %v3466 = vadd.f32 %v2965, %v3463
    %v3467 = vxor.u32 %v3466, 2147483648
    %v3468 = vmul.f32 %v3467, 1.442695
    %v3469 = vpow.pop %v3468
    %v3470 = vadd.f32 %v3469, 1.0
    %v3471 = vrcp.pop %v3470
    %v3472 = vmul.f32 1.0, %v3471
    %v3473 = vmul.f32 %v3472, 2.0
    %v3474 = vsub.f32 %v3473, 1.0
    %v3475 = vmul.f32 %v3472, %v3384
    %3477 = vrot.lane.b32.xlu0 %v3474, 64
    %v3478 = vpop.permute.xlu0 %3477
    %v3480 = vmul.f32 %v3472, %v3478
    %3482 = vrot.lane.b32.xlu0 %v3480, 32
    %v3483 = vpop.permute.xlu0 %3482
    %v3485 = vadd.f32 %v3475, %v3483
    %v3486 = vtanh.pop %v3485
    %3488 = vrot.lane.b32.xlu0 %v3486, 64
    %v3489 = vpop.permute.xlu0 %3488
    %v3491 = vmul.f32 %v3472, %v3489
    %3493 = vrot.lane.b32.xlu0 %v3491, 32
    %v3494 = vpop.permute.xlu0 %3493
    %v3495 = vsel %vm321, %v3494, 0
    %3497 = vmatprep.subr.mxu0 0.0
    %3498 = vmatpush1.msra.mxu0 0.0
    %3499 = vmatprep.subr.mxu0 0.0
    %3500 = vmatpush1.msra.mxu0 0.0
    %3501 = vmatprep.subr.mxu0 0.0
    %3502 = vmatpush1.msra.mxu0 0.0
    %3503 = vmatprep.subr.mxu0 0.0
    %3504 = vmatpush1.msra.mxu0 0.0
    %3505 = vmatprep.subr.mxu0 0.0
    %3506 = vmatpush1.msra.mxu0 0.0
    %3507 = vmatprep.subr.mxu0 0.0
    %3508 = vmatpush1.msra.mxu0 0.0
    %3509 = vmatprep.subr.mxu0 0.0
    %3510 = vmatpush1.msra.mxu0 0.0
    %3511 = vmatprep.subr.mxu0 0.0
    %3512 = vmatpush1.msra.mxu0 0.0
    %3513 = vmatprep.subr.mxu0 0.0
    %3514 = vmatpush1.msra.mxu0 0.0
    %3515 = vmatprep.subr.mxu0 0.0
    %3516 = vmatpush1.msra.mxu0 0.0
    %3517 = vmatprep.subr.mxu0 0.0
    %3518 = vmatpush1.msra.mxu0 0.0
    %3519 = vmatprep.subr.mxu0 0.0
    %3520 = vmatpush1.msra.mxu0 0.0
    %3521 = vmatprep.subr.mxu0 0.0
    %3522 = vmatpush1.msra.mxu0 %v2986
    %3523 = vmatprep.subr.mxu0 0.0
    %3524 = vmatpush1.msra.mxu0 %v2985
    %3525 = vmatprep.subr.mxu0 0.0
    %3526 = vmatpush1.msra.mxu0 %v2984
    %3527 = vmatprep.subr.mxu0 0.0
    %3528 = vmatpush1.msra.mxu0 %v2983
    %3529 = vmatprep.subr.mxu0 0.0
    %3530 = vmatpush2.msra.mxu0 0.0
    %3531 = vmatprep.subr.mxu0 0.0
    %3532 = vmatpush2.msra.mxu0 0.0
    %3533 = vmatprep.subr.mxu0 0.0
    %3534 = vmatpush2.msra.mxu0 0.0
    %3535 = vmatprep.subr.mxu0 0.0
    %3536 = vmatpush2.msra.mxu0 0.0
    %3537 = vmatprep.subr.mxu0 0.0
    %3538 = vmatpush2.msra.mxu0 0.0
    %3539 = vmatprep.subr.mxu0 0.0
    %3540 = vmatpush2.msra.mxu0 0.0
    %3541 = vmatprep.subr.mxu0 0.0
    %3542 = vmatpush2.msra.mxu0 0.0
    %3543 = vmatprep.subr.mxu0 0.0
    %3544 = vmatpush2.msra.mxu0 0.0
    %3545 = vmatprep.subr.mxu0 0.0
    %3546 = vmatpush2.msra.mxu0 0.0
    %3547 = vmatprep.subr.mxu0 0.0
    %3548 = vmatpush2.msra.mxu0 0.0
    %3549 = vmatprep.subr.mxu0 0.0
    %3550 = vmatpush2.msra.mxu0 0.0
    %3551 = vmatprep.subr.mxu0 0.0
    %3552 = vmatpush2.msra.mxu0 0.0
    %3553 = vmatprep.subr.mxu0 0.0
    %3554 = vmatpush2.msra.mxu0 0.0
    %3555 = vmatprep.subr.mxu0 0.0
    %3556 = vmatpush2.msra.mxu0 0.0
    %3557 = vmatprep.subr.mxu0 0.0
    %3558 = vmatpush2.msra.mxu0 0.0
    %3559 = vmatprep.subr.mxu0 0.0
    %3560 = vmatpush2.msra.mxu0 0.0
    %3561 = vmatprep.mubr.f32.mxu0 0.0
    %3562 = vmatmul.mubr.f32.gmra.mxu0 %v3495
    %v3563 = vpop.f32.mrf.mxu0
    %v3564 = vadd.f32 0.0, %v3563
    %v3565 = vpop.f32.mrf.mxu0
    %3566 = vdwg.mxu0
    %v3567 = vadd.f32 %v2970, %v3564
    %v3568 = vxor.u32 %v3567, 2147483648
    %v3569 = vmul.f32 %v3568, 1.442695
    %v3570 = vpow.pop %v3569
    %v3571 = vadd.f32 %v3570, 1.0
    %v3572 = vrcp.pop %v3571
    %v3573 = vmul.f32 1.0, %v3572
    %v3574 = vmul.f32 %v3573, 2.0
    %v3575 = vsub.f32 %v3574, 1.0
    %v3576 = vmul.f32 %v3573, %v3485
    %3578 = vrot.lane.b32.xlu0 %v3575, 64
    %v3579 = vpop.permute.xlu0 %3578
    %v3581 = vmul.f32 %v3573, %v3579
    %3583 = vrot.lane.b32.xlu0 %v3581, 32
    %v3584 = vpop.permute.xlu0 %3583
    %v3586 = vadd.f32 %v3576, %v3584
    %v3587 = vtanh.pop %v3586
    %3589 = vrot.lane.b32.xlu0 %v3587, 64
    %v3590 = vpop.permute.xlu0 %3589
    %v3592 = vmul.f32 %v3573, %v3590
    %3594 = vrot.lane.b32.xlu0 %v3592, 32
    %v3595 = vpop.permute.xlu0 %3594
    %v3596 = vsel %vm321, %v3595, 0
    %3598 = vmatprep.subr.mxu0 0.0
    %3599 = vmatpush1.msra.mxu0 0.0
    %3600 = vmatprep.subr.mxu0 0.0
    %3601 = vmatpush1.msra.mxu0 0.0
    %3602 = vmatprep.subr.mxu0 0.0
    %3603 = vmatpush1.msra.mxu0 0.0
    %3604 = vmatprep.subr.mxu0 0.0
    %3605 = vmatpush1.msra.mxu0 0.0
    %3606 = vmatprep.subr.mxu0 0.0
    %3607 = vmatpush1.msra.mxu0 0.0
    %3608 = vmatprep.subr.mxu0 0.0
    %3609 = vmatpush1.msra.mxu0 0.0
    %3610 = vmatprep.subr.mxu0 0.0
    %3611 = vmatpush1.msra.mxu0 0.0
    %3612 = vmatprep.subr.mxu0 0.0
    %3613 = vmatpush1.msra.mxu0 0.0
    %3614 = vmatprep.subr.mxu0 0.0
    %3615 = vmatpush1.msra.mxu0 0.0
    %3616 = vmatprep.subr.mxu0 0.0
    %3617 = vmatpush1.msra.mxu0 0.0
    %3618 = vmatprep.subr.mxu0 0.0
    %3619 = vmatpush1.msra.mxu0 0.0
    %3620 = vmatprep.subr.mxu0 0.0
    %3621 = vmatpush1.msra.mxu0 0.0
    %3622 = vmatprep.subr.mxu0 0.0
    %3623 = vmatpush1.msra.mxu0 %v2986
    %3624 = vmatprep.subr.mxu0 0.0
    %3625 = vmatpush1.msra.mxu0 %v2985
    %3626 = vmatprep.subr.mxu0 0.0
    %3627 = vmatpush1.msra.mxu0 %v2984
    %3628 = vmatprep.subr.mxu0 0.0
    %3629 = vmatpush1.msra.mxu0 %v2983
    %3630 = vmatprep.subr.mxu0 0.0
    %3631 = vmatpush2.msra.mxu0 0.0
    %3632 = vmatprep.subr.mxu0 0.0
    %3633 = vmatpush2.msra.mxu0 0.0
    %3634 = vmatprep.subr.mxu0 0.0
    %3635 = vmatpush2.msra.mxu0 0.0
    %3636 = vmatprep.subr.mxu0 0.0
    %3637 = vmatpush2.msra.mxu0 0.0
    %3638 = vmatprep.subr.mxu0 0.0
    %3639 = vmatpush2.msra.mxu0 0.0
    %3640 = vmatprep.subr.mxu0 0.0
    %3641 = vmatpush2.msra.mxu0 0.0
    %3642 = vmatprep.subr.mxu0 0.0
    %3643 = vmatpush2.msra.mxu0 0.0
    %3644 = vmatprep.subr.mxu0 0.0
    %3645 = vmatpush2.msra.mxu0 0.0
    %3646 = vmatprep.subr.mxu0 0.0
    %3647 = vmatpush2.msra.mxu0 0.0
    %3648 = vmatprep.subr.mxu0 0.0
    %3649 = vmatpush2.msra.mxu0 0.0
    %3650 = vmatprep.subr.mxu0 0.0
    %3651 = vmatpush2.msra.mxu0 0.0
    %3652 = vmatprep.subr.mxu0 0.0
    %3653 = vmatpush2.msra.mxu0 0.0
    %3654 = vmatprep.subr.mxu0 0.0
    %3655 = vmatpush2.msra.mxu0 0.0
    %3656 = vmatprep.subr.mxu0 0.0
    %3657 = vmatpush2.msra.mxu0 0.0
    %3658 = vmatprep.subr.mxu0 0.0
    %3659 = vmatpush2.msra.mxu0 0.0
    %3660 = vmatprep.subr.mxu0 0.0
    %3661 = vmatpush2.msra.mxu0 0.0
    %3662 = vmatprep.mubr.f32.mxu0 0.0
    %3663 = vmatmul.mubr.f32.gmra.mxu0 %v3596
    %v3664 = vpop.f32.mrf.mxu0
    %v3665 = vadd.f32 0.0, %v3664
    %v3666 = vpop.f32.mrf.mxu0
    %3667 = vdwg.mxu0
    %v3668 = vadd.f32 %v2975, %v3665
    %v3669 = vxor.u32 %v3668, 2147483648
    %v3670 = vmul.f32 %v3669, 1.442695
    %v3671 = vpow.pop %v3670
    %v3672 = vadd.f32 %v3671, 1.0
    %v3673 = vrcp.pop %v3672
    %v3674 = vmul.f32 1.0, %v3673
    %v3675 = vmul.f32 %v3674, 2.0
    %v3676 = vsub.f32 %v3675, 1.0
    %v3677 = vmul.f32 %v3674, %v3586
    %3679 = vrot.lane.b32.xlu0 %v3676, 64
    %v3680 = vpop.permute.xlu0 %3679
    %v3682 = vmul.f32 %v3674, %v3680
    %3684 = vrot.lane.b32.xlu0 %v3682, 32
    %v3685 = vpop.permute.xlu0 %3684
    %v3687 = vadd.f32 %v3677, %v3685
    %v3688 = vtanh.pop %v3687
    %3690 = vrot.lane.b32.xlu0 %v3688, 64
    %v3691 = vpop.permute.xlu0 %3690
    %v3693 = vmul.f32 %v3674, %v3691
    %3695 = vrot.lane.b32.xlu0 %v3693, 32
    %v3696 = vpop.permute.xlu0 %3695
    %v3697 = vsel %vm321, %v3696, 0
    %3699 = vmatprep.subr.mxu0 0.0
    %3700 = vmatpush1.msra.mxu0 0.0
    %3701 = vmatprep.subr.mxu0 0.0
    %3702 = vmatpush1.msra.mxu0 0.0
    %3703 = vmatprep.subr.mxu0 0.0
    %3704 = vmatpush1.msra.mxu0 0.0
    %3705 = vmatprep.subr.mxu0 0.0
    %3706 = vmatpush1.msra.mxu0 0.0
    %3707 = vmatprep.subr.mxu0 0.0
    %3708 = vmatpush1.msra.mxu0 0.0
    %3709 = vmatprep.subr.mxu0 0.0
    %3710 = vmatpush1.msra.mxu0 0.0
    %3711 = vmatprep.subr.mxu0 0.0
    %3712 = vmatpush1.msra.mxu0 0.0
    %3713 = vmatprep.subr.mxu0 0.0
    %3714 = vmatpush1.msra.mxu0 0.0
    %3715 = vmatprep.subr.mxu0 0.0
    %3716 = vmatpush1.msra.mxu0 0.0
    %3717 = vmatprep.subr.mxu0 0.0
    %3718 = vmatpush1.msra.mxu0 0.0
    %3719 = vmatprep.subr.mxu0 0.0
    %3720 = vmatpush1.msra.mxu0 0.0
    %3721 = vmatprep.subr.mxu0 0.0
    %3722 = vmatpush1.msra.mxu0 0.0
    %3723 = vmatprep.subr.mxu0 0.0
    %3724 = vmatpush1.msra.mxu0 %v2986
    %3725 = vmatprep.subr.mxu0 0.0
    %3726 = vmatpush1.msra.mxu0 %v2985
    %3727 = vmatprep.subr.mxu0 0.0
    %3728 = vmatpush1.msra.mxu0 %v2984
    %3729 = vmatprep.subr.mxu0 0.0
    %3730 = vmatpush1.msra.mxu0 %v2983
    %3731 = vmatprep.subr.mxu0 0.0
    %3732 = vmatpush2.msra.mxu0 0.0
    %3733 = vmatprep.subr.mxu0 0.0
    %3734 = vmatpush2.msra.mxu0 0.0
    %3735 = vmatprep.subr.mxu0 0.0
    %3736 = vmatpush2.msra.mxu0 0.0
    %3737 = vmatprep.subr.mxu0 0.0
    %3738 = vmatpush2.msra.mxu0 0.0
    %3739 = vmatprep.subr.mxu0 0.0
    %3740 = vmatpush2.msra.mxu0 0.0
    %3741 = vmatprep.subr.mxu0 0.0
    %3742 = vmatpush2.msra.mxu0 0.0
    %3743 = vmatprep.subr.mxu0 0.0
    %3744 = vmatpush2.msra.mxu0 0.0
    %3745 = vmatprep.subr.mxu0 0.0
    %3746 = vmatpush2.msra.mxu0 0.0
    %3747 = vmatprep.subr.mxu0 0.0
    %3748 = vmatpush2.msra.mxu0 0.0
    %3749 = vmatprep.subr.mxu0 0.0
    %3750 = vmatpush2.msra.mxu0 0.0
    %3751 = vmatprep.subr.mxu0 0.0
    %3752 = vmatpush2.msra.mxu0 0.0
    %3753 = vmatprep.subr.mxu0 0.0
    %3754 = vmatpush2.msra.mxu0 0.0
    %3755 = vmatprep.subr.mxu0 0.0
    %3756 = vmatpush2.msra.mxu0 0.0
    %3757 = vmatprep.subr.mxu0 0.0
    %3758 = vmatpush2.msra.mxu0 0.0
    %3759 = vmatprep.subr.mxu0 0.0
    %3760 = vmatpush2.msra.mxu0 0.0
    %3761 = vmatprep.subr.mxu0 0.0
    %3762 = vmatpush2.msra.mxu0 0.0
    %3763 = vmatprep.mubr.f32.mxu0 0.0
    %3764 = vmatmul.mubr.f32.gmra.mxu0 %v3697
    %v3765 = vpop.f32.mrf.mxu0
    %v3766 = vadd.f32 0.0, %v3765
    %v3767 = vpop.f32.mrf.mxu0
    %3768 = vdwg.mxu0
    %v3769 = vadd.f32 %v2980, %v3766
    %v3770 = vxor.u32 %v3769, 2147483648
    %v3771 = vmul.f32 %v3770, 1.442695
    %v3772 = vpow.pop %v3771
    %v3773 = vadd.f32 %v3772, 1.0
    %v3774 = vrcp.pop %v3773
    %v3775 = vmul.f32 1.0, %v3774
    %v3776 = vmul.f32 %v3775, 2.0
    %v3777 = vsub.f32 %v3776, 1.0
    %v3778 = vmul.f32 %v3775, %v3687
    %3780 = vrot.lane.b32.xlu0 %v3777, 64
    %v3781 = vpop.permute.xlu0 %3780
    %v3783 = vmul.f32 %v3775, %v3781
    %3785 = vrot.lane.b32.xlu0 %v3783, 32
    %v3786 = vpop.permute.xlu0 %3785
    %v3788 = vadd.f32 %v3778, %v3786
    %v3789 = vtanh.pop %v3788
    %3791 = vrot.lane.b32.xlu0 %v3789, 64
    %v3792 = vpop.permute.xlu0 %3791
    %v3794 = vmul.f32 %v3775, %v3792
    %3796 = vrot.lane.b32.xlu0 %v3794, 32
    %v3797 = vpop.permute.xlu0 %3796
    %v3806 = vsel %vm321, %v3090, 0.0
    %3807 = vadd.xlane.f32.xlu0 %v3806
    %v3808 = vpop.xlane.xlu0 %3807
    %v3809 = vsel %vm321, %v3191, 0.0
    %3810 = vadd.xlane.f32.xlu0 %v3809
    %v3811 = vpop.xlane.xlu0 %3810
    %v3812 = vsel %vm321, %v3292, 0.0
    %3813 = vadd.xlane.f32.xlu0 %v3812
    %v3814 = vpop.xlane.xlu0 %3813
    %v3815 = vsel %vm321, %v3393, 0.0
    %3816 = vadd.xlane.f32.xlu0 %v3815
    %v3817 = vpop.xlane.xlu0 %3816
    %v3818 = vsel %vm321, %v3494, 0.0
    %3819 = vadd.xlane.f32.xlu0 %v3818
    %v3820 = vpop.xlane.xlu0 %3819
    %v3821 = vsel %vm321, %v3595, 0.0
    %3822 = vadd.xlane.f32.xlu0 %v3821
    %v3823 = vpop.xlane.xlu0 %3822
    %v3824 = vsel %vm321, %v3696, 0.0
    %3825 = vadd.xlane.f32.xlu0 %v3824
    %v3826 = vpop.xlane.xlu0 %3825
    %v3827 = vsel %vm321, %v3797, 0.0
    %3828 = vadd.xlane.f32.xlu0 %v3827
    %v3829 = vpop.xlane.xlu0 %3828
    %v3830 = vrcp.pop 32.0
    %v3831 = vmul.f32 %v3808, %v3830
    %v3832 = vmul.f32 %v3811, %v3830
    %v3833 = vmul.f32 %v3814, %v3830
    %v3834 = vmul.f32 %v3817, %v3830
    %v3835 = vmul.f32 %v3820, %v3830
    %v3836 = vmul.f32 %v3823, %v3830
    %v3837 = vmul.f32 %v3826, %v3830
    %v3838 = vmul.f32 %v3829, %v3830
    %v3839 = vsub.f32 %v3087, %v3831
    %v3840 = vsub.f32 %v3188, %v3832
    %v3841 = vsub.f32 %v3289, %v3833
    %v3842 = vsub.f32 %v3390, %v3834
    %v3843 = vsub.f32 %v3491, %v3835
    %v3844 = vsub.f32 %v3592, %v3836
    %v3845 = vsub.f32 %v3693, %v3837
    %v3846 = vsub.f32 %v3794, %v3838
    %v3847 = vmul.f32 %v3839, %v3839
    %v3848 = vmul.f32 %v3840, %v3840
    %v3849 = vmul.f32 %v3841, %v3841
    %v3850 = vmul.f32 %v3842, %v3842
    %v3851 = vmul.f32 %v3843, %v3843
    %v3852 = vmul.f32 %v3844, %v3844
    %v3853 = vmul.f32 %v3845, %v3845
    %v3854 = vmul.f32 %v3846, %v3846
    %3863 = vrot.lane.b32.xlu0 %v3847, 32
    %v3864 = vpop.permute.xlu0 %3863
    %3865 = vrot.lane.b32.xlu0 %v3848, 32
    %v3866 = vpop.permute.xlu0 %3865
    %3867 = vrot.lane.b32.xlu0 %v3849, 32
    %v3868 = vpop.permute.xlu0 %3867
    %3869 = vrot.lane.b32.xlu0 %v3850, 32
    %v3870 = vpop.permute.xlu0 %3869
    %3871 = vrot.lane.b32.xlu0 %v3851, 32
    %v3872 = vpop.permute.xlu0 %3871
    %3873 = vrot.lane.b32.xlu0 %v3852, 32
    %v3874 = vpop.permute.xlu0 %3873
    %3875 = vrot.lane.b32.xlu0 %v3853, 32
    %v3876 = vpop.permute.xlu0 %3875
    %3877 = vrot.lane.b32.xlu0 %v3854, 32
    %v3878 = vpop.permute.xlu0 %3877
    %v3887 = vsel %vm321, %v3864, 0.0
    %3888 = vadd.xlane.f32.xlu0 %v3887
    %v3889 = vpop.xlane.xlu0 %3888
    %v3890 = vsel %vm321, %v3866, 0.0
    %3891 = vadd.xlane.f32.xlu0 %v3890
    %v3892 = vpop.xlane.xlu0 %3891
    %v3893 = vsel %vm321, %v3868, 0.0
    %3894 = vadd.xlane.f32.xlu0 %v3893
    %v3895 = vpop.xlane.xlu0 %3894
    %v3896 = vsel %vm321, %v3870, 0.0
    %3897 = vadd.xlane.f32.xlu0 %v3896
    %v3898 = vpop.xlane.xlu0 %3897
    %v3899 = vsel %vm321, %v3872, 0.0
    %3900 = vadd.xlane.f32.xlu0 %v3899
    %v3901 = vpop.xlane.xlu0 %3900
    %v3902 = vsel %vm321, %v3874, 0.0
    %3903 = vadd.xlane.f32.xlu0 %v3902
    %v3904 = vpop.xlane.xlu0 %3903
    %v3905 = vsel %vm321, %v3876, 0.0
    %3906 = vadd.xlane.f32.xlu0 %v3905
    %v3907 = vpop.xlane.xlu0 %3906
    %v3908 = vsel %vm321, %v3878, 0.0
    %3909 = vadd.xlane.f32.xlu0 %v3908
    %v3910 = vpop.xlane.xlu0 %3909
    %v3911 = vmul.f32 %v3889, %v3830
    %v3912 = vmul.f32 %v3892, %v3830
    %v3913 = vmul.f32 %v3895, %v3830
    %v3914 = vmul.f32 %v3898, %v3830
    %v3915 = vmul.f32 %v3901, %v3830
    %v3916 = vmul.f32 %v3904, %v3830
    %v3917 = vmul.f32 %v3907, %v3830
    %v3918 = vmul.f32 %v3910, %v3830
    %v3919 = vadd.f32 %v3911, 1e-05
    %v3920 = vadd.f32 %v3912, 1e-05
    %v3921 = vadd.f32 %v3913, 1e-05
    %v3922 = vadd.f32 %v3914, 1e-05
    %v3923 = vadd.f32 %v3915, 1e-05
    %v3924 = vadd.f32 %v3916, 1e-05
    %v3925 = vadd.f32 %v3917, 1e-05
    %v3926 = vadd.f32 %v3918, 1e-05
    %v3927 = vrsqrt.pop %v3919
    %v3928 = vrsqrt.pop %v3920
    %v3929 = vrsqrt.pop %v3921
    %v3930 = vrsqrt.pop %v3922
    %v3931 = vrsqrt.pop %v3923
    %v3932 = vrsqrt.pop %v3924
    %v3933 = vrsqrt.pop %v3925
    %v3934 = vrsqrt.pop %v3926
    %v3935 = vmul.f32 %v3839, %v3927
    %v3936 = vmul.f32 %v3840, %v3928
    %v3937 = vmul.f32 %v3841, %v3929
    %v3938 = vmul.f32 %v3842, %v3930
    %v3939 = vmul.f32 %v3843, %v3931
    %v3940 = vmul.f32 %v3844, %v3932
    %v3941 = vmul.f32 %v3845, %v3933
    %v3942 = vmul.f32 %v3846, %v3934
    %v3943 = vld [vmem:[%s12] sm:$0x1]
    %v3945 = vlaneseq
    %v3946 = vshrl.u32 %v3945, 7
    %v3947 = vsub.s32 0, %v3946
    %v3948 = vrot.slane %v3943, %v3947
    %3949 = vrot.lane.b32.xlu0 %v3948, 96
    %v3950 = vpop.permute.xlu0 %3949
    %v3952 = vmul.f32 %v3935, %v3950
    %v3953 = vmul.f32 %v3936, %v3950
    %v3954 = vmul.f32 %v3937, %v3950
    %v3955 = vmul.f32 %v3938, %v3950
    %v3956 = vmul.f32 %v3939, %v3950
    %v3957 = vmul.f32 %v3940, %v3950
    %v3958 = vmul.f32 %v3941, %v3950
    %v3959 = vmul.f32 %v3942, %v3950
    %v3960 = vld [vmem:[%s13] sm:$0x1]
    %v3962 = vlaneseq
    %v3963 = vshrl.u32 %v3962, 7
    %v3964 = vsub.s32 0, %v3963
    %v3965 = vrot.slane %v3960, %v3964
    %3966 = vrot.lane.b32.xlu0 %v3965, 96
    %v3967 = vpop.permute.xlu0 %3966
    %v3969 = vadd.f32 %v3952, %v3967
    %v3970 = vadd.f32 %v3953, %v3967
    %v3971 = vadd.f32 %v3954, %v3967
    %v3972 = vadd.f32 %v3955, %v3967
    %v3973 = vadd.f32 %v3956, %v3967
    %v3974 = vadd.f32 %v3957, %v3967
    %v3975 = vadd.f32 %v3958, %v3967
    %v3976 = vadd.f32 %v3959, %v3967
    %v3977 = vld [vmem:[%s14] sm:$0xff]
    %v3978 = vld [vmem:[%s14 + $0x8] sm:$0xff]
    %v3979 = vld [vmem:[%s14 + $0x10] sm:$0xff]
    %v3980 = vld [vmem:[%s14 + $0x18] sm:$0xff]
    %v3981 = vld [vmem:[%s15] sm:$0x1]
    %v3983 = vlaneseq
    %v3984 = vshrl.u32 %v3983, 7
    %v3985 = vsub.s32 0, %v3984
    %v3986 = vrot.slane %v3981, %v3985
    %3996 = vrot.lane.b32.xlu0 %v3969, 32
    %v3997 = vpop.permute.xlu0 %3996
    %3998 = vrot.lane.b32.xlu0 %v3970, 32
    %v3999 = vpop.permute.xlu0 %3998
    %4000 = vrot.lane.b32.xlu0 %v3971, 32
    %v4001 = vpop.permute.xlu0 %4000
    %4002 = vrot.lane.b32.xlu0 %v3972, 32
    %v4003 = vpop.permute.xlu0 %4002
    %4004 = vrot.lane.b32.xlu0 %v3973, 32
    %v4005 = vpop.permute.xlu0 %4004
    %4006 = vrot.lane.b32.xlu0 %v3974, 32
    %v4007 = vpop.permute.xlu0 %4006
    %4008 = vrot.lane.b32.xlu0 %v3975, 32
    %v4009 = vpop.permute.xlu0 %4008
    %4010 = vrot.lane.b32.xlu0 %v3976, 32
    %v4011 = vpop.permute.xlu0 %4010
    %v4012 = vsel %vm321, %v3997, 0
    %v4014 = vsel %vm321, %v3999, 0
    %v4016 = vsel %vm321, %v4001, 0
    %v4018 = vsel %vm321, %v4003, 0
    %v4020 = vsel %vm321, %v4005, 0
    %v4022 = vsel %vm321, %v4007, 0
    %v4024 = vsel %vm321, %v4009, 0
    %v4026 = vsel %vm321, %v4011, 0
    %4028 = vmatprep.subr.mxu0 0.0
    %4029 = vmatpush1.msra.mxu0 0.0
    %4030 = vmatprep.subr.mxu0 0.0
    %4031 = vmatpush1.msra.mxu0 0.0
    %4032 = vmatprep.subr.mxu0 0.0
    %4033 = vmatpush1.msra.mxu0 0.0
    %4034 = vmatprep.subr.mxu0 0.0
    %4035 = vmatpush1.msra.mxu0 0.0
    %4036 = vmatprep.subr.mxu0 0.0
    %4037 = vmatpush1.msra.mxu0 0.0
    %4038 = vmatprep.subr.mxu0 0.0
    %4039 = vmatpush1.msra.mxu0 0.0
    %4040 = vmatprep.subr.mxu0 0.0
    %4041 = vmatpush1.msra.mxu0 0.0
    %4042 = vmatprep.subr.mxu0 0.0
    %4043 = vmatpush1.msra.mxu0 0.0
    %4044 = vmatprep.subr.mxu0 0.0
    %4045 = vmatpush1.msra.mxu0 0.0
    %4046 = vmatprep.subr.mxu0 0.0
    %4047 = vmatpush1.msra.mxu0 0.0
    %4048 = vmatprep.subr.mxu0 0.0
    %4049 = vmatpush1.msra.mxu0 0.0
    %4050 = vmatprep.subr.mxu0 0.0
    %4051 = vmatpush1.msra.mxu0 0.0
    %4052 = vmatprep.subr.mxu0 0.0
    %4053 = vmatpush1.msra.mxu0 %v3980
    %4054 = vmatprep.subr.mxu0 0.0
    %4055 = vmatpush1.msra.mxu0 %v3979
    %4056 = vmatprep.subr.mxu0 0.0
    %4057 = vmatpush1.msra.mxu0 %v3978
    %4058 = vmatprep.subr.mxu0 0.0
    %4059 = vmatpush1.msra.mxu0 %v3977
    %4060 = vmatprep.subr.mxu0 0.0
    %4061 = vmatpush2.msra.mxu0 0.0
    %4062 = vmatprep.subr.mxu0 0.0
    %4063 = vmatpush2.msra.mxu0 0.0
    %4064 = vmatprep.subr.mxu0 0.0
    %4065 = vmatpush2.msra.mxu0 0.0
    %4066 = vmatprep.subr.mxu0 0.0
    %4067 = vmatpush2.msra.mxu0 0.0
    %4068 = vmatprep.subr.mxu0 0.0
    %4069 = vmatpush2.msra.mxu0 0.0
    %4070 = vmatprep.subr.mxu0 0.0
    %4071 = vmatpush2.msra.mxu0 0.0
    %4072 = vmatprep.subr.mxu0 0.0
    %4073 = vmatpush2.msra.mxu0 0.0
    %4074 = vmatprep.subr.mxu0 0.0
    %4075 = vmatpush2.msra.mxu0 0.0
    %4076 = vmatprep.subr.mxu0 0.0
    %4077 = vmatpush2.msra.mxu0 0.0
    %4078 = vmatprep.subr.mxu0 0.0
    %4079 = vmatpush2.msra.mxu0 0.0
    %4080 = vmatprep.subr.mxu0 0.0
    %4081 = vmatpush2.msra.mxu0 0.0
    %4082 = vmatprep.subr.mxu0 0.0
    %4083 = vmatpush2.msra.mxu0 0.0
    %4084 = vmatprep.subr.mxu0 0.0
    %4085 = vmatpush2.msra.mxu0 0.0
    %4086 = vmatprep.subr.mxu0 0.0
    %4087 = vmatpush2.msra.mxu0 0.0
    %4088 = vmatprep.subr.mxu0 0.0
    %4089 = vmatpush2.msra.mxu0 0.0
    %4090 = vmatprep.subr.mxu0 0.0
    %4091 = vmatpush2.msra.mxu0 0.0
    %4092 = vmatprep.mubr.f32.mxu0 0.0
    %4093 = vmatmul.mubr.f32.gmra.mxu0 %v4012
    %v4094 = vpop.f32.mrf.mxu0
    %v4095 = vadd.f32 %v3986, %v4094
    %v4096 = vpop.f32.mrf.mxu0
    %4097 = vmatprep.mubr.f32.mxu0 0.0
    %4098 = vmatmul.mubr.f32.gmra.mxu0 %v4014
    %v4099 = vpop.f32.mrf.mxu0
    %v4100 = vadd.f32 %v3986, %v4099
    %v4101 = vpop.f32.mrf.mxu0
    %4102 = vmatprep.mubr.f32.mxu0 0.0
    %4103 = vmatmul.mubr.f32.gmra.mxu0 %v4016
    %v4104 = vpop.f32.mrf.mxu0
    %v4105 = vadd.f32 %v3986, %v4104
    %v4106 = vpop.f32.mrf.mxu0
    %4107 = vmatprep.mubr.f32.mxu0 0.0
    %4108 = vmatmul.mubr.f32.gmra.mxu0 %v4018
    %v4109 = vpop.f32.mrf.mxu0
    %v4110 = vadd.f32 %v3986, %v4109
    %v4111 = vpop.f32.mrf.mxu0
    %4112 = vmatprep.mubr.f32.mxu0 0.0
    %4113 = vmatmul.mubr.f32.gmra.mxu0 %v4020
    %v4114 = vpop.f32.mrf.mxu0
    %v4115 = vadd.f32 %v3986, %v4114
    %v4116 = vpop.f32.mrf.mxu0
    %4117 = vmatprep.mubr.f32.mxu0 0.0
    %4118 = vmatmul.mubr.f32.gmra.mxu0 %v4022
    %v4119 = vpop.f32.mrf.mxu0
    %v4120 = vadd.f32 %v3986, %v4119
    %v4121 = vpop.f32.mrf.mxu0
    %4122 = vmatprep.mubr.f32.mxu0 0.0
    %4123 = vmatmul.mubr.f32.gmra.mxu0 %v4024
    %v4124 = vpop.f32.mrf.mxu0
    %v4125 = vadd.f32 %v3986, %v4124
    %v4126 = vpop.f32.mrf.mxu0
    %4127 = vmatprep.mubr.f32.mxu0 0.0
    %4128 = vmatmul.mubr.f32.gmra.mxu0 %v4026
    %v4129 = vpop.f32.mrf.mxu0
    %v4130 = vadd.f32 %v3986, %v4129
    %v4131 = vpop.f32.mrf.mxu0
    %4132 = vdwg.mxu0
    %4133 = vst.msk [vmem:[#allocation17] sm:$0xff] %vm187, %v4095
    %4134 = vst.msk [vmem:[#allocation17 + $0x8] sm:$0xff] %vm187, %v4100
    %4135 = vst.msk [vmem:[#allocation17 + $0x10] sm:$0xff] %vm187, %v4105
    %4136 = vst.msk [vmem:[#allocation17 + $0x18] sm:$0xff] %vm187, %v4110
    %4137 = vst.msk [vmem:[#allocation17 + $0x20] sm:$0xff] %vm187, %v4115
    %4138 = vst.msk [vmem:[#allocation17 + $0x28] sm:$0xff] %vm187, %v4120
    %4139 = vst.msk [vmem:[#allocation17 + $0x30] sm:$0xff] %vm187, %v4125
    %4140 = vst.msk [vmem:[#allocation17 + $0x38] sm:$0xff] %vm187, %v4130
    // Predicated region
    $region102: #{tpu_custom_call.1} parent=1 // pred_check
      _
    $region103: #{tpu_custom_call.1} parent=1 // pred_check_branch
      %4142 = sbr.rel (0) target = $region105
    $region104: #{tpu_custom_call.1} parent=1 // pred_region
      %s4144 = ssub.s32 1024, 1024
      %4145 = vsyncadd [#allocation4], %s4144
      %s4146 = sshll.u32 [#allocation17], 4
      %s4147 = int_to_ptr.vmem [resolvable:$true] %s4146
      %4152 = dma.vmem_to_hbm [thread:$0]  %s4147, 1024, %s16, [#allocation4], 128, 128, 8
    $region105: #{tpu_custom_call.1} parent=1 // pred_fallthru
      _
    // Predicated region
    $region106: #{tpu_custom_call.1} parent=1 // pred_check
      _
    $region107: #{tpu_custom_call.1} parent=1 // pred_check_branch
      %4154 = sbr.rel (0) target = $region109
    $region108: #{tpu_custom_call.1} parent=1 // pred_region
      %4155 = dma.done [#allocation4], 1024
    $region109: #{tpu_custom_call.1} parent=1 // pred_fallthru
      _
    %4156 = vsyncpa [#allocation3], 1
    %4157 = vsyncpa [#allocation6], 1
    %4158 = vsyncpa [#allocation9], 1
    %4159 = vsyncpa [#allocation12], 1
    %4160 = vsyncpa [#allocation15], 1
    %4161 = vsyncpa [#allocation4], 1

</llo_original>
